<compile_context>
chip_gen: v7x
topology: tpu7x:2x2x1
jax: 0.10.0
libtpu: 0.0.40
codegen_flags: <defaults>
</compile_context>

<pallas_src>
import functools
import math

import jax
import jax.numpy as jnp
from jax.experimental import pallas as pl
from jax.experimental.pallas import tpu as pltpu

# ----------------------------- model sizes (small, synthetic) ---------------
B = 2            # batch
S = 8            # args.max_seq == text sequence length
SP = 8           # phrase sequence length
H = 32           # bert hidden_size (scaled down from 768)
C = 128          # resnet feature channels (scaled down from 2048)
P = 49           # 7 x 7 spatial positions of resnet features
NAUX = 3         # number of visual objects per image (fixed in the module)
E = 64           # image2token_emb (scaled down from 1024)
COMB = 256       # combine_linear output dim (scaled down from 1000)
L = 9            # num_labels

R = 2 * P + 2 * NAUX     # 104 stacked query rows: [diff_fine | ori_fine | diff_obj | ori_obj]
SK = S + SP              # 16 stacked key rows:    [text | phrases]


# ----------------------------- Pallas kernels -------------------------------
def _fused_vision_kernel(pic_ref, kv_ref, selg_ref, qsel_ref, ksel_ref, bias_ref,
                         w_pic_ref, b_pic_ref, w_qkv_ref, b_qkv_ref,
                         w_ext_ref, b_ext_ref, ext_ref, *, scale):
    """One batch element: linear_pic + cross attention (shared K/V) + gating + extend.

    w_qkv_ref: (6, H, H) stacked [q_fine, q_coarse, k_fine, k_coarse, v_fine, v_coarse]
    b_qkv_ref: (6, 1, H) stacked biases (same order).
    """
    f32 = jnp.float32

    def mm(a, b):
        return jnp.dot(a, b, preferred_element_type=f32)

    pic = pic_ref[0]           # (R, C)   stacked image rows for the 4 variants
    kv = kv_ref[0]             # (SK, H)  [hidden_text | hidden_phrases]
    selg = selg_ref[0]         # (2, R)   gated per-row selector (ori / diff rows)
    qsel = qsel_ref[...]       # (R, 1)   1.0 for fine (image-token) query rows
    ksel = ksel_ref[...]       # (SK, 1)  1.0 for text key rows
    bias = bias_ref[...]       # (R, SK)  0 where query-group matches key-group, else -1e30

    # shared linear_pic projection for all four image variants (one matmul, M=104)
    proj = mm(pic, w_pic_ref[...]) + b_pic_ref[...]                            # (R, H)

    # q: fine rows use linear_q_fine, coarse rows use linear_q_coarse
    q = (qsel * (mm(proj, w_qkv_ref[0]) + b_qkv_ref[0])
         + (1.0 - qsel) * (mm(proj, w_qkv_ref[1]) + b_qkv_ref[1]))             # (R, H)
    # k / v: text keys use *_fine weights, phrase keys use *_coarse weights
    k = (ksel * (mm(kv, w_qkv_ref[2]) + b_qkv_ref[2])
         + (1.0 - ksel) * (mm(kv, w_qkv_ref[3]) + b_qkv_ref[3]))               # (SK, H)
    v = (ksel * (mm(kv, w_qkv_ref[4]) + b_qkv_ref[4])
         + (1.0 - ksel) * (mm(kv, w_qkv_ref[5]) + b_qkv_ref[5]))               # (SK, H)

    # joint masked softmax attention (fine rows <-> text keys, coarse rows <-> phrase keys)
    scores = jax.lax.dot_general(q, k, (((1,), (1,)), ((), ())),
                                 preferred_element_type=f32) * scale + bias    # (R, SK)
    scores = scores - jnp.max(scores, axis=-1, keepdims=True)
    pexp = jnp.exp(scores)
    att = pexp * pl.reciprocal(jnp.sum(pexp, axis=-1, keepdims=True), approx=True)
    ctx = jnp.tanh(mm(att, v))                                                 # (R, H)

    # finals[0] = w1*sum(ori_fine rows) + w0*sum(ori_obj rows)   (attention + raw projection)
    # finals[1] = w3*sum(diff_fine rows) + w2*sum(diff_obj rows)
    finals = mm(selg, ctx + proj)                                              # (2, H)

    # linear_extend_pic + tanh; lane-dense (2, S*E) output
    ext_ref[0] = jnp.tanh(mm(finals, w_ext_ref[...]) + b_ext_ref[...])         # (2, S*E)


def fused_vision(pic_in, kv_in, sel_gated, qsel, ksel, bias, p):
    Bn, Rn, Cin = pic_in.shape
    SKn = kv_in.shape[1]
    Hn = p["W_pic"].shape[1]
    SE = p["W_ext"].shape[1]

    # pack q/k/v fine+coarse projections into one weight / one bias tensor
    # (could be stored pre-stacked; the stack itself is a tiny one-off XLA copy)
    w_qkv = jnp.stack([p["Wq_f"], p["Wq_c"], p["Wk_f"], p["Wk_c"], p["Wv_f"], p["Wv_c"]])
    b_qkv = jnp.stack([p["bq_f"], p["bq_c"], p["bk_f"], p["bk_c"],
                       p["bv_f"], p["bv_c"]]).reshape(6, 1, Hn)

    kernel = functools.partial(_fused_vision_kernel, scale=1.0 / math.sqrt(Hn))

    def fixed(shape):
        return pl.BlockSpec(shape, lambda b: (0,) * len(shape))

    in_specs = [pl.BlockSpec((1, Rn, Cin), lambda b: (b, 0, 0)),     # pic_in
                pl.BlockSpec((1, SKn, Hn), lambda b: (b, 0, 0)),     # kv_in
                pl.BlockSpec((1, 2, Rn), lambda b: (b, 0, 0)),       # sel_gated
                fixed((Rn, 1)), fixed((SKn, 1)), fixed((Rn, SKn)),   # qsel, ksel, bias
                fixed((Cin, Hn)), fixed((1, Hn)),                    # linear_pic
                fixed((6, Hn, Hn)), fixed((6, 1, Hn)),               # stacked q/k/v fine+coarse
                fixed((Hn, SE)), fixed((1, SE))]                     # linear_extend_pic
    return pl.pallas_call(
        kernel,
        out_shape=jax.ShapeDtypeStruct((Bn, 2, SE), jnp.float32),
        grid=(Bn,),
        in_specs=in_specs,
        out_specs=pl.BlockSpec((1, 2, SE), lambda b: (b, 0, 0)),
        compiler_params=pltpu.CompilerParams(dimension_semantics=("parallel",)),
    )(pic_in, kv_in, sel_gated, qsel, ksel, bias,
      p["W_pic"], p["b_pic"].reshape(1, -1), w_qkv, b_qkv,
      p["W_ext"], p["b_ext"].reshape(1, -1))


def _emissions_kernel(ht_ref, oe_ref, de_ref, wc_ref, bc_ref, wfc_ref, bfc_ref,
                      out_ref, *, h, e):
    """fc(relu(combine_linear(cat[hidden_text, pic_ori, pic_diff])))

    The concat is folded into three matmuls against sublane-aligned row-slices
    of the single W_comb ref (offsets 0, h, h+e are all multiples of 8).
    """
    f32 = jnp.float32

    def mm(a, b):
        return jnp.dot(a, b, preferred_element_type=f32)

    hc = (mm(ht_ref[0], wc_ref[0:h, :])
          + mm(oe_ref[0], wc_ref[h:h + e, :])
          + mm(de_ref[0], wc_ref[h + e:h + 2 * e, :])
          + bc_ref[...])
    hc = jnp.maximum(hc, 0.0)
    out_ref[0] = mm(hc, wfc_ref[...]) + bfc_ref[...]


def emissions_head(hidden_text, ori_ext, diff_ext, w_comb, b_comb, w_fc, b_fc):
    Bn, Sn, Hn = hidden_text.shape
    En = ori_ext.shape[2]
    Fin, Cm = w_comb.shape
    Ln = w_fc.shape[1]
    kernel = functools.partial(_emissions_kernel, h=Hn, e=En)

    def fixed(shape):
        return pl.BlockSpec(shape, lambda b: (0,) * len(shape))

    return pl.pallas_call(
        kernel,
        out_shape=jax.ShapeDtypeStruct((Bn, Sn, Ln), jnp.float32),
        grid=(Bn,),
        in_specs=[pl.BlockSpec((1, Sn, Hn), lambda b: (b, 0, 0)),
                  pl.BlockSpec((1, Sn, En), lambda b: (b, 0, 0)),
                  pl.BlockSpec((1, Sn, En), lambda b: (b, 0, 0)),
                  fixed((Fin, Cm)), fixed((1, Cm)), fixed((Cm, Ln)), fixed((1, Ln))],
        out_specs=pl.BlockSpec((1, Sn, Ln), lambda b: (b, 0, 0)),
        compiler_params=pltpu.CompilerParams(dimension_semantics=("parallel",)),
    )(hidden_text, ori_ext, diff_ext, w_comb,
      b_comb.reshape(1, -1), w_fc, b_fc.reshape(1, -1))


# ----------------------------- CRF Viterbi decode (unrolled plain JAX) ------
def crf_decode(emissions, mask, start_trans, end_trans, trans):
    """torchcrf-style Viterbi decode, fully unrolled (S is static); returns (B, S) int tags.

    Masked steps use identity back-pointers and frozen scores, so for each
    sample the tags at valid positions match torchcrf; padded positions carry
    the tag of the last valid token (torchcrf returns variable-length lists).
    """
    em = jnp.transpose(emissions, (1, 0, 2))       # (S, B, L)
    m = jnp.transpose(mask, (1, 0)).astype(bool)   # (S, B)
    n_lab = em.shape[2]
    lab = jnp.arange(n_lab, dtype=jnp.int32)
    score = start_trans[None, :] + em[0]           # (B, L)
    history = []
    for t in range(1, em.shape[0]):
        next_score = score[:, :, None] + trans[None, :, :] + em[t][:, None, :]  # (B, Lp, Ln)
        best_prev = jnp.argmax(next_score, axis=1).astype(jnp.int32)             # (B, L)
        history.append(jnp.where(m[t][:, None], best_prev, lab[None, :]))
        score = jnp.where(m[t][:, None], jnp.max(next_score, axis=1), score)
    score = score + end_trans[None, :]
    tag = jnp.argmax(score, axis=-1).astype(jnp.int32)   # (B,)
    tags = [tag]
    for indices in reversed(history):
        tag = jnp.take_along_axis(indices, tag[:, None], axis=1)[:, 0]
        tags.append(tag)
    tags.reverse()
    return jnp.stack(tags, axis=1)                 # (B, S)


# ----------------------------- full forward ---------------------------------
def tmr_ner_forward(params, feat_ori_fine, feat_ori_coarse, feat_dif_fine,
                    feat_dif_coarse, hidden_text, hidden_phrases, weight,
                    attention_mask):
    p = params

    def to_tokens(f):   # (N, C, 7, 7) -> (N, 49, C), like torch reshape + transpose(1, 2)
        n = f.shape[0]
        return jnp.swapaxes(f.reshape(n, C, P), 1, 2)

    def to_objects(f):  # (B*NAUX, C, 7, 7) -> (B, NAUX, C), summed over the 49 positions
        return jnp.sum(to_tokens(f).reshape(B, NAUX, P, C), axis=2)

    # stack the four image variants into one row block per batch element
    pic_in = jnp.concatenate(
        [to_tokens(feat_dif_fine),      # rows [0, P)          fine diffusion
         to_tokens(feat_ori_fine),      # rows [P, 2P)         fine original
         to_objects(feat_dif_coarse),   # rows [2P, 2P+NAUX)   coarse diffusion objects
         to_objects(feat_ori_coarse)],  # rows [2P+NAUX, R)    coarse original objects
        axis=1)                                                        # (B, R, C)
    kv_in = jnp.concatenate([hidden_text, hidden_phrases], axis=1)     # (B, SK, H)

    # static row / key bookkeeping (constant-folded by XLA)
    row = jnp.arange(R)
    key_id = jnp.arange(SK)
    seg = jnp.stack([((row >= lo) & (row < hi)).astype(jnp.float32)
                     for lo, hi in ((0, P), (P, 2 * P),
                                    (2 * P, 2 * P + NAUX), (2 * P + NAUX, R))])  # (4, R)
    qsel = (row < 2 * P).astype(jnp.float32).reshape(R, 1)             # fine-query indicator
    ksel = (key_id < S).astype(jnp.float32).reshape(SK, 1)             # text-key indicator
    allowed = (row[:, None] < 2 * P) == (key_id[None, :] < S)          # fine<->text, coarse<->phrase
    bias = jnp.where(allowed, 0.0, -1e30).astype(jnp.float32)          # (R, SK)

    # fold the weight gating into the per-row selector:
    #   finals[0] (ori)  = w[:,1]*sum(ori_fine rows)  + w[:,0]*sum(ori_obj rows)
    #   finals[1] (diff) = w[:,3]*sum(diff_fine rows) + w[:,2]*sum(diff_obj rows)
    sel_ori = weight[:, 1:2] * seg[1][None, :] + weight[:, 0:1] * seg[3][None, :]
    sel_diff = weight[:, 3:4] * seg[0][None, :] + weight[:, 2:3] * seg[2][None, :]
    sel_gated = jnp.stack([sel_ori, sel_diff], axis=1)                 # (B, 2, R)

    ext = fused_vision(pic_in, kv_in, sel_gated, qsel, ksel, bias, p)  # (B, 2, S*E)
    ori_ext = ext[:, 0, :].reshape(B, S, E)                            # contiguous, no copy
    diff_ext = ext[:, 1, :].reshape(B, S, E)

    emissions = emissions_head(hidden_text, ori_ext, diff_ext,
                               p["W_comb"], p["b_comb"], p["W_fc"], p["b_fc"])
    logits = crf_decode(emissions, attention_mask,
                        p["crf_start"], p["crf_end"], p["crf_trans"])
    return emissions, logits


# ----------------------------- parameter construction -----------------------
def make_params(key):
    ks = jax.random.split(key, 32)
    i = iter(range(32))

    def dense(kw, kb, fin, fout):
        w = jax.random.normal(kw, (fin, fout), jnp.float32) * 0.02
        b = jax.random.normal(kb, (fout,), jnp.float32) * 0.02
        return w, b

    params = {}
    params["W_pic"], params["b_pic"] = dense(ks[next(i)], ks[next(i)], C, H)
    params["Wq_f"], params["bq_f"] = dense(ks[next(i)], ks[next(i)], H, H)
    params["Wk_f"], params["bk_f"] = dense(ks[next(i)], ks[next(i)], H, H)
    params["Wv_f"], params["bv_f"] = dense(ks[next(i)], ks[next(i)], H, H)
    params["Wq_c"], params["bq_c"] = dense(ks[next(i)], ks[next(i)], H, H)
    params["Wk_c"], params["bk_c"] = dense(ks[next(i)], ks[next(i)], H, H)
    params["Wv_c"], params["bv_c"] = dense(ks[next(i)], ks[next(i)], H, H)
    params["W_ext"], params["b_ext"] = dense(ks[next(i)], ks[next(i)], H, S * E)
    params["W_comb"], params["b_comb"] = dense(ks[next(i)], ks[next(i)], H + 2 * E, COMB)
    params["W_fc"], params["b_fc"] = dense(ks[next(i)], ks[next(i)], COMB, L)
    # CRF params (torchcrf initializes uniform(-0.1, 0.1))
    params["crf_start"] = jax.random.uniform(ks[next(i)], (L,), jnp.float32, -0.1, 0.1)
    params["crf_end"] = jax.random.uniform(ks[next(i)], (L,), jnp.float32, -0.1, 0.1)
    params["crf_trans"] = jax.random.uniform(ks[next(i)], (L, L), jnp.float32, -0.1, 0.1)
    return params


if __name__ == "__main__":
    key = jax.random.PRNGKey(0)
    kp, k1, k2, k3, k4, k5, k6, k7 = jax.random.split(key, 8)
    params = make_params(kp)

    # synthetic stand-ins for the frozen backbones' outputs
    feat_ori_fine = jax.random.normal(k1, (B, C, 7, 7), jnp.float32)           # resnet(images)
    feat_ori_coarse = jax.random.normal(k2, (B * NAUX, C, 7, 7), jnp.float32)  # resnet(aux_imgs)
    feat_dif_fine = jax.random.normal(k3, (B, C, 7, 7), jnp.float32)           # resnet(images_dif)
    feat_dif_coarse = jax.random.normal(k4, (B * NAUX, C, 7, 7), jnp.float32)  # resnet(aux_images_dif)
    hidden_text = jax.random.normal(k5, (B, S, H), jnp.float32)                # bert last_hidden_state
    hidden_phrases = jax.random.normal(k6, (B, SP, H), jnp.float32)            # bert(phrases) last_hidden_state
    weight = jax.random.uniform(k7, (B, 4), jnp.float32)
    attention_mask = jnp.ones((B, S), jnp.int32)

    fwd = jax.jit(tmr_ner_forward)
    emissions, logits = fwd(params, feat_ori_fine, feat_ori_coarse,
                            feat_dif_fine, feat_dif_coarse,
                            hidden_text, hidden_phrases, weight, attention_mask)
    jax.block_until_ready((emissions, logits))
    assert emissions.shape == (B, S, L)
    assert logits.shape == (B, S)
    assert bool(jnp.all(jnp.isfinite(emissions)))
    print("KERNEL_OK")
</pallas_src>

<mosaic_0001>
module attributes {stable_mosaic.version = 11 : i64} {
  func.func @_fused_vision_kernel(%arg0: i32, %arg1: memref<1x104x128xf32, #tpu.memory_space<vmem>>, %arg2: memref<1x16x32xf32, #tpu.memory_space<vmem>>, %arg3: memref<1x2x104xf32, #tpu.memory_space<vmem>>, %arg4: memref<104x1xf32, #tpu.memory_space<vmem>>, %arg5: memref<16x1xf32, #tpu.memory_space<vmem>>, %arg6: memref<104x16xf32, #tpu.memory_space<vmem>>, %arg7: memref<128x32xf32, #tpu.memory_space<vmem>>, %arg8: memref<1x32xf32, #tpu.memory_space<vmem>>, %arg9: memref<6x32x32xf32, #tpu.memory_space<vmem>>, %arg10: memref<6x1x32xf32, #tpu.memory_space<vmem>>, %arg11: memref<32x512xf32, #tpu.memory_space<vmem>>, %arg12: memref<1x512xf32, #tpu.memory_space<vmem>>, %arg13: memref<1x2x512xf32, #tpu.memory_space<vmem>>) attributes {dimension_semantics = [#tpu.dimension_semantics<parallel>], iteration_bounds = array<i64: 2>, scalar_prefetch = 0 : i64, scratch_operands = 0 : i64, tpu.core_type = #tpu.core_type<tc>, window_params = [{transform_indices = @transform_0, window_bounds = array<i64: 1, 104, 128>}, {transform_indices = @transform_1, window_bounds = array<i64: 1, 16, 32>}, {transform_indices = @transform_2, window_bounds = array<i64: 1, 2, 104>}, {pipeline_mode = #tpu.pipeline_mode<synchronous>, transform_indices = @transform_3, window_bounds = array<i64: 104, 1>}, {pipeline_mode = #tpu.pipeline_mode<synchronous>, transform_indices = @transform_4, window_bounds = array<i64: 16, 1>}, {pipeline_mode = #tpu.pipeline_mode<synchronous>, transform_indices = @transform_5, window_bounds = array<i64: 104, 16>}, {pipeline_mode = #tpu.pipeline_mode<synchronous>, transform_indices = @transform_6, window_bounds = array<i64: 128, 32>}, {pipeline_mode = #tpu.pipeline_mode<synchronous>, transform_indices = @transform_7, window_bounds = array<i64: 1, 32>}, {pipeline_mode = #tpu.pipeline_mode<synchronous>, transform_indices = @transform_8, window_bounds = array<i64: 6, 32, 32>}, {pipeline_mode = #tpu.pipeline_mode<synchronous>, transform_indices = @transform_9, window_bounds = array<i64: 6, 1, 32>}, {pipeline_mode = #tpu.pipeline_mode<synchronous>, transform_indices = @transform_10, window_bounds = array<i64: 32, 512>}, {pipeline_mode = #tpu.pipeline_mode<synchronous>, transform_indices = @transform_11, window_bounds = array<i64: 1, 512>}, {transform_indices = @transform_12, window_bounds = array<i64: 1, 2, 512>}]} {
    %c0 = arith.constant 0 : index
    %c0_0 = arith.constant 0 : index
    %c0_1 = arith.constant 0 : index
    %0 = vector.load %arg1[%c0, %c0_0, %c0_1] : memref<1x104x128xf32, #tpu.memory_space<vmem>>, vector<1x104x128xf32>
    %1 = vector.shape_cast %0 : vector<1x104x128xf32> to vector<104x128xf32>
    %c0_2 = arith.constant 0 : index
    %c0_3 = arith.constant 0 : index
    %c0_4 = arith.constant 0 : index
    %2 = vector.load %arg2[%c0_2, %c0_3, %c0_4] : memref<1x16x32xf32, #tpu.memory_space<vmem>>, vector<1x16x32xf32>
    %3 = vector.shape_cast %2 : vector<1x16x32xf32> to vector<16x32xf32>
    %c0_5 = arith.constant 0 : index
    %c0_6 = arith.constant 0 : index
    %c0_7 = arith.constant 0 : index
    %4 = vector.load %arg3[%c0_5, %c0_6, %c0_7] : memref<1x2x104xf32, #tpu.memory_space<vmem>>, vector<1x2x104xf32>
    %5 = vector.shape_cast %4 : vector<1x2x104xf32> to vector<2x104xf32>
    %c0_8 = arith.constant 0 : index
    %c0_9 = arith.constant 0 : index
    %6 = vector.load %arg4[%c0_8, %c0_9] : memref<104x1xf32, #tpu.memory_space<vmem>>, vector<104x1xf32>
    %c0_10 = arith.constant 0 : index
    %c0_11 = arith.constant 0 : index
    %7 = vector.load %arg5[%c0_10, %c0_11] : memref<16x1xf32, #tpu.memory_space<vmem>>, vector<16x1xf32>
    %c0_12 = arith.constant 0 : index
    %c0_13 = arith.constant 0 : index
    %8 = vector.load %arg6[%c0_12, %c0_13] : memref<104x16xf32, #tpu.memory_space<vmem>>, vector<104x16xf32>
    %c0_14 = arith.constant 0 : index
    %c0_15 = arith.constant 0 : index
    %9 = vector.load %arg7[%c0_14, %c0_15] : memref<128x32xf32, #tpu.memory_space<vmem>>, vector<128x32xf32>
    %cst = arith.constant dense<0.000000e+00> : vector<104x32xf32>
    %10 = tpu.matmul %1, %9, %cst {dimension_numbers = #tpu.dot_dimension_numbers<[1], [0], [0], [1], [0, 0, 1, 1], [], []>} : vector<104x128xf32>, vector<128x32xf32>, vector<104x32xf32> -> vector<104x32xf32>
    %c0_16 = arith.constant 0 : index
    %c0_17 = arith.constant 0 : index
    %11 = vector.load %arg8[%c0_16, %c0_17] : memref<1x32xf32, #tpu.memory_space<vmem>>, vector<1x32xf32>
    %12 = vector.broadcast %11 : vector<1x32xf32> to vector<104x32xf32>
    %13 = arith.addf %10, %12 : vector<104x32xf32>
    %c0_18 = arith.constant 0 : index
    %c0_19 = arith.constant 0 : index
    %c0_20 = arith.constant 0 : index
    %14 = vector.load %arg9[%c0_18, %c0_19, %c0_20] : memref<6x32x32xf32, #tpu.memory_space<vmem>>, vector<1x32x32xf32>
    %15 = vector.shape_cast %14 : vector<1x32x32xf32> to vector<32x32xf32>
    %cst_21 = arith.constant dense<0.000000e+00> : vector<104x32xf32>
    %16 = tpu.matmul %13, %15, %cst_21 {dimension_numbers = #tpu.dot_dimension_numbers<[1], [0], [0], [1], [0, 0, 1, 1], [], []>} : vector<104x32xf32>, vector<32x32xf32>, vector<104x32xf32> -> vector<104x32xf32>
    %c0_22 = arith.constant 0 : index
    %c0_23 = arith.constant 0 : index
    %c0_24 = arith.constant 0 : index
    %17 = vector.load %arg10[%c0_22, %c0_23, %c0_24] : memref<6x1x32xf32, #tpu.memory_space<vmem>>, vector<1x1x32xf32>
    %18 = vector.shape_cast %17 : vector<1x1x32xf32> to vector<1x32xf32>
    %19 = vector.broadcast %18 : vector<1x32xf32> to vector<104x32xf32>
    %20 = arith.addf %16, %19 : vector<104x32xf32>
    %21 = vector.broadcast %6 : vector<104x1xf32> to vector<104x32xf32>
    %22 = arith.mulf %21, %20 : vector<104x32xf32>
    %cst_25 = arith.constant 1.000000e+00 : f32
    %23 = vector.broadcast %cst_25 : f32 to vector<104x1xf32>
    %24 = arith.subf %23, %6 : vector<104x1xf32>
    %c1 = arith.constant 1 : index
    %c0_26 = arith.constant 0 : index
    %c0_27 = arith.constant 0 : index
    %25 = vector.load %arg9[%c1, %c0_26, %c0_27] : memref<6x32x32xf32, #tpu.memory_space<vmem>>, vector<1x32x32xf32>
    %26 = vector.shape_cast %25 : vector<1x32x32xf32> to vector<32x32xf32>
    %cst_28 = arith.constant dense<0.000000e+00> : vector<104x32xf32>
    %27 = tpu.matmul %13, %26, %cst_28 {dimension_numbers = #tpu.dot_dimension_numbers<[1], [0], [0], [1], [0, 0, 1, 1], [], []>} : vector<104x32xf32>, vector<32x32xf32>, vector<104x32xf32> -> vector<104x32xf32>
    %c1_29 = arith.constant 1 : index
    %c0_30 = arith.constant 0 : index
    %c0_31 = arith.constant 0 : index
    %28 = vector.load %arg10[%c1_29, %c0_30, %c0_31] : memref<6x1x32xf32, #tpu.memory_space<vmem>>, vector<1x1x32xf32>
    %29 = vector.shape_cast %28 : vector<1x1x32xf32> to vector<1x32xf32>
    %30 = vector.broadcast %29 : vector<1x32xf32> to vector<104x32xf32>
    %31 = arith.addf %27, %30 : vector<104x32xf32>
    %32 = vector.broadcast %24 : vector<104x1xf32> to vector<104x32xf32>
    %33 = arith.mulf %32, %31 : vector<104x32xf32>
    %34 = arith.addf %22, %33 : vector<104x32xf32>
    %c2 = arith.constant 2 : index
    %c0_32 = arith.constant 0 : index
    %c0_33 = arith.constant 0 : index
    %35 = vector.load %arg9[%c2, %c0_32, %c0_33] : memref<6x32x32xf32, #tpu.memory_space<vmem>>, vector<1x32x32xf32>
    %36 = vector.shape_cast %35 : vector<1x32x32xf32> to vector<32x32xf32>
    %cst_34 = arith.constant dense<0.000000e+00> : vector<16x32xf32>
    %37 = tpu.matmul %3, %36, %cst_34 {dimension_numbers = #tpu.dot_dimension_numbers<[1], [0], [0], [1], [0, 0, 1, 1], [], []>} : vector<16x32xf32>, vector<32x32xf32>, vector<16x32xf32> -> vector<16x32xf32>
    %c2_35 = arith.constant 2 : index
    %c0_36 = arith.constant 0 : index
    %c0_37 = arith.constant 0 : index
    %38 = vector.load %arg10[%c2_35, %c0_36, %c0_37] : memref<6x1x32xf32, #tpu.memory_space<vmem>>, vector<1x1x32xf32>
    %39 = vector.shape_cast %38 : vector<1x1x32xf32> to vector<1x32xf32>
    %40 = vector.broadcast %39 : vector<1x32xf32> to vector<16x32xf32>
    %41 = arith.addf %37, %40 : vector<16x32xf32>
    %42 = vector.broadcast %7 : vector<16x1xf32> to vector<16x32xf32>
    %43 = arith.mulf %42, %41 : vector<16x32xf32>
    %cst_38 = arith.constant 1.000000e+00 : f32
    %44 = vector.broadcast %cst_38 : f32 to vector<16x1xf32>
    %45 = arith.subf %44, %7 : vector<16x1xf32>
    %c3 = arith.constant 3 : index
    %c0_39 = arith.constant 0 : index
    %c0_40 = arith.constant 0 : index
    %46 = vector.load %arg9[%c3, %c0_39, %c0_40] : memref<6x32x32xf32, #tpu.memory_space<vmem>>, vector<1x32x32xf32>
    %47 = vector.shape_cast %46 : vector<1x32x32xf32> to vector<32x32xf32>
    %cst_41 = arith.constant dense<0.000000e+00> : vector<16x32xf32>
    %48 = tpu.matmul %3, %47, %cst_41 {dimension_numbers = #tpu.dot_dimension_numbers<[1], [0], [0], [1], [0, 0, 1, 1], [], []>} : vector<16x32xf32>, vector<32x32xf32>, vector<16x32xf32> -> vector<16x32xf32>
    %c3_42 = arith.constant 3 : index
    %c0_43 = arith.constant 0 : index
    %c0_44 = arith.constant 0 : index
    %49 = vector.load %arg10[%c3_42, %c0_43, %c0_44] : memref<6x1x32xf32, #tpu.memory_space<vmem>>, vector<1x1x32xf32>
    %50 = vector.shape_cast %49 : vector<1x1x32xf32> to vector<1x32xf32>
    %51 = vector.broadcast %50 : vector<1x32xf32> to vector<16x32xf32>
    %52 = arith.addf %48, %51 : vector<16x32xf32>
    %53 = vector.broadcast %45 : vector<16x1xf32> to vector<16x32xf32>
    %54 = arith.mulf %53, %52 : vector<16x32xf32>
    %55 = arith.addf %43, %54 : vector<16x32xf32>
    %c4 = arith.constant 4 : index
    %c0_45 = arith.constant 0 : index
    %c0_46 = arith.constant 0 : index
    %56 = vector.load %arg9[%c4, %c0_45, %c0_46] : memref<6x32x32xf32, #tpu.memory_space<vmem>>, vector<1x32x32xf32>
    %57 = vector.shape_cast %56 : vector<1x32x32xf32> to vector<32x32xf32>
    %cst_47 = arith.constant dense<0.000000e+00> : vector<16x32xf32>
    %58 = tpu.matmul %3, %57, %cst_47 {dimension_numbers = #tpu.dot_dimension_numbers<[1], [0], [0], [1], [0, 0, 1, 1], [], []>} : vector<16x32xf32>, vector<32x32xf32>, vector<16x32xf32> -> vector<16x32xf32>
    %c4_48 = arith.constant 4 : index
    %c0_49 = arith.constant 0 : index
    %c0_50 = arith.constant 0 : index
    %59 = vector.load %arg10[%c4_48, %c0_49, %c0_50] : memref<6x1x32xf32, #tpu.memory_space<vmem>>, vector<1x1x32xf32>
    %60 = vector.shape_cast %59 : vector<1x1x32xf32> to vector<1x32xf32>
    %61 = vector.broadcast %60 : vector<1x32xf32> to vector<16x32xf32>
    %62 = arith.addf %58, %61 : vector<16x32xf32>
    %63 = vector.broadcast %7 : vector<16x1xf32> to vector<16x32xf32>
    %64 = arith.mulf %63, %62 : vector<16x32xf32>
    %cst_51 = arith.constant 1.000000e+00 : f32
    %65 = vector.broadcast %cst_51 : f32 to vector<16x1xf32>
    %66 = arith.subf %65, %7 : vector<16x1xf32>
    %c5 = arith.constant 5 : index
    %c0_52 = arith.constant 0 : index
    %c0_53 = arith.constant 0 : index
    %67 = vector.load %arg9[%c5, %c0_52, %c0_53] : memref<6x32x32xf32, #tpu.memory_space<vmem>>, vector<1x32x32xf32>
    %68 = vector.shape_cast %67 : vector<1x32x32xf32> to vector<32x32xf32>
    %cst_54 = arith.constant dense<0.000000e+00> : vector<16x32xf32>
    %69 = tpu.matmul %3, %68, %cst_54 {dimension_numbers = #tpu.dot_dimension_numbers<[1], [0], [0], [1], [0, 0, 1, 1], [], []>} : vector<16x32xf32>, vector<32x32xf32>, vector<16x32xf32> -> vector<16x32xf32>
    %c5_55 = arith.constant 5 : index
    %c0_56 = arith.constant 0 : index
    %c0_57 = arith.constant 0 : index
    %70 = vector.load %arg10[%c5_55, %c0_56, %c0_57] : memref<6x1x32xf32, #tpu.memory_space<vmem>>, vector<1x1x32xf32>
    %71 = vector.shape_cast %70 : vector<1x1x32xf32> to vector<1x32xf32>
    %72 = vector.broadcast %71 : vector<1x32xf32> to vector<16x32xf32>
    %73 = arith.addf %69, %72 : vector<16x32xf32>
    %74 = vector.broadcast %66 : vector<16x1xf32> to vector<16x32xf32>
    %75 = arith.mulf %74, %73 : vector<16x32xf32>
    %76 = arith.addf %64, %75 : vector<16x32xf32>
    %cst_58 = arith.constant dense<0.000000e+00> : vector<104x16xf32>
    %77 = tpu.matmul %34, %55, %cst_58 {dimension_numbers = #tpu.dot_dimension_numbers<[1], [1], [0], [0], [0, 0, 1, 0], [], []>} : vector<104x32xf32>, vector<16x32xf32>, vector<104x16xf32> -> vector<104x16xf32>
    %cst_59 = arith.constant 0.176776692 : f32
    %78 = vector.broadcast %cst_59 : f32 to vector<104x16xf32>
    %79 = arith.mulf %77, %78 : vector<104x16xf32>
    %80 = arith.addf %79, %8 : vector<104x16xf32>
    %cst_60 = arith.constant dense<0xFF800000> : vector<104xf32>
    %81 = vector.multi_reduction <maximumf>, %80, %cst_60 [1] : vector<104x16xf32> to vector<104xf32>
    %82 = vector.shape_cast %81 : vector<104xf32> to vector<104x1xf32>
    %83 = vector.broadcast %82 : vector<104x1xf32> to vector<104x16xf32>
    %84 = arith.subf %80, %83 : vector<104x16xf32>
    %85 = math.exp %84 : vector<104x16xf32>
    %cst_61 = arith.constant dense<0.000000e+00> : vector<104xf32>
    %86 = vector.multi_reduction <add>, %85, %cst_61 [1] : vector<104x16xf32> to vector<104xf32>
    %87 = vector.shape_cast %86 : vector<104xf32> to vector<104x1xf32>
    %88 = tpu.reciprocal %87 {approx = true} : vector<104x1xf32> -> vector<104x1xf32>
    %89 = vector.broadcast %88 : vector<104x1xf32> to vector<104x16xf32>
    %90 = arith.mulf %85, %89 : vector<104x16xf32>
    %cst_62 = arith.constant dense<0.000000e+00> : vector<104x32xf32>
    %91 = tpu.matmul %90, %76, %cst_62 {dimension_numbers = #tpu.dot_dimension_numbers<[1], [0], [0], [1], [0, 0, 1, 1], [], []>} : vector<104x16xf32>, vector<16x32xf32>, vector<104x32xf32> -> vector<104x32xf32>
    %92 = math.tanh %91 : vector<104x32xf32>
    %93 = arith.addf %92, %13 : vector<104x32xf32>
    %cst_63 = arith.constant dense<0.000000e+00> : vector<2x32xf32>
    %94 = tpu.matmul %5, %93, %cst_63 {dimension_numbers = #tpu.dot_dimension_numbers<[1], [0], [0], [1], [0, 0, 1, 1], [], []>} : vector<2x104xf32>, vector<104x32xf32>, vector<2x32xf32> -> vector<2x32xf32>
    %c0_64 = arith.constant 0 : index
    %c0_65 = arith.constant 0 : index
    %95 = vector.load %arg11[%c0_64, %c0_65] : memref<32x512xf32, #tpu.memory_space<vmem>>, vector<32x512xf32>
    %cst_66 = arith.constant dense<0.000000e+00> : vector<2x512xf32>
    %96 = tpu.matmul %94, %95, %cst_66 {dimension_numbers = #tpu.dot_dimension_numbers<[1], [0], [0], [1], [0, 0, 1, 1], [], []>} : vector<2x32xf32>, vector<32x512xf32>, vector<2x512xf32> -> vector<2x512xf32>
    %c0_67 = arith.constant 0 : index
    %c0_68 = arith.constant 0 : index
    %97 = vector.load %arg12[%c0_67, %c0_68] : memref<1x512xf32, #tpu.memory_space<vmem>>, vector<1x512xf32>
    %98 = vector.broadcast %97 : vector<1x512xf32> to vector<2x512xf32>
    %99 = arith.addf %96, %98 : vector<2x512xf32>
    %100 = math.tanh %99 : vector<2x512xf32>
    %c0_69 = arith.constant 0 : index
    %c0_70 = arith.constant 0 : index
    %c0_71 = arith.constant 0 : index
    %101 = vector.load %arg13[%c0_69, %c0_70, %c0_71] : memref<1x2x512xf32, #tpu.memory_space<vmem>>, vector<1x2x512xf32>
    %102 = vector.shape_cast %101 : vector<1x2x512xf32> to vector<2x512xf32>
    %103 = vector.shape_cast %100 : vector<2x512xf32> to vector<1x2x512xf32>
    tpu.vector_store %arg13[%c0_69, %c0_70, %c0_71], %103 {strides = array<i32>} : memref<1x2x512xf32, #tpu.memory_space<vmem>>, vector<1x2x512xf32>,
    return
  }
  func.func @transform_0(%arg0: i32) -> (i32, i32, i32) {
    %c0_i32 = arith.constant 0 : i32
    %c0_i32_0 = arith.constant 0 : i32
    %c0_i32_1 = arith.constant 0 : i32
    return %arg0, %c0_i32, %c0_i32_0 : i32, i32, i32
  }
  func.func @transform_1(%arg0: i32) -> (i32, i32, i32) {
    %c0_i32 = arith.constant 0 : i32
    %c0_i32_0 = arith.constant 0 : i32
    %c0_i32_1 = arith.constant 0 : i32
    return %arg0, %c0_i32, %c0_i32_0 : i32, i32, i32
  }
  func.func @transform_2(%arg0: i32) -> (i32, i32, i32) {
    %c0_i32 = arith.constant 0 : i32
    %c0_i32_0 = arith.constant 0 : i32
    %c0_i32_1 = arith.constant 0 : i32
    return %arg0, %c0_i32, %c0_i32_0 : i32, i32, i32
  }
  func.func @transform_3(%arg0: i32) -> (i32, i32) {
    %c0_i32 = arith.constant 0 : i32
    %c0_i32_0 = arith.constant 0 : i32
    %c0_i32_1 = arith.constant 0 : i32
    return %c0_i32, %c0_i32_0 : i32, i32
  }
  func.func @transform_4(%arg0: i32) -> (i32, i32) {
    %c0_i32 = arith.constant 0 : i32
    %c0_i32_0 = arith.constant 0 : i32
    %c0_i32_1 = arith.constant 0 : i32
    return %c0_i32, %c0_i32_0 : i32, i32
  }
  func.func @transform_5(%arg0: i32) -> (i32, i32) {
    %c0_i32 = arith.constant 0 : i32
    %c0_i32_0 = arith.constant 0 : i32
    %c0_i32_1 = arith.constant 0 : i32
    return %c0_i32, %c0_i32_0 : i32, i32
  }
  func.func @transform_6(%arg0: i32) -> (i32, i32) {
    %c0_i32 = arith.constant 0 : i32
    %c0_i32_0 = arith.constant 0 : i32
    %c0_i32_1 = arith.constant 0 : i32
    return %c0_i32, %c0_i32_0 : i32, i32
  }
  func.func @transform_7(%arg0: i32) -> (i32, i32) {
    %c0_i32 = arith.constant 0 : i32
    %c0_i32_0 = arith.constant 0 : i32
    %c0_i32_1 = arith.constant 0 : i32
    return %c0_i32, %c0_i32_0 : i32, i32
  }
  func.func @transform_8(%arg0: i32) -> (i32, i32, i32) {
    %c0_i32 = arith.constant 0 : i32
    %c0_i32_0 = arith.constant 0 : i32
    %c0_i32_1 = arith.constant 0 : i32
    %c0_i32_2 = arith.constant 0 : i32
    return %c0_i32, %c0_i32_0, %c0_i32_1 : i32, i32, i32
  }
  func.func @transform_9(%arg0: i32) -> (i32, i32, i32) {
    %c0_i32 = arith.constant 0 : i32
    %c0_i32_0 = arith.constant 0 : i32
    %c0_i32_1 = arith.constant 0 : i32
    %c0_i32_2 = arith.constant 0 : i32
    return %c0_i32, %c0_i32_0, %c0_i32_1 : i32, i32, i32
  }
  func.func @transform_10(%arg0: i32) -> (i32, i32) {
    %c0_i32 = arith.constant 0 : i32
    %c0_i32_0 = arith.constant 0 : i32
    %c0_i32_1 = arith.constant 0 : i32
    return %c0_i32, %c0_i32_0 : i32, i32
  }
  func.func @transform_11(%arg0: i32) -> (i32, i32) {
    %c0_i32 = arith.constant 0 : i32
    %c0_i32_0 = arith.constant 0 : i32
    %c0_i32_1 = arith.constant 0 : i32
    return %c0_i32, %c0_i32_0 : i32, i32
  }
  func.func @transform_12(%arg0: i32) -> (i32, i32, i32) {
    %c0_i32 = arith.constant 0 : i32
    %c0_i32_0 = arith.constant 0 : i32
    %c0_i32_1 = arith.constant 0 : i32
    return %arg0, %c0_i32, %c0_i32_0 : i32, i32, i32
  }
}

module attributes {stable_mosaic.version = 11 : i64} {
  func.func @_emissions_kernel(%arg0: i32, %arg1: memref<1x8x32xf32, #tpu.memory_space<vmem>>, %arg2: memref<1x8x64xf32, #tpu.memory_space<vmem>>, %arg3: memref<1x8x64xf32, #tpu.memory_space<vmem>>, %arg4: memref<160x256xf32, #tpu.memory_space<vmem>>, %arg5: memref<1x256xf32, #tpu.memory_space<vmem>>, %arg6: memref<256x9xf32, #tpu.memory_space<vmem>>, %arg7: memref<1x9xf32, #tpu.memory_space<vmem>>, %arg8: memref<1x8x9xf32, #tpu.memory_space<vmem>>) attributes {dimension_semantics = [#tpu.dimension_semantics<parallel>], iteration_bounds = array<i64: 2>, scalar_prefetch = 0 : i64, scratch_operands = 0 : i64, tpu.core_type = #tpu.core_type<tc>, window_params = [{transform_indices = @transform_0, window_bounds = array<i64: 1, 8, 32>}, {transform_indices = @transform_1, window_bounds = array<i64: 1, 8, 64>}, {transform_indices = @transform_2, window_bounds = array<i64: 1, 8, 64>}, {pipeline_mode = #tpu.pipeline_mode<synchronous>, transform_indices = @transform_3, window_bounds = array<i64: 160, 256>}, {pipeline_mode = #tpu.pipeline_mode<synchronous>, transform_indices = @transform_4, window_bounds = array<i64: 1, 256>}, {pipeline_mode = #tpu.pipeline_mode<synchronous>, transform_indices = @transform_5, window_bounds = array<i64: 256, 9>}, {pipeline_mode = #tpu.pipeline_mode<synchronous>, transform_indices = @transform_6, window_bounds = array<i64: 1, 9>}, {transform_indices = @transform_7, window_bounds = array<i64: 1, 8, 9>}]} {
    %c0 = arith.constant 0 : index
    %c0_0 = arith.constant 0 : index
    %c0_1 = arith.constant 0 : index
    %0 = vector.load %arg1[%c0, %c0_0, %c0_1] : memref<1x8x32xf32, #tpu.memory_space<vmem>>, vector<1x8x32xf32>
    %1 = vector.shape_cast %0 : vector<1x8x32xf32> to vector<8x32xf32>
    %c0_2 = arith.constant 0 : index
    %c0_3 = arith.constant 0 : index
    %2 = vector.load %arg4[%c0_2, %c0_3] : memref<160x256xf32, #tpu.memory_space<vmem>>, vector<32x256xf32>
    %cst = arith.constant dense<0.000000e+00> : vector<8x256xf32>
    %3 = tpu.matmul %1, %2, %cst {dimension_numbers = #tpu.dot_dimension_numbers<[1], [0], [0], [1], [0, 0, 1, 1], [], []>} : vector<8x32xf32>, vector<32x256xf32>, vector<8x256xf32> -> vector<8x256xf32>
    %c0_4 = arith.constant 0 : index
    %c0_5 = arith.constant 0 : index
    %c0_6 = arith.constant 0 : index
    %4 = vector.load %arg2[%c0_4, %c0_5, %c0_6] : memref<1x8x64xf32, #tpu.memory_space<vmem>>, vector<1x8x64xf32>
    %5 = vector.shape_cast %4 : vector<1x8x64xf32> to vector<8x64xf32>
    %c32 = arith.constant 32 : index
    %c0_7 = arith.constant 0 : index
    %6 = vector.load %arg4[%c32, %c0_7] : memref<160x256xf32, #tpu.memory_space<vmem>>, vector<64x256xf32>
    %cst_8 = arith.constant dense<0.000000e+00> : vector<8x256xf32>
    %7 = tpu.matmul %5, %6, %cst_8 {dimension_numbers = #tpu.dot_dimension_numbers<[1], [0], [0], [1], [0, 0, 1, 1], [], []>} : vector<8x64xf32>, vector<64x256xf32>, vector<8x256xf32> -> vector<8x256xf32>
    %8 = arith.addf %3, %7 : vector<8x256xf32>
    %c0_9 = arith.constant 0 : index
    %c0_10 = arith.constant 0 : index
    %c0_11 = arith.constant 0 : index
    %9 = vector.load %arg3[%c0_9, %c0_10, %c0_11] : memref<1x8x64xf32, #tpu.memory_space<vmem>>, vector<1x8x64xf32>
    %10 = vector.shape_cast %9 : vector<1x8x64xf32> to vector<8x64xf32>
    %c96 = arith.constant 96 : index
    %c0_12 = arith.constant 0 : index
    %11 = vector.load %arg4[%c96, %c0_12] : memref<160x256xf32, #tpu.memory_space<vmem>>, vector<64x256xf32>
    %cst_13 = arith.constant dense<0.000000e+00> : vector<8x256xf32>
    %12 = tpu.matmul %10, %11, %cst_13 {dimension_numbers = #tpu.dot_dimension_numbers<[1], [0], [0], [1], [0, 0, 1, 1], [], []>} : vector<8x64xf32>, vector<64x256xf32>, vector<8x256xf32> -> vector<8x256xf32>
    %13 = arith.addf %8, %12 : vector<8x256xf32>
    %c0_14 = arith.constant 0 : index
    %c0_15 = arith.constant 0 : index
    %14 = vector.load %arg5[%c0_14, %c0_15] : memref<1x256xf32, #tpu.memory_space<vmem>>, vector<1x256xf32>
    %15 = vector.broadcast %14 : vector<1x256xf32> to vector<8x256xf32>
    %16 = arith.addf %13, %15 : vector<8x256xf32>
    %cst_16 = arith.constant 0.000000e+00 : f32
    %17 = vector.broadcast %cst_16 : f32 to vector<8x256xf32>
    %18 = arith.maximumf %16, %17 : vector<8x256xf32>
    %c0_17 = arith.constant 0 : index
    %c0_18 = arith.constant 0 : index
    %19 = vector.load %arg6[%c0_17, %c0_18] : memref<256x9xf32, #tpu.memory_space<vmem>>, vector<256x9xf32>
    %cst_19 = arith.constant dense<0.000000e+00> : vector<8x9xf32>
    %20 = tpu.matmul %18, %19, %cst_19 {dimension_numbers = #tpu.dot_dimension_numbers<[1], [0], [0], [1], [0, 0, 1, 1], [], []>} : vector<8x256xf32>, vector<256x9xf32>, vector<8x9xf32> -> vector<8x9xf32>
    %c0_20 = arith.constant 0 : index
    %c0_21 = arith.constant 0 : index
    %21 = vector.load %arg7[%c0_20, %c0_21] : memref<1x9xf32, #tpu.memory_space<vmem>>, vector<1x9xf32>
    %22 = vector.broadcast %21 : vector<1x9xf32> to vector<8x9xf32>
    %23 = arith.addf %20, %22 : vector<8x9xf32>
    %c0_22 = arith.constant 0 : index
    %c0_23 = arith.constant 0 : index
    %c0_24 = arith.constant 0 : index
    %24 = vector.load %arg8[%c0_22, %c0_23, %c0_24] : memref<1x8x9xf32, #tpu.memory_space<vmem>>, vector<1x8x9xf32>
    %25 = vector.shape_cast %24 : vector<1x8x9xf32> to vector<8x9xf32>
    %26 = vector.shape_cast %23 : vector<8x9xf32> to vector<1x8x9xf32>
    tpu.vector_store %arg8[%c0_22, %c0_23, %c0_24], %26 {strides = array<i32>} : memref<1x8x9xf32, #tpu.memory_space<vmem>>, vector<1x8x9xf32>,
    return
  }
  func.func @transform_0(%arg0: i32) -> (i32, i32, i32) {
    %c0_i32 = arith.constant 0 : i32
    %c0_i32_0 = arith.constant 0 : i32
    %c0_i32_1 = arith.constant 0 : i32
    return %arg0, %c0_i32, %c0_i32_0 : i32, i32, i32
  }
  func.func @transform_1(%arg0: i32) -> (i32, i32, i32) {
    %c0_i32 = arith.constant 0 : i32
    %c0_i32_0 = arith.constant 0 : i32
    %c0_i32_1 = arith.constant 0 : i32
    return %arg0, %c0_i32, %c0_i32_0 : i32, i32, i32
  }
  func.func @transform_2(%arg0: i32) -> (i32, i32, i32) {
    %c0_i32 = arith.constant 0 : i32
    %c0_i32_0 = arith.constant 0 : i32
    %c0_i32_1 = arith.constant 0 : i32
    return %arg0, %c0_i32, %c0_i32_0 : i32, i32, i32
  }
  func.func @transform_3(%arg0: i32) -> (i32, i32) {
    %c0_i32 = arith.constant 0 : i32
    %c0_i32_0 = arith.constant 0 : i32
    %c0_i32_1 = arith.constant 0 : i32
    return %c0_i32, %c0_i32_0 : i32, i32
  }
  func.func @transform_4(%arg0: i32) -> (i32, i32) {
    %c0_i32 = arith.constant 0 : i32
    %c0_i32_0 = arith.constant 0 : i32
    %c0_i32_1 = arith.constant 0 : i32
    return %c0_i32, %c0_i32_0 : i32, i32
  }
  func.func @transform_5(%arg0: i32) -> (i32, i32) {
    %c0_i32 = arith.constant 0 : i32
    %c0_i32_0 = arith.constant 0 : i32
    %c0_i32_1 = arith.constant 0 : i32
    return %c0_i32, %c0_i32_0 : i32, i32
  }
  func.func @transform_6(%arg0: i32) -> (i32, i32) {
    %c0_i32 = arith.constant 0 : i32
    %c0_i32_0 = arith.constant 0 : i32
    %c0_i32_1 = arith.constant 0 : i32
    return %c0_i32, %c0_i32_0 : i32, i32
  }
  func.func @transform_7(%arg0: i32) -> (i32, i32, i32) {
    %c0_i32 = arith.constant 0 : i32
    %c0_i32_0 = arith.constant 0 : i32
    %c0_i32_1 = arith.constant 0 : i32
    return %arg0, %c0_i32, %c0_i32_0 : i32, i32, i32
  }
}

</mosaic_0001>

<llo_original>
// kernel: squeeze.24
$region0: #{squeeze.24}
  %s0 = inlined_call_operand.vmem [shape: f32[2,512], index: 0, kind: input, shape index: {}]
  %s1 = inlined_call_operand.vmem [shape: f32[2,8,64], index: 1, kind: output, shape index: {}]
  $region1: #{squeeze.24} parent=0
    #allocation0 [shape = 'u8[16384]{0}', space=vmem, size = 0x4000, scoped, tag = 'scoped mem for input reshape']
    %s3 = sshllo.u32 0, 2
    %s4 = smul.addr 2, 3
    %s5 = scalar_lea.vmem %s0, %s4
    %v6 = vld [vmem:[%s5] sm:%s3]
    %s7 = scalar_lea.vmem [#allocation0], 24
    %8 = vst [vmem:[%s7] sm:%s3] %v6
    %s9 = smul.addr 2, 2
    %s10 = scalar_lea.vmem %s0, %s9
    %v11 = vld [vmem:[%s10] sm:%s3]
    %s12 = scalar_lea.vmem [#allocation0], 16
    %13 = vst [vmem:[%s12] sm:%s3] %v11
    %s14 = scalar_lea.vmem %s0, 2
    %v15 = vld [vmem:[%s14] sm:%s3]
    %s16 = scalar_lea.vmem [#allocation0], 8
    %17 = vst [vmem:[%s16] sm:%s3] %v15
    %v18 = vld [vmem:[%s0] sm:%s3]
    %19 = vst [vmem:[#allocation0] sm:%s3] %v18
    %v20 = vld [vmem:[#allocation0] sm:$0x3]
    %vm21 = vcmask 523264
    %22 = vst.msk [vmem:[%s1] ss:$8 sm:$0x3] %vm21, %v20
    %s23 = scalar_lea.vmem [#allocation0], 8
    %v24 = vld [vmem:[%s23] sm:$0x3]
    %vm25 = vcmask 523264
    %s26 = scalar_lea.vmem %s1, 2
    %27 = vst.msk [vmem:[%s26] ss:$8 sm:$0x3] %vm25, %v24
    %s28 = scalar_lea.vmem [#allocation0], 16
    %v29 = vld [vmem:[%s28] sm:$0x3]
    %vm30 = vcmask 523264
    %s31 = scalar_lea.vmem %s1, 4
    %32 = vst.msk [vmem:[%s31] ss:$8 sm:$0x3] %vm30, %v29
    %s33 = scalar_lea.vmem [#allocation0], 24
    %v34 = vld [vmem:[%s33] sm:$0x3]
    %vm35 = vcmask 523264
    %s36 = scalar_lea.vmem %s1, 6
    %37 = vst.msk [vmem:[%s36] ss:$8 sm:$0x3] %vm35, %v34
    %v38 = vld [vmem:[#allocation0] ss:$8 sm:$0xf]
    %s39 = scalar_lea.vmem [#allocation0], 4294967265
    %v40 = vld [vmem:[%s39] ss:$8 sm:$0xf0]
    %vm41 = vcmask 1047556
    %v42 = vsel %vm41, %v40, %v38
    %43 = vrot.lane.b32.xlu0 %v42, 64
    %v44 = vpop.permute.xlu0 %43
    %vm45 = vcmask 523264
    %s46 = scalar_lea.vmem %s1, 1
    %47 = vst.msk [vmem:[%s46] ss:$2 sm:$0xff] %vm45, %v44

// kernel: tmr_ner_forward.3
$region0: #{tmr_ner_forward.3}
  #allocation0 [shape = 'u32[]', space=smem, size = 0x4, offset = 0x4, fixed_abs, tag = 'smem constant byte address 0x4 - core index']
  #allocation1 [shape = 'u32[144,128]{1,0:T(1,128)}', space=vmem, size = 0x12000, scoped, tag = 'internal scratch']
  %s0 = inlined_call_operand.vmem [shape: f32[2,8,32], index: 0, kind: input, shape index: {}]
  %s1 = inlined_call_operand.vmem [shape: f32[2,8,64], index: 1, kind: input, shape index: {}]
  %s2 = inlined_call_operand.vmem [shape: f32[2,8,64], index: 2, kind: input, shape index: {}]
  %s3 = inlined_call_operand.vmem [shape: f32[160,256], index: 3, kind: input, shape index: {}]
  %s4 = inlined_call_operand.vmem [shape: f32[1,256], index: 4, kind: input, shape index: {}]
  %s5 = inlined_call_operand.vmem [shape: f32[256,9], index: 5, kind: input, shape index: {}]
  %s6 = inlined_call_operand.vmem [shape: f32[1,9], index: 6, kind: input, shape index: {}]
  %s7 = inlined_call_operand.vmem [shape: f32[2,8,9], index: 7, kind: output, shape index: {}]
  %s8 = sld [smem:[#allocation0]]
  $region61: #{tmr_ner_forward.3} parent=0
    _
  %s10 = ssub.s32 1, %s8
  %s11 = scalar_select 0, %s10, %s8
  loop: start=0, step=1, limit=4
  $region2: #{tmr_ner_forward.3} parent=0 // loop_pre_header
    _
  $region3: #{tmr_ner_forward.3} parent=0 // loop_header
    %s13 = sphi 0, %s17
    %p14 = scmp.ge.s32.totalorder %s13, 4
    %s23 = sphi 0, %s25
    %s26 = sphi 0, %s23
    %s27 = sphi 0, %s26
    %s43 = sphi 0, %s27
    %s49 = sphi 0, %s51
    %s52 = sphi 0, %s49
    %s53 = sphi 0, %s52
    %s69 = sphi 0, %s53
    %s75 = sphi 0, %s77
    %s78 = sphi 0, %s75
    %s79 = sphi 0, %s78
    %s95 = sphi 0, %s79
    %s99 = sphi 0, %s99
    %s101 = sphi 0, %s99
    %s102 = sphi 0, %s101
    %s116 = sphi 0, %s102
    %s120 = sphi 0, %s120
    %s122 = sphi 0, %s120
    %s123 = sphi 0, %s122
    %s137 = sphi 0, %s123
    %s141 = sphi 0, %s141
    %s143 = sphi 0, %s141
    %s144 = sphi 0, %s143
    %s158 = sphi 0, %s144
    %s162 = sphi 0, %s162
    %s164 = sphi 0, %s162
    %s165 = sphi 0, %s164
    %s179 = sphi 0, %s165
    %s185 = sphi 0, %s187
    %s188 = sphi 0, %s185
    %s189 = sphi 0, %s188
    %s205 = sphi 0, %s189
  $region4: #{tmr_ner_forward.3} parent=0 // loop_header_branch
    %16 = sbr.rel (%p14) target = $region8
  $region5: #{tmr_ner_forward.3} parent=0 // loop_body
    %s18 = ssub.s32 %s13, 1
    %s19 = ssub.s32 %s13, 2
    %s20 = sadd.s32 %s13, 1
    %s21 = ssub.s32 %s13, %s20
    %p22 = scmp.eq.s32.totalorder %s21, 0
    %s24 = sadd.s32 %s23, 1
    %s25 = scalar_select %p22, %s23, %s24
    %p28 = pneg %p22
    %p29 = scmp.eq.s32.totalorder %s13, 1
    %p30 = por %p28, %p29
    %p31 = scmp.ne.s32.totalorder %s23, %s26
    %p32 = scmp.eq.s32.totalorder %s13, 0
    %p33 = por %p31, %p32
    %p34 = scmp.ne.s32.totalorder %s23, %s26
    %p35 = scmp.eq.s32.totalorder %s18, 1
    %p36 = por %p34, %p35
    %p37 = scmp.ne.s32.totalorder %s26, %s27
    %p38 = scmp.eq.s32.totalorder %s18, 0
    %p39 = por %p37, %p38
    %p40 = scmp.ne.s32.totalorder %s26, %s27
    %p41 = scmp.eq.s32.totalorder %s19, 1
    %p42 = por %p40, %p41
    %p44 = scmp.ne.s32.totalorder %s27, %s43
    %p45 = scmp.eq.s32.totalorder %s19, 0
    %p46 = por %p44, %p45
    %s47 = ssub.s32 %s13, %s20
    %p48 = scmp.eq.s32.totalorder %s47, 0
    %s50 = sadd.s32 %s49, 1
    %s51 = scalar_select %p48, %s49, %s50
    %p54 = pneg %p48
    %p55 = scmp.eq.s32.totalorder %s13, 1
    %p56 = por %p54, %p55
    %p57 = scmp.ne.s32.totalorder %s49, %s52
    %p58 = scmp.eq.s32.totalorder %s13, 0
    %p59 = por %p57, %p58
    %p60 = scmp.ne.s32.totalorder %s49, %s52
    %p61 = scmp.eq.s32.totalorder %s18, 1
    %p62 = por %p60, %p61
    %p63 = scmp.ne.s32.totalorder %s52, %s53
    %p64 = scmp.eq.s32.totalorder %s18, 0
    %p65 = por %p63, %p64
    %p66 = scmp.ne.s32.totalorder %s52, %s53
    %p67 = scmp.eq.s32.totalorder %s19, 1
    %p68 = por %p66, %p67
    %p70 = scmp.ne.s32.totalorder %s53, %s69
    %p71 = scmp.eq.s32.totalorder %s19, 0
    %p72 = por %p70, %p71
    %s73 = ssub.s32 %s13, %s20
    %p74 = scmp.eq.s32.totalorder %s73, 0
    %s76 = sadd.s32 %s75, 1
    %s77 = scalar_select %p74, %s75, %s76
    %p80 = pneg %p74
    %p81 = scmp.eq.s32.totalorder %s13, 1
    %p82 = por %p80, %p81
    %p83 = scmp.ne.s32.totalorder %s75, %s78
    %p84 = scmp.eq.s32.totalorder %s13, 0
    %p85 = por %p83, %p84
    %p86 = scmp.ne.s32.totalorder %s75, %s78
    %p87 = scmp.eq.s32.totalorder %s18, 1
    %p88 = por %p86, %p87
    %p89 = scmp.ne.s32.totalorder %s78, %s79
    %p90 = scmp.eq.s32.totalorder %s18, 0
    %p91 = por %p89, %p90
    %p92 = scmp.ne.s32.totalorder %s78, %s79
    %p93 = scmp.eq.s32.totalorder %s19, 1
    %p94 = por %p92, %p93
    %p96 = scmp.ne.s32.totalorder %s79, %s95
    %p97 = scmp.eq.s32.totalorder %s19, 0
    %p98 = por %p96, %p97
    %s100 = sadd.s32 %s99, 1
    %p103 = scmp.eq.s32.totalorder %s13, 1
    %p104 = scmp.ne.s32.totalorder %s99, %s101
    %p105 = scmp.eq.s32.totalorder %s13, 0
    %p106 = por %p104, %p105
    %p107 = scmp.ne.s32.totalorder %s99, %s101
    %p108 = scmp.eq.s32.totalorder %s18, 1
    %p109 = por %p107, %p108
    %p110 = scmp.ne.s32.totalorder %s101, %s102
    %p111 = scmp.eq.s32.totalorder %s18, 0
    %p112 = por %p110, %p111
    %p113 = scmp.ne.s32.totalorder %s101, %s102
    %p114 = scmp.eq.s32.totalorder %s19, 1
    %p115 = por %p113, %p114
    %p117 = scmp.ne.s32.totalorder %s102, %s116
    %p118 = scmp.eq.s32.totalorder %s19, 0
    %p119 = por %p117, %p118
    %s121 = sadd.s32 %s120, 1
    %p124 = scmp.eq.s32.totalorder %s13, 1
    %p125 = scmp.ne.s32.totalorder %s120, %s122
    %p126 = scmp.eq.s32.totalorder %s13, 0
    %p127 = por %p125, %p126
    %p128 = scmp.ne.s32.totalorder %s120, %s122
    %p129 = scmp.eq.s32.totalorder %s18, 1
    %p130 = por %p128, %p129
    %p131 = scmp.ne.s32.totalorder %s122, %s123
    %p132 = scmp.eq.s32.totalorder %s18, 0
    %p133 = por %p131, %p132
    %p134 = scmp.ne.s32.totalorder %s122, %s123
    %p135 = scmp.eq.s32.totalorder %s19, 1
    %p136 = por %p134, %p135
    %p138 = scmp.ne.s32.totalorder %s123, %s137
    %p139 = scmp.eq.s32.totalorder %s19, 0
    %p140 = por %p138, %p139
    %s142 = sadd.s32 %s141, 1
    %p145 = scmp.eq.s32.totalorder %s13, 1
    %p146 = scmp.ne.s32.totalorder %s141, %s143
    %p147 = scmp.eq.s32.totalorder %s13, 0
    %p148 = por %p146, %p147
    %p149 = scmp.ne.s32.totalorder %s141, %s143
    %p150 = scmp.eq.s32.totalorder %s18, 1
    %p151 = por %p149, %p150
    %p152 = scmp.ne.s32.totalorder %s143, %s144
    %p153 = scmp.eq.s32.totalorder %s18, 0
    %p154 = por %p152, %p153
    %p155 = scmp.ne.s32.totalorder %s143, %s144
    %p156 = scmp.eq.s32.totalorder %s19, 1
    %p157 = por %p155, %p156
    %p159 = scmp.ne.s32.totalorder %s144, %s158
    %p160 = scmp.eq.s32.totalorder %s19, 0
    %p161 = por %p159, %p160
    %s163 = sadd.s32 %s162, 1
    %p166 = scmp.eq.s32.totalorder %s13, 1
    %p167 = scmp.ne.s32.totalorder %s162, %s164
    %p168 = scmp.eq.s32.totalorder %s13, 0
    %p169 = por %p167, %p168
    %p170 = scmp.ne.s32.totalorder %s162, %s164
    %p171 = scmp.eq.s32.totalorder %s18, 1
    %p172 = por %p170, %p171
    %p173 = scmp.ne.s32.totalorder %s164, %s165
    %p174 = scmp.eq.s32.totalorder %s18, 0
    %p175 = por %p173, %p174
    %p176 = scmp.ne.s32.totalorder %s164, %s165
    %p177 = scmp.eq.s32.totalorder %s19, 1
    %p178 = por %p176, %p177
    %p180 = scmp.ne.s32.totalorder %s165, %s179
    %p181 = scmp.eq.s32.totalorder %s19, 0
    %p182 = por %p180, %p181
    %s183 = ssub.s32 %s13, %s20
    %p184 = scmp.eq.s32.totalorder %s183, 0
    %s186 = sadd.s32 %s185, 1
    %s187 = scalar_select %p184, %s185, %s186
    %p190 = pneg %p184
    %p191 = scmp.eq.s32.totalorder %s13, 1
    %p192 = por %p190, %p191
    %p193 = scmp.ne.s32.totalorder %s185, %s188
    %p194 = scmp.eq.s32.totalorder %s13, 0
    %p195 = por %p193, %p194
    %p196 = scmp.ne.s32.totalorder %s185, %s188
    %p197 = scmp.eq.s32.totalorder %s18, 1
    %p198 = por %p196, %p197
    %p199 = scmp.ne.s32.totalorder %s188, %s189
    %p200 = scmp.eq.s32.totalorder %s18, 0
    %p201 = por %p199, %p200
    %p202 = scmp.ne.s32.totalorder %s188, %s189
    %p203 = scmp.eq.s32.totalorder %s19, 1
    %p204 = por %p202, %p203
    %p206 = scmp.ne.s32.totalorder %s189, %s205
    %p207 = scmp.eq.s32.totalorder %s19, 0
    %p208 = por %p206, %p207
    %p209 = scmp.le.s32.totalorder 1, %s13
    %p210 = scmp.lt.s32.totalorder %s13, 3
    %p211 = pnand %p209, %p210
    %p212 = pneg %p211
    // Predicated region
    $region9: #{tmr_ner_forward.3} parent=5 // pred_check
      _
    $region10: #{tmr_ner_forward.3} parent=5 // pred_check_branch
      %214 = sbr.rel (%p211) target = $region12
    $region11: #{tmr_ner_forward.3} parent=5 // pred_region
      %s215 = ssub.s32 %s13, 1
      // Predicated region
      $region13: #{tmr_ner_forward.3} parent=11 // pred_check
        %p216 = pneg %p112
      $region14: #{tmr_ner_forward.3} parent=11 // pred_check_branch
        %218 = sbr.rel (%p216) target = $region16
      $region15: #{tmr_ner_forward.3} parent=11 // pred_region
        _
      $region16: #{tmr_ner_forward.3} parent=11 // pred_fallthru
        _
      // Predicated region
      $region17: #{tmr_ner_forward.3} parent=11 // pred_check
        %p219 = pneg %p133
      $region18: #{tmr_ner_forward.3} parent=11 // pred_check_branch
        %221 = sbr.rel (%p219) target = $region20
      $region19: #{tmr_ner_forward.3} parent=11 // pred_region
        _
      $region20: #{tmr_ner_forward.3} parent=11 // pred_fallthru
        _
      // Predicated region
      $region21: #{tmr_ner_forward.3} parent=11 // pred_check
        %p222 = pneg %p154
      $region22: #{tmr_ner_forward.3} parent=11 // pred_check_branch
        %224 = sbr.rel (%p222) target = $region24
      $region23: #{tmr_ner_forward.3} parent=11 // pred_region
        _
      $region24: #{tmr_ner_forward.3} parent=11 // pred_fallthru
        _
      // Predicated region
      $region25: #{tmr_ner_forward.3} parent=11 // pred_check
        %p225 = pneg %p175
      $region26: #{tmr_ner_forward.3} parent=11 // pred_check_branch
        %227 = sbr.rel (%p225) target = $region28
      $region27: #{tmr_ner_forward.3} parent=11 // pred_region
        _
      $region28: #{tmr_ner_forward.3} parent=11 // pred_fallthru
        _
    $region12: #{tmr_ner_forward.3} parent=5 // pred_fallthru
      _
    %p228 = scmp.lt.s32.totalorder %s13, 2
    // Predicated region
    $region29: #{tmr_ner_forward.3} parent=5 // pred_check
      %p229 = pneg %p228
    $region30: #{tmr_ner_forward.3} parent=5 // pred_check_branch
      %231 = sbr.rel (%p229) target = $region32
    $region31: #{tmr_ner_forward.3} parent=5 // pred_region
      // Predicated region
      $region33: #{tmr_ner_forward.3} parent=31 // pred_check
        %p232 = pneg %p33
      $region34: #{tmr_ner_forward.3} parent=31 // pred_check_branch
        %234 = sbr.rel (%p232) target = $region36
      $region35: #{tmr_ner_forward.3} parent=31 // pred_region
        %p235 = scmp.lt.s32.totalorder %s13, 1
        %s236 = scalar_select %p235, %s13, 1
        %s237 = smul.addr %s236, 8
        %s238 = scalar_lea.vmem %s0, %s237
      $region36: #{tmr_ner_forward.3} parent=31 // pred_fallthru
        _
      // Predicated region
      $region37: #{tmr_ner_forward.3} parent=31 // pred_check
        %p239 = pneg %p59
      $region38: #{tmr_ner_forward.3} parent=31 // pred_check_branch
        %241 = sbr.rel (%p239) target = $region40
      $region39: #{tmr_ner_forward.3} parent=31 // pred_region
        %p242 = scmp.lt.s32.totalorder %s13, 1
        %s243 = scalar_select %p242, %s13, 1
        %s244 = smul.addr %s243, 8
        %s245 = scalar_lea.vmem %s1, %s244
      $region40: #{tmr_ner_forward.3} parent=31 // pred_fallthru
        _
      // Predicated region
      $region41: #{tmr_ner_forward.3} parent=31 // pred_check
        %p246 = pneg %p85
      $region42: #{tmr_ner_forward.3} parent=31 // pred_check_branch
        %248 = sbr.rel (%p246) target = $region44
      $region43: #{tmr_ner_forward.3} parent=31 // pred_region
        %p249 = scmp.lt.s32.totalorder %s13, 1
        %s250 = scalar_select %p249, %s13, 1
        %s251 = smul.addr %s250, 8
        %s252 = scalar_lea.vmem %s2, %s251
      $region44: #{tmr_ner_forward.3} parent=31 // pred_fallthru
        _
    $region32: #{tmr_ner_forward.3} parent=5 // pred_fallthru
      _
    %p253 = scmp.le.s32.totalorder 1, %s13
    %p254 = scmp.lt.s32.totalorder %s13, 3
    %p255 = pnand %p253, %p254
    %p256 = pneg %p255
    // Predicated region
    $region45: #{tmr_ner_forward.3} parent=5 // pred_check
      _
    $region46: #{tmr_ner_forward.3} parent=5 // pred_check_branch
      %258 = sbr.rel (%p255) target = $region48
    $region47: #{tmr_ner_forward.3} parent=5 // pred_region
      %s259 = ssub.s32 %s13, 1
      %p260 = scmp.lt.s32.totalorder %s18, 1
      %s261 = scalar_select %p260, %s18, 1
      %s262 = smul.addr %s261, 8
      %s263 = scalar_lea.vmem %s0, %s262
      %p264 = pneg %p39
      %p265 = pneg %p36
      %p266 = scmp.lt.s32.totalorder %s18, 1
      %s267 = scalar_select %p266, %s18, 1
      %s268 = smul.addr %s267, 8
      %s269 = scalar_lea.vmem %s1, %s268
      %p270 = pneg %p65
      %p271 = pneg %p62
      %p272 = scmp.lt.s32.totalorder %s18, 1
      %s273 = scalar_select %p272, %s18, 1
      %s274 = smul.addr %s273, 8
      %s275 = scalar_lea.vmem %s2, %s274
      %p276 = pneg %p91
      %p277 = pneg %p88
      %p278 = pneg %p112
      %p279 = pneg %p109
      %p280 = pneg %p133
      %p281 = pneg %p130
      %p282 = pneg %p154
      %p283 = pneg %p151
      %p284 = pneg %p175
      %p285 = pneg %p172
      %p286 = pneg %p201
      %p287 = pneg %p198
      %p288 = scmp.lt.s32.totalorder %s18, 1
      %s289 = scalar_select %p288, %s18, 1
      %s290 = smul.addr %s289, 8
      %s291 = scalar_lea.vmem %s7, %s290
      %p292 = scmp.lt.s32.totalorder %s18, 1
      %s293 = scalar_select %p292, %s18, 1
      %s294 = smul.addr %s293, 8
      %s295 = scalar_lea.vmem %s0, %s294
      %p296 = scmp.lt.s32.totalorder %s18, 1
      %s297 = scalar_select %p296, %s18, 1
      %s298 = smul.addr %s297, 8
      %s299 = scalar_lea.vmem %s1, %s298
      %p300 = scmp.lt.s32.totalorder %s18, 1
      %s301 = scalar_select %p300, %s18, 1
      %s302 = smul.addr %s301, 8
      %s303 = scalar_lea.vmem %s2, %s302
      %p304 = scmp.lt.s32.totalorder %s18, 1
      %s305 = scalar_select %p304, %s18, 1
      %s306 = smul.addr %s305, 8
      %s307 = scalar_lea.vmem %s7, %s306
      %v308 = vld [vmem:[%s295] sm:$0xff]
      %v309 = vld [vmem:[%s3] sm:$0xff]
      %v310 = vld [vmem:[%s3 + $0x8] sm:$0xff]
      %v311 = vld [vmem:[%s3 + $0x10] sm:$0xff]
      %v312 = vld [vmem:[%s3 + $0x18] sm:$0xff]
      %v313 = vld [vmem:[%s3 + $0x20] sm:$0xff]
      %v314 = vld [vmem:[%s3 + $0x28] sm:$0xff]
      %v315 = vld [vmem:[%s3 + $0x30] sm:$0xff]
      %v316 = vld [vmem:[%s3 + $0x38] sm:$0xff]
      %v317 = vld [vmem:[%s299] sm:$0xff]
      %v318 = vld [vmem:[%s3 + $0x40] sm:$0xff]
      %v319 = vld [vmem:[%s3 + $0x48] sm:$0xff]
      %v320 = vld [vmem:[%s3 + $0x50] sm:$0xff]
      %v321 = vld [vmem:[%s3 + $0x58] sm:$0xff]
      %v322 = vld [vmem:[%s3 + $0x60] sm:$0xff]
      %v323 = vld [vmem:[%s3 + $0x68] sm:$0xff]
      %v324 = vld [vmem:[%s3 + $0x70] sm:$0xff]
      %v325 = vld [vmem:[%s3 + $0x78] sm:$0xff]
      %v326 = vld [vmem:[%s3 + $0x80] sm:$0xff]
      %v327 = vld [vmem:[%s3 + $0x88] sm:$0xff]
      %v328 = vld [vmem:[%s3 + $0x90] sm:$0xff]
      %v329 = vld [vmem:[%s3 + $0x98] sm:$0xff]
      %v330 = vld [vmem:[%s3 + $0xa0] sm:$0xff]
      %v331 = vld [vmem:[%s3 + $0xa8] sm:$0xff]
      %v332 = vld [vmem:[%s3 + $0xb0] sm:$0xff]
      %v333 = vld [vmem:[%s3 + $0xb8] sm:$0xff]
      %vm334 = vcmask 523264
      %v336 = vsel %vm334, %v317, 0
      %338 = vmatprep.subr.mxu0 %v319
      %339 = vmatpush1.msra.mxu0 %v318
      %340 = vmatprep.subr.mxu0 %v321
      %341 = vmatpush1.msra.mxu0 %v320
      %342 = vmatprep.subr.mxu0 %v323
      %343 = vmatpush1.msra.mxu0 %v322
      %344 = vmatprep.subr.mxu0 %v325
      %345 = vmatpush1.msra.mxu0 %v324
      %346 = vmatprep.subr.mxu0 %v327
      %347 = vmatpush1.msra.mxu0 %v326
      %348 = vmatprep.subr.mxu0 %v329
      %349 = vmatpush1.msra.mxu0 %v328
      %350 = vmatprep.subr.mxu0 %v331
      %351 = vmatpush1.msra.mxu0 %v330
      %352 = vmatprep.subr.mxu0 %v333
      %353 = vmatpush1.msra.mxu0 %v332
      %354 = vmatprep.subr.mxu0 0.0
      %355 = vmatpush1.msra.mxu0 0.0
      %356 = vmatprep.subr.mxu0 0.0
      %357 = vmatpush1.msra.mxu0 0.0
      %358 = vmatprep.subr.mxu0 0.0
      %359 = vmatpush1.msra.mxu0 0.0
      %360 = vmatprep.subr.mxu0 0.0
      %361 = vmatpush1.msra.mxu0 0.0
      %362 = vmatprep.subr.mxu0 0.0
      %363 = vmatpush1.msra.mxu0 0.0
      %364 = vmatprep.subr.mxu0 0.0
      %365 = vmatpush1.msra.mxu0 0.0
      %366 = vmatprep.subr.mxu0 0.0
      %367 = vmatpush1.msra.mxu0 0.0
      %368 = vmatprep.subr.mxu0 0.0
      %369 = vmatpush1.msra.mxu0 0.0
      %370 = vmatprep.subr.mxu0 0.0
      %371 = vmatpush1.msra.mxu0 0.0
      %372 = vmatprep.subr.mxu0 0.0
      %373 = vmatpush1.msra.mxu0 0.0
      %374 = vmatprep.subr.mxu0 0.0
      %375 = vmatpush1.msra.mxu0 0.0
      %376 = vmatprep.subr.mxu0 0.0
      %377 = vmatpush1.msra.mxu0 0.0
      %378 = vmatprep.subr.mxu0 0.0
      %379 = vmatpush1.msra.mxu0 0.0
      %380 = vmatprep.subr.mxu0 0.0
      %381 = vmatpush1.msra.mxu0 0.0
      %382 = vmatprep.subr.mxu0 0.0
      %383 = vmatpush1.msra.mxu0 0.0
      %384 = vmatprep.subr.mxu0 0.0
      %385 = vmatpush1.msra.mxu0 0.0
      %386 = vmatprep.subr.mxu0 0.0
      %387 = vmatpush1.msra.mxu0 0.0
      %388 = vmatprep.subr.mxu0 0.0
      %389 = vmatpush1.msra.mxu0 0.0
      %390 = vmatprep.subr.mxu0 0.0
      %391 = vmatpush1.msra.mxu0 0.0
      %392 = vmatprep.subr.mxu0 0.0
      %393 = vmatpush1.msra.mxu0 0.0
      %394 = vmatprep.subr.mxu0 0.0
      %395 = vmatpush1.msra.mxu0 0.0
      %396 = vmatprep.subr.mxu0 0.0
      %397 = vmatpush1.msra.mxu0 0.0
      %398 = vmatprep.subr.mxu0 0.0
      %399 = vmatpush1.msra.mxu0 0.0
      %400 = vmatprep.subr.mxu0 0.0
      %401 = vmatpush1.msra.mxu0 0.0
      %402 = vmatprep.mubr.f32.mxu0 0.0
      %403 = vmatmul.mubr.f32.gmra.mrb[0].mxu0 %v336
      %v404 = vpop.f32.mrb[0].mxu0
      %v405 = vadd.f32 0.0, %v404
      %v406 = vpop.f32.mrb[0].mxu0
      %v407 = vadd.f32 0.0, %v406
      %408 = vdwg.mxu0
      %vm409 = vcmask 261120
      %v411 = vsel %vm409, %v308, 0
      %413 = vmatprep.subr.mxu0 %v310
      %414 = vmatpush1.msra.mxu0 %v309
      %415 = vmatprep.subr.mxu0 %v312
      %416 = vmatpush1.msra.mxu0 %v311
      %417 = vmatprep.subr.mxu0 %v314
      %418 = vmatpush1.msra.mxu0 %v313
      %419 = vmatprep.subr.mxu0 %v316
      %420 = vmatpush1.msra.mxu0 %v315
      %421 = vmatprep.subr.mxu0 0.0
      %422 = vmatpush1.msra.mxu0 0.0
      %423 = vmatprep.subr.mxu0 0.0
      %424 = vmatpush1.msra.mxu0 0.0
      %425 = vmatprep.subr.mxu0 0.0
      %426 = vmatpush1.msra.mxu0 0.0
      %427 = vmatprep.subr.mxu0 0.0
      %428 = vmatpush1.msra.mxu0 0.0
      %429 = vmatprep.subr.mxu0 0.0
      %430 = vmatpush1.msra.mxu0 0.0
      %431 = vmatprep.subr.mxu0 0.0
      %432 = vmatpush1.msra.mxu0 0.0
      %433 = vmatprep.subr.mxu0 0.0
      %434 = vmatpush1.msra.mxu0 0.0
      %435 = vmatprep.subr.mxu0 0.0
      %436 = vmatpush1.msra.mxu0 0.0
      %437 = vmatprep.subr.mxu0 0.0
      %438 = vmatpush1.msra.mxu0 0.0
      %439 = vmatprep.subr.mxu0 0.0
      %440 = vmatpush1.msra.mxu0 0.0
      %441 = vmatprep.subr.mxu0 0.0
      %442 = vmatpush1.msra.mxu0 0.0
      %443 = vmatprep.subr.mxu0 0.0
      %444 = vmatpush1.msra.mxu0 0.0
      %445 = vmatprep.subr.mxu0 0.0
      %446 = vmatpush1.msra.mxu0 0.0
      %447 = vmatprep.subr.mxu0 0.0
      %448 = vmatpush1.msra.mxu0 0.0
      %449 = vmatprep.subr.mxu0 0.0
      %450 = vmatpush1.msra.mxu0 0.0
      %451 = vmatprep.subr.mxu0 0.0
      %452 = vmatpush1.msra.mxu0 0.0
      %453 = vmatprep.subr.mxu0 0.0
      %454 = vmatpush1.msra.mxu0 0.0
      %455 = vmatprep.subr.mxu0 0.0
      %456 = vmatpush1.msra.mxu0 0.0
      %457 = vmatprep.subr.mxu0 0.0
      %458 = vmatpush1.msra.mxu0 0.0
      %459 = vmatprep.subr.mxu0 0.0
      %460 = vmatpush1.msra.mxu0 0.0
      %461 = vmatprep.subr.mxu0 0.0
      %462 = vmatpush1.msra.mxu0 0.0
      %463 = vmatprep.subr.mxu0 0.0
      %464 = vmatpush1.msra.mxu0 0.0
      %465 = vmatprep.subr.mxu0 0.0
      %466 = vmatpush1.msra.mxu0 0.0
      %467 = vmatprep.subr.mxu0 0.0
      %468 = vmatpush1.msra.mxu0 0.0
      %469 = vmatprep.subr.mxu0 0.0
      %470 = vmatpush1.msra.mxu0 0.0
      %471 = vmatprep.subr.mxu0 0.0
      %472 = vmatpush1.msra.mxu0 0.0
      %473 = vmatprep.subr.mxu0 0.0
      %474 = vmatpush1.msra.mxu0 0.0
      %475 = vmatprep.subr.mxu0 0.0
      %476 = vmatpush1.msra.mxu0 0.0
      %477 = vmatprep.mubr.f32.mxu0 0.0
      %478 = vmatmul.mubr.f32.gmra.mrb[0].mxu0 %v411
      %v479 = vpop.f32.mrb[0].mxu0
      %v480 = vadd.f32 %v405, %v479
      %v481 = vpop.f32.mrb[0].mxu0
      %v482 = vadd.f32 %v407, %v481
      %483 = vdwg.mxu0
      %v484 = vld [vmem:[%s303] sm:$0xff]
      %v485 = vld [vmem:[%s3 + $0xc0] sm:$0xff]
      %v486 = vld [vmem:[%s3 + $0xc8] sm:$0xff]
      %v487 = vld [vmem:[%s3 + $0xd0] sm:$0xff]
      %v488 = vld [vmem:[%s3 + $0xd8] sm:$0xff]
      %v489 = vld [vmem:[%s3 + $0xe0] sm:$0xff]
      %v490 = vld [vmem:[%s3 + $0xe8] sm:$0xff]
      %v491 = vld [vmem:[%s3 + $0xf0] sm:$0xff]
      %v492 = vld [vmem:[%s3 + $0xf8] sm:$0xff]
      %v493 = vld [vmem:[%s3 + $0x100] sm:$0xff]
      %v494 = vld [vmem:[%s3 + $0x108] sm:$0xff]
      %v495 = vld [vmem:[%s3 + $0x110] sm:$0xff]
      %v496 = vld [vmem:[%s3 + $0x118] sm:$0xff]
      %v497 = vld [vmem:[%s3 + $0x120] sm:$0xff]
      %v498 = vld [vmem:[%s3 + $0x128] sm:$0xff]
      %v499 = vld [vmem:[%s3 + $0x130] sm:$0xff]
      %v500 = vld [vmem:[%s3 + $0x138] sm:$0xff]
      %v502 = vsel %vm334, %v484, 0
      %504 = vmatprep.subr.mxu0 %v486
      %505 = vmatpush1.msra.mxu0 %v485
      %506 = vmatprep.subr.mxu0 %v488
      %507 = vmatpush1.msra.mxu0 %v487
      %508 = vmatprep.subr.mxu0 %v490
      %509 = vmatpush1.msra.mxu0 %v489
      %510 = vmatprep.subr.mxu0 %v492
      %511 = vmatpush1.msra.mxu0 %v491
      %512 = vmatprep.subr.mxu0 %v494
      %513 = vmatpush1.msra.mxu0 %v493
      %514 = vmatprep.subr.mxu0 %v496
      %515 = vmatpush1.msra.mxu0 %v495
      %516 = vmatprep.subr.mxu0 %v498
      %517 = vmatpush1.msra.mxu0 %v497
      %518 = vmatprep.subr.mxu0 %v500
      %519 = vmatpush1.msra.mxu0 %v499
      %520 = vmatprep.subr.mxu0 0.0
      %521 = vmatpush1.msra.mxu0 0.0
      %522 = vmatprep.subr.mxu0 0.0
      %523 = vmatpush1.msra.mxu0 0.0
      %524 = vmatprep.subr.mxu0 0.0
      %525 = vmatpush1.msra.mxu0 0.0
      %526 = vmatprep.subr.mxu0 0.0
      %527 = vmatpush1.msra.mxu0 0.0
      %528 = vmatprep.subr.mxu0 0.0
      %529 = vmatpush1.msra.mxu0 0.0
      %530 = vmatprep.subr.mxu0 0.0
      %531 = vmatpush1.msra.mxu0 0.0
      %532 = vmatprep.subr.mxu0 0.0
      %533 = vmatpush1.msra.mxu0 0.0
      %534 = vmatprep.subr.mxu0 0.0
      %535 = vmatpush1.msra.mxu0 0.0
      %536 = vmatprep.subr.mxu0 0.0
      %537 = vmatpush1.msra.mxu0 0.0
      %538 = vmatprep.subr.mxu0 0.0
      %539 = vmatpush1.msra.mxu0 0.0
      %540 = vmatprep.subr.mxu0 0.0
      %541 = vmatpush1.msra.mxu0 0.0
      %542 = vmatprep.subr.mxu0 0.0
      %543 = vmatpush1.msra.mxu0 0.0
      %544 = vmatprep.subr.mxu0 0.0
      %545 = vmatpush1.msra.mxu0 0.0
      %546 = vmatprep.subr.mxu0 0.0
      %547 = vmatpush1.msra.mxu0 0.0
      %548 = vmatprep.subr.mxu0 0.0
      %549 = vmatpush1.msra.mxu0 0.0
      %550 = vmatprep.subr.mxu0 0.0
      %551 = vmatpush1.msra.mxu0 0.0
      %552 = vmatprep.subr.mxu0 0.0
      %553 = vmatpush1.msra.mxu0 0.0
      %554 = vmatprep.subr.mxu0 0.0
      %555 = vmatpush1.msra.mxu0 0.0
      %556 = vmatprep.subr.mxu0 0.0
      %557 = vmatpush1.msra.mxu0 0.0
      %558 = vmatprep.subr.mxu0 0.0
      %559 = vmatpush1.msra.mxu0 0.0
      %560 = vmatprep.subr.mxu0 0.0
      %561 = vmatpush1.msra.mxu0 0.0
      %562 = vmatprep.subr.mxu0 0.0
      %563 = vmatpush1.msra.mxu0 0.0
      %564 = vmatprep.subr.mxu0 0.0
      %565 = vmatpush1.msra.mxu0 0.0
      %566 = vmatprep.subr.mxu0 0.0
      %567 = vmatpush1.msra.mxu0 0.0
      %568 = vmatprep.mubr.f32.mxu0 0.0
      %569 = vmatmul.mubr.f32.gmra.mrb[0].mxu0 %v502
      %v570 = vpop.f32.mrb[0].mxu0
      %v571 = vadd.f32 0.0, %v570
      %v572 = vpop.f32.mrb[0].mxu0
      %v573 = vadd.f32 0.0, %v572
      %574 = vdwg.mxu0
      %v575 = vadd.f32 %v480, %v571
      %v576 = vadd.f32 %v482, %v573
      %v577 = vld [vmem:[%s4] sm:$0x3]
      %v579 = vlaneseq
      %v580 = vshrl.u32 %v579, 7
      %v581 = vsub.s32 0, %v580
      %v582 = vrot.slane %v577, %v581
      %v583 = vlaneseq
      %v584 = vshrl.u32 %v583, 7
      %v585 = vsub.s32 1, %v584
      %v586 = vrot.slane %v577, %v585
      %v589 = vadd.f32 %v575, %v582
      %v590 = vadd.f32 %v576, %v586
      %v591 = vmax.f32 %v589, 0.0
      %v592 = vmax.f32 %v590, 0.0
      %v593 = vld [vmem:[%s5] sm:$0xff]
      %v594 = vld [vmem:[%s5 + $0x8] sm:$0xff]
      %v595 = vld [vmem:[%s5 + $0x10] sm:$0xff]
      %v596 = vld [vmem:[%s5 + $0x18] sm:$0xff]
      %v597 = vld [vmem:[%s5 + $0x20] sm:$0xff]
      %v598 = vld [vmem:[%s5 + $0x28] sm:$0xff]
      %v599 = vld [vmem:[%s5 + $0x30] sm:$0xff]
      %v600 = vld [vmem:[%s5 + $0x38] sm:$0xff]
      %v601 = vld [vmem:[%s5 + $0x40] sm:$0xff]
      %v602 = vld [vmem:[%s5 + $0x48] sm:$0xff]
      %v603 = vld [vmem:[%s5 + $0x50] sm:$0xff]
      %v604 = vld [vmem:[%s5 + $0x58] sm:$0xff]
      %v605 = vld [vmem:[%s5 + $0x60] sm:$0xff]
      %v606 = vld [vmem:[%s5 + $0x68] sm:$0xff]
      %v607 = vld [vmem:[%s5 + $0x70] sm:$0xff]
      %v608 = vld [vmem:[%s5 + $0x78] sm:$0xff]
      %v609 = vld [vmem:[%s5 + $0x80] sm:$0xff]
      %v610 = vld [vmem:[%s5 + $0x88] sm:$0xff]
      %v611 = vld [vmem:[%s5 + $0x90] sm:$0xff]
      %v612 = vld [vmem:[%s5 + $0x98] sm:$0xff]
      %v613 = vld [vmem:[%s5 + $0xa0] sm:$0xff]
      %v614 = vld [vmem:[%s5 + $0xa8] sm:$0xff]
      %v615 = vld [vmem:[%s5 + $0xb0] sm:$0xff]
      %v616 = vld [vmem:[%s5 + $0xb8] sm:$0xff]
      %v617 = vld [vmem:[%s5 + $0xc0] sm:$0xff]
      %v618 = vld [vmem:[%s5 + $0xc8] sm:$0xff]
      %v619 = vld [vmem:[%s5 + $0xd0] sm:$0xff]
      %v620 = vld [vmem:[%s5 + $0xd8] sm:$0xff]
      %v621 = vld [vmem:[%s5 + $0xe0] sm:$0xff]
      %v622 = vld [vmem:[%s5 + $0xe8] sm:$0xff]
      %v623 = vld [vmem:[%s5 + $0xf0] sm:$0xff]
      %v624 = vld [vmem:[%s5 + $0xf8] sm:$0xff]
      %v625 = vld [vmem:[%s6] sm:$0x1]
      %v627 = vlaneseq
      %v628 = vshrl.u32 %v627, 7
      %v629 = vsub.s32 0, %v628
      %v630 = vrot.slane %v625, %v629
      %632 = vmatprep.subr.mxu0 0.0
      %633 = vmatpush1.msra.mxu0 %v593
      %634 = vmatprep.subr.mxu0 0.0
      %635 = vmatpush1.msra.mxu0 %v594
      %636 = vmatprep.subr.mxu0 0.0
      %637 = vmatpush1.msra.mxu0 %v595
      %638 = vmatprep.subr.mxu0 0.0
      %639 = vmatpush1.msra.mxu0 %v596
      %640 = vmatprep.subr.mxu0 0.0
      %641 = vmatpush1.msra.mxu0 %v597
      %642 = vmatprep.subr.mxu0 0.0
      %643 = vmatpush1.msra.mxu0 %v598
      %644 = vmatprep.subr.mxu0 0.0
      %645 = vmatpush1.msra.mxu0 %v599
      %646 = vmatprep.subr.mxu0 0.0
      %647 = vmatpush1.msra.mxu0 %v600
      %648 = vmatprep.subr.mxu0 0.0
      %649 = vmatpush1.msra.mxu0 %v601
      %650 = vmatprep.subr.mxu0 0.0
      %651 = vmatpush1.msra.mxu0 %v602
      %652 = vmatprep.subr.mxu0 0.0
      %653 = vmatpush1.msra.mxu0 %v603
      %654 = vmatprep.subr.mxu0 0.0
      %655 = vmatpush1.msra.mxu0 %v604
      %656 = vmatprep.subr.mxu0 0.0
      %657 = vmatpush1.msra.mxu0 %v605
      %658 = vmatprep.subr.mxu0 0.0
      %659 = vmatpush1.msra.mxu0 %v606
      %660 = vmatprep.subr.mxu0 0.0
      %661 = vmatpush1.msra.mxu0 %v607
      %662 = vmatprep.subr.mxu0 0.0
      %663 = vmatpush1.msra.mxu0 %v608
      %664 = vmatprep.subr.mxu0 0.0
      %665 = vmatpush1.msra.mxu0 %v609
      %666 = vmatprep.subr.mxu0 0.0
      %667 = vmatpush1.msra.mxu0 %v610
      %668 = vmatprep.subr.mxu0 0.0
      %669 = vmatpush1.msra.mxu0 %v611
      %670 = vmatprep.subr.mxu0 0.0
      %671 = vmatpush1.msra.mxu0 %v612
      %672 = vmatprep.subr.mxu0 0.0
      %673 = vmatpush1.msra.mxu0 %v613
      %674 = vmatprep.subr.mxu0 0.0
      %675 = vmatpush1.msra.mxu0 %v614
      %676 = vmatprep.subr.mxu0 0.0
      %677 = vmatpush1.msra.mxu0 %v615
      %678 = vmatprep.subr.mxu0 0.0
      %679 = vmatpush1.msra.mxu0 %v616
      %680 = vmatprep.subr.mxu0 0.0
      %681 = vmatpush1.msra.mxu0 %v617
      %682 = vmatprep.subr.mxu0 0.0
      %683 = vmatpush1.msra.mxu0 %v618
      %684 = vmatprep.subr.mxu0 0.0
      %685 = vmatpush1.msra.mxu0 %v619
      %686 = vmatprep.subr.mxu0 0.0
      %687 = vmatpush1.msra.mxu0 %v620
      %688 = vmatprep.subr.mxu0 0.0
      %689 = vmatpush1.msra.mxu0 %v621
      %690 = vmatprep.subr.mxu0 0.0
      %691 = vmatpush1.msra.mxu0 %v622
      %692 = vmatprep.subr.mxu0 0.0
      %693 = vmatpush1.msra.mxu0 %v623
      %694 = vmatprep.subr.mxu0 0.0
      %695 = vmatpush1.msra.mxu0 %v624
      %696 = vmatprep.mubr.f32.mxu0 %v592
      %697 = vmatmul.mubr.f32.gmra.mrb[0].mxu0 %v591
      %v698 = vpop.f32.mrb[0].mxu0
      %v699 = vadd.f32 %v630, %v698
      %v700 = vpop.f32.mrb[0].mxu0
      %701 = vdwg.mxu0
      %vm702 = vcmask 72704
      %703 = vst.msk [vmem:[%s307] sm:$0xff] %vm702, %v699
      %p704 = scmp.lt.s32.totalorder %s18, 1
      %s705 = scalar_select %p704, %s18, 1
      %s706 = smul.addr %s705, 8
      %s707 = scalar_lea.vmem %s7, %s706
      // Predicated region
      $region49: #{tmr_ner_forward.3} parent=47 // pred_check
        %p708 = pneg %p198
      $region50: #{tmr_ner_forward.3} parent=47 // pred_check_branch
        %710 = sbr.rel (%p708) target = $region52
      $region51: #{tmr_ner_forward.3} parent=47 // pred_region
        _
      $region52: #{tmr_ner_forward.3} parent=47 // pred_fallthru
        _
    $region48: #{tmr_ner_forward.3} parent=5 // pred_fallthru
      _
    %p711 = scmp.le.s32.totalorder 2, %s13
    // Predicated region
    $region53: #{tmr_ner_forward.3} parent=5 // pred_check
      %p712 = pneg %p711
    $region54: #{tmr_ner_forward.3} parent=5 // pred_check_branch
      %714 = sbr.rel (%p712) target = $region56
    $region55: #{tmr_ner_forward.3} parent=5 // pred_region
      %s715 = ssub.s32 %s13, 2
      // Predicated region
      $region57: #{tmr_ner_forward.3} parent=55 // pred_check
        %p716 = pneg %p204
      $region58: #{tmr_ner_forward.3} parent=55 // pred_check_branch
        %718 = sbr.rel (%p716) target = $region60
      $region59: #{tmr_ner_forward.3} parent=55 // pred_region
        %p719 = scmp.lt.s32.totalorder %s19, 1
        %s720 = scalar_select %p719, %s19, 1
        %s721 = smul.addr %s720, 8
        %s722 = scalar_lea.vmem %s7, %s721
      $region60: #{tmr_ner_forward.3} parent=55 // pred_fallthru
        _
    $region56: #{tmr_ner_forward.3} parent=5 // pred_fallthru
      _
  $region6: #{tmr_ner_forward.3} parent=0 // loop_footer
    %s17 = sadd.s32 1, %s13
  $region7: #{tmr_ner_forward.3} parent=0 // loop_footer_branch
    %12 = sbr.rel target = $region3
  $region8: #{tmr_ner_forward.3} parent=0 // loop_exit
    _

// kernel: tmr_ner_forward.2
$region0: #{tmr_ner_forward.2}
  #allocation0 [shape = 'u32[]', space=smem, size = 0x4, offset = 0x4, fixed_abs, tag = 'smem constant byte address 0x4 - core index']
  #allocation1 [shape = 'u32[144,128]{1,0:T(1,128)}', space=vmem, size = 0x12000, scoped, tag = 'internal scratch']
  %s0 = inlined_call_operand.vmem [shape: f32[2,104,128], index: 0, kind: input, shape index: {}]
  %s1 = inlined_call_operand.vmem [shape: f32[2,16,32], index: 1, kind: input, shape index: {}]
  %s2 = inlined_call_operand.vmem [shape: f32[2,2,104], index: 2, kind: input, shape index: {}]
  %s3 = inlined_call_operand.vmem [shape: f32[104,1], index: 3, kind: input, shape index: {}]
  %s4 = inlined_call_operand.vmem [shape: f32[16,1], index: 4, kind: input, shape index: {}]
  %s5 = inlined_call_operand.vmem [shape: f32[104,16], index: 5, kind: input, shape index: {}]
  %s6 = inlined_call_operand.vmem [shape: f32[128,32], index: 6, kind: input, shape index: {}]
  %s7 = inlined_call_operand.vmem [shape: f32[1,32], index: 7, kind: input, shape index: {}]
  %s8 = inlined_call_operand.vmem [shape: f32[6,32,32], index: 8, kind: input, shape index: {}]
  %s9 = inlined_call_operand.vmem [shape: f32[6,1,32], index: 9, kind: input, shape index: {}]
  %s10 = inlined_call_operand.vmem [shape: f32[32,512], index: 10, kind: input, shape index: {}]
  %s11 = inlined_call_operand.vmem [shape: f32[1,512], index: 11, kind: input, shape index: {}]
  %s12 = inlined_call_operand.vmem [shape: f32[2,2,512], index: 12, kind: output, shape index: {}]
  %s13 = sld [smem:[#allocation0]]
  $region81: #{tmr_ner_forward.2} parent=0
    _
  %s15 = ssub.s32 1, %s13
  %s16 = scalar_select 0, %s15, %s13
  loop: start=0, step=1, limit=4
  $region2: #{tmr_ner_forward.2} parent=0 // loop_pre_header
    _
  $region3: #{tmr_ner_forward.2} parent=0 // loop_header
    %s18 = sphi 0, %s22
    %p19 = scmp.ge.s32.totalorder %s18, 4
    %s28 = sphi 0, %s30
    %s31 = sphi 0, %s28
    %s32 = sphi 0, %s31
    %s48 = sphi 0, %s32
    %s54 = sphi 0, %s56
    %s57 = sphi 0, %s54
    %s58 = sphi 0, %s57
    %s74 = sphi 0, %s58
    %s80 = sphi 0, %s82
    %s83 = sphi 0, %s80
    %s84 = sphi 0, %s83
    %s100 = sphi 0, %s84
    %s104 = sphi 0, %s104
    %s106 = sphi 0, %s104
    %s107 = sphi 0, %s106
    %s121 = sphi 0, %s107
    %s125 = sphi 0, %s125
    %s127 = sphi 0, %s125
    %s128 = sphi 0, %s127
    %s142 = sphi 0, %s128
    %s146 = sphi 0, %s146
    %s148 = sphi 0, %s146
    %s149 = sphi 0, %s148
    %s163 = sphi 0, %s149
    %s167 = sphi 0, %s167
    %s169 = sphi 0, %s167
    %s170 = sphi 0, %s169
    %s184 = sphi 0, %s170
    %s188 = sphi 0, %s188
    %s190 = sphi 0, %s188
    %s191 = sphi 0, %s190
    %s205 = sphi 0, %s191
    %s209 = sphi 0, %s209
    %s211 = sphi 0, %s209
    %s212 = sphi 0, %s211
    %s226 = sphi 0, %s212
    %s230 = sphi 0, %s230
    %s232 = sphi 0, %s230
    %s233 = sphi 0, %s232
    %s247 = sphi 0, %s233
    %s251 = sphi 0, %s251
    %s253 = sphi 0, %s251
    %s254 = sphi 0, %s253
    %s268 = sphi 0, %s254
    %s272 = sphi 0, %s272
    %s274 = sphi 0, %s272
    %s275 = sphi 0, %s274
    %s289 = sphi 0, %s275
    %s295 = sphi 0, %s297
    %s298 = sphi 0, %s295
    %s299 = sphi 0, %s298
    %s315 = sphi 0, %s299
  $region4: #{tmr_ner_forward.2} parent=0 // loop_header_branch
    %21 = sbr.rel (%p19) target = $region8
  $region5: #{tmr_ner_forward.2} parent=0 // loop_body
    %s23 = ssub.s32 %s18, 1
    %s24 = ssub.s32 %s18, 2
    %s25 = sadd.s32 %s18, 1
    %s26 = ssub.s32 %s18, %s25
    %p27 = scmp.eq.s32.totalorder %s26, 0
    %s29 = sadd.s32 %s28, 1
    %s30 = scalar_select %p27, %s28, %s29
    %p33 = pneg %p27
    %p34 = scmp.eq.s32.totalorder %s18, 1
    %p35 = por %p33, %p34
    %p36 = scmp.ne.s32.totalorder %s28, %s31
    %p37 = scmp.eq.s32.totalorder %s18, 0
    %p38 = por %p36, %p37
    %p39 = scmp.ne.s32.totalorder %s28, %s31
    %p40 = scmp.eq.s32.totalorder %s23, 1
    %p41 = por %p39, %p40
    %p42 = scmp.ne.s32.totalorder %s31, %s32
    %p43 = scmp.eq.s32.totalorder %s23, 0
    %p44 = por %p42, %p43
    %p45 = scmp.ne.s32.totalorder %s31, %s32
    %p46 = scmp.eq.s32.totalorder %s24, 1
    %p47 = por %p45, %p46
    %p49 = scmp.ne.s32.totalorder %s32, %s48
    %p50 = scmp.eq.s32.totalorder %s24, 0
    %p51 = por %p49, %p50
    %s52 = ssub.s32 %s18, %s25
    %p53 = scmp.eq.s32.totalorder %s52, 0
    %s55 = sadd.s32 %s54, 1
    %s56 = scalar_select %p53, %s54, %s55
    %p59 = pneg %p53
    %p60 = scmp.eq.s32.totalorder %s18, 1
    %p61 = por %p59, %p60
    %p62 = scmp.ne.s32.totalorder %s54, %s57
    %p63 = scmp.eq.s32.totalorder %s18, 0
    %p64 = por %p62, %p63
    %p65 = scmp.ne.s32.totalorder %s54, %s57
    %p66 = scmp.eq.s32.totalorder %s23, 1
    %p67 = por %p65, %p66
    %p68 = scmp.ne.s32.totalorder %s57, %s58
    %p69 = scmp.eq.s32.totalorder %s23, 0
    %p70 = por %p68, %p69
    %p71 = scmp.ne.s32.totalorder %s57, %s58
    %p72 = scmp.eq.s32.totalorder %s24, 1
    %p73 = por %p71, %p72
    %p75 = scmp.ne.s32.totalorder %s58, %s74
    %p76 = scmp.eq.s32.totalorder %s24, 0
    %p77 = por %p75, %p76
    %s78 = ssub.s32 %s18, %s25
    %p79 = scmp.eq.s32.totalorder %s78, 0
    %s81 = sadd.s32 %s80, 1
    %s82 = scalar_select %p79, %s80, %s81
    %p85 = pneg %p79
    %p86 = scmp.eq.s32.totalorder %s18, 1
    %p87 = por %p85, %p86
    %p88 = scmp.ne.s32.totalorder %s80, %s83
    %p89 = scmp.eq.s32.totalorder %s18, 0
    %p90 = por %p88, %p89
    %p91 = scmp.ne.s32.totalorder %s80, %s83
    %p92 = scmp.eq.s32.totalorder %s23, 1
    %p93 = por %p91, %p92
    %p94 = scmp.ne.s32.totalorder %s83, %s84
    %p95 = scmp.eq.s32.totalorder %s23, 0
    %p96 = por %p94, %p95
    %p97 = scmp.ne.s32.totalorder %s83, %s84
    %p98 = scmp.eq.s32.totalorder %s24, 1
    %p99 = por %p97, %p98
    %p101 = scmp.ne.s32.totalorder %s84, %s100
    %p102 = scmp.eq.s32.totalorder %s24, 0
    %p103 = por %p101, %p102
    %s105 = sadd.s32 %s104, 1
    %p108 = scmp.eq.s32.totalorder %s18, 1
    %p109 = scmp.ne.s32.totalorder %s104, %s106
    %p110 = scmp.eq.s32.totalorder %s18, 0
    %p111 = por %p109, %p110
    %p112 = scmp.ne.s32.totalorder %s104, %s106
    %p113 = scmp.eq.s32.totalorder %s23, 1
    %p114 = por %p112, %p113
    %p115 = scmp.ne.s32.totalorder %s106, %s107
    %p116 = scmp.eq.s32.totalorder %s23, 0
    %p117 = por %p115, %p116
    %p118 = scmp.ne.s32.totalorder %s106, %s107
    %p119 = scmp.eq.s32.totalorder %s24, 1
    %p120 = por %p118, %p119
    %p122 = scmp.ne.s32.totalorder %s107, %s121
    %p123 = scmp.eq.s32.totalorder %s24, 0
    %p124 = por %p122, %p123
    %s126 = sadd.s32 %s125, 1
    %p129 = scmp.eq.s32.totalorder %s18, 1
    %p130 = scmp.ne.s32.totalorder %s125, %s127
    %p131 = scmp.eq.s32.totalorder %s18, 0
    %p132 = por %p130, %p131
    %p133 = scmp.ne.s32.totalorder %s125, %s127
    %p134 = scmp.eq.s32.totalorder %s23, 1
    %p135 = por %p133, %p134
    %p136 = scmp.ne.s32.totalorder %s127, %s128
    %p137 = scmp.eq.s32.totalorder %s23, 0
    %p138 = por %p136, %p137
    %p139 = scmp.ne.s32.totalorder %s127, %s128
    %p140 = scmp.eq.s32.totalorder %s24, 1
    %p141 = por %p139, %p140
    %p143 = scmp.ne.s32.totalorder %s128, %s142
    %p144 = scmp.eq.s32.totalorder %s24, 0
    %p145 = por %p143, %p144
    %s147 = sadd.s32 %s146, 1
    %p150 = scmp.eq.s32.totalorder %s18, 1
    %p151 = scmp.ne.s32.totalorder %s146, %s148
    %p152 = scmp.eq.s32.totalorder %s18, 0
    %p153 = por %p151, %p152
    %p154 = scmp.ne.s32.totalorder %s146, %s148
    %p155 = scmp.eq.s32.totalorder %s23, 1
    %p156 = por %p154, %p155
    %p157 = scmp.ne.s32.totalorder %s148, %s149
    %p158 = scmp.eq.s32.totalorder %s23, 0
    %p159 = por %p157, %p158
    %p160 = scmp.ne.s32.totalorder %s148, %s149
    %p161 = scmp.eq.s32.totalorder %s24, 1
    %p162 = por %p160, %p161
    %p164 = scmp.ne.s32.totalorder %s149, %s163
    %p165 = scmp.eq.s32.totalorder %s24, 0
    %p166 = por %p164, %p165
    %s168 = sadd.s32 %s167, 1
    %p171 = scmp.eq.s32.totalorder %s18, 1
    %p172 = scmp.ne.s32.totalorder %s167, %s169
    %p173 = scmp.eq.s32.totalorder %s18, 0
    %p174 = por %p172, %p173
    %p175 = scmp.ne.s32.totalorder %s167, %s169
    %p176 = scmp.eq.s32.totalorder %s23, 1
    %p177 = por %p175, %p176
    %p178 = scmp.ne.s32.totalorder %s169, %s170
    %p179 = scmp.eq.s32.totalorder %s23, 0
    %p180 = por %p178, %p179
    %p181 = scmp.ne.s32.totalorder %s169, %s170
    %p182 = scmp.eq.s32.totalorder %s24, 1
    %p183 = por %p181, %p182
    %p185 = scmp.ne.s32.totalorder %s170, %s184
    %p186 = scmp.eq.s32.totalorder %s24, 0
    %p187 = por %p185, %p186
    %s189 = sadd.s32 %s188, 1
    %p192 = scmp.eq.s32.totalorder %s18, 1
    %p193 = scmp.ne.s32.totalorder %s188, %s190
    %p194 = scmp.eq.s32.totalorder %s18, 0
    %p195 = por %p193, %p194
    %p196 = scmp.ne.s32.totalorder %s188, %s190
    %p197 = scmp.eq.s32.totalorder %s23, 1
    %p198 = por %p196, %p197
    %p199 = scmp.ne.s32.totalorder %s190, %s191
    %p200 = scmp.eq.s32.totalorder %s23, 0
    %p201 = por %p199, %p200
    %p202 = scmp.ne.s32.totalorder %s190, %s191
    %p203 = scmp.eq.s32.totalorder %s24, 1
    %p204 = por %p202, %p203
    %p206 = scmp.ne.s32.totalorder %s191, %s205
    %p207 = scmp.eq.s32.totalorder %s24, 0
    %p208 = por %p206, %p207
    %s210 = sadd.s32 %s209, 1
    %p213 = scmp.eq.s32.totalorder %s18, 1
    %p214 = scmp.ne.s32.totalorder %s209, %s211
    %p215 = scmp.eq.s32.totalorder %s18, 0
    %p216 = por %p214, %p215
    %p217 = scmp.ne.s32.totalorder %s209, %s211
    %p218 = scmp.eq.s32.totalorder %s23, 1
    %p219 = por %p217, %p218
    %p220 = scmp.ne.s32.totalorder %s211, %s212
    %p221 = scmp.eq.s32.totalorder %s23, 0
    %p222 = por %p220, %p221
    %p223 = scmp.ne.s32.totalorder %s211, %s212
    %p224 = scmp.eq.s32.totalorder %s24, 1
    %p225 = por %p223, %p224
    %p227 = scmp.ne.s32.totalorder %s212, %s226
    %p228 = scmp.eq.s32.totalorder %s24, 0
    %p229 = por %p227, %p228
    %s231 = sadd.s32 %s230, 1
    %p234 = scmp.eq.s32.totalorder %s18, 1
    %p235 = scmp.ne.s32.totalorder %s230, %s232
    %p236 = scmp.eq.s32.totalorder %s18, 0
    %p237 = por %p235, %p236
    %p238 = scmp.ne.s32.totalorder %s230, %s232
    %p239 = scmp.eq.s32.totalorder %s23, 1
    %p240 = por %p238, %p239
    %p241 = scmp.ne.s32.totalorder %s232, %s233
    %p242 = scmp.eq.s32.totalorder %s23, 0
    %p243 = por %p241, %p242
    %p244 = scmp.ne.s32.totalorder %s232, %s233
    %p245 = scmp.eq.s32.totalorder %s24, 1
    %p246 = por %p244, %p245
    %p248 = scmp.ne.s32.totalorder %s233, %s247
    %p249 = scmp.eq.s32.totalorder %s24, 0
    %p250 = por %p248, %p249
    %s252 = sadd.s32 %s251, 1
    %p255 = scmp.eq.s32.totalorder %s18, 1
    %p256 = scmp.ne.s32.totalorder %s251, %s253
    %p257 = scmp.eq.s32.totalorder %s18, 0
    %p258 = por %p256, %p257
    %p259 = scmp.ne.s32.totalorder %s251, %s253
    %p260 = scmp.eq.s32.totalorder %s23, 1
    %p261 = por %p259, %p260
    %p262 = scmp.ne.s32.totalorder %s253, %s254
    %p263 = scmp.eq.s32.totalorder %s23, 0
    %p264 = por %p262, %p263
    %p265 = scmp.ne.s32.totalorder %s253, %s254
    %p266 = scmp.eq.s32.totalorder %s24, 1
    %p267 = por %p265, %p266
    %p269 = scmp.ne.s32.totalorder %s254, %s268
    %p270 = scmp.eq.s32.totalorder %s24, 0
    %p271 = por %p269, %p270
    %s273 = sadd.s32 %s272, 1
    %p276 = scmp.eq.s32.totalorder %s18, 1
    %p277 = scmp.ne.s32.totalorder %s272, %s274
    %p278 = scmp.eq.s32.totalorder %s18, 0
    %p279 = por %p277, %p278
    %p280 = scmp.ne.s32.totalorder %s272, %s274
    %p281 = scmp.eq.s32.totalorder %s23, 1
    %p282 = por %p280, %p281
    %p283 = scmp.ne.s32.totalorder %s274, %s275
    %p284 = scmp.eq.s32.totalorder %s23, 0
    %p285 = por %p283, %p284
    %p286 = scmp.ne.s32.totalorder %s274, %s275
    %p287 = scmp.eq.s32.totalorder %s24, 1
    %p288 = por %p286, %p287
    %p290 = scmp.ne.s32.totalorder %s275, %s289
    %p291 = scmp.eq.s32.totalorder %s24, 0
    %p292 = por %p290, %p291
    %s293 = ssub.s32 %s18, %s25
    %p294 = scmp.eq.s32.totalorder %s293, 0
    %s296 = sadd.s32 %s295, 1
    %s297 = scalar_select %p294, %s295, %s296
    %p300 = pneg %p294
    %p301 = scmp.eq.s32.totalorder %s18, 1
    %p302 = por %p300, %p301
    %p303 = scmp.ne.s32.totalorder %s295, %s298
    %p304 = scmp.eq.s32.totalorder %s18, 0
    %p305 = por %p303, %p304
    %p306 = scmp.ne.s32.totalorder %s295, %s298
    %p307 = scmp.eq.s32.totalorder %s23, 1
    %p308 = por %p306, %p307
    %p309 = scmp.ne.s32.totalorder %s298, %s299
    %p310 = scmp.eq.s32.totalorder %s23, 0
    %p311 = por %p309, %p310
    %p312 = scmp.ne.s32.totalorder %s298, %s299
    %p313 = scmp.eq.s32.totalorder %s24, 1
    %p314 = por %p312, %p313
    %p316 = scmp.ne.s32.totalorder %s299, %s315
    %p317 = scmp.eq.s32.totalorder %s24, 0
    %p318 = por %p316, %p317
    %p319 = scmp.le.s32.totalorder 1, %s18
    %p320 = scmp.lt.s32.totalorder %s18, 3
    %p321 = pnand %p319, %p320
    %p322 = pneg %p321
    // Predicated region
    $region9: #{tmr_ner_forward.2} parent=5 // pred_check
      _
    $region10: #{tmr_ner_forward.2} parent=5 // pred_check_branch
      %324 = sbr.rel (%p321) target = $region12
    $region11: #{tmr_ner_forward.2} parent=5 // pred_region
      %s325 = ssub.s32 %s18, 1
      // Predicated region
      $region13: #{tmr_ner_forward.2} parent=11 // pred_check
        %p326 = pneg %p117
      $region14: #{tmr_ner_forward.2} parent=11 // pred_check_branch
        %328 = sbr.rel (%p326) target = $region16
      $region15: #{tmr_ner_forward.2} parent=11 // pred_region
        _
      $region16: #{tmr_ner_forward.2} parent=11 // pred_fallthru
        _
      // Predicated region
      $region17: #{tmr_ner_forward.2} parent=11 // pred_check
        %p329 = pneg %p138
      $region18: #{tmr_ner_forward.2} parent=11 // pred_check_branch
        %331 = sbr.rel (%p329) target = $region20
      $region19: #{tmr_ner_forward.2} parent=11 // pred_region
        _
      $region20: #{tmr_ner_forward.2} parent=11 // pred_fallthru
        _
      // Predicated region
      $region21: #{tmr_ner_forward.2} parent=11 // pred_check
        %p332 = pneg %p159
      $region22: #{tmr_ner_forward.2} parent=11 // pred_check_branch
        %334 = sbr.rel (%p332) target = $region24
      $region23: #{tmr_ner_forward.2} parent=11 // pred_region
        _
      $region24: #{tmr_ner_forward.2} parent=11 // pred_fallthru
        _
      // Predicated region
      $region25: #{tmr_ner_forward.2} parent=11 // pred_check
        %p335 = pneg %p180
      $region26: #{tmr_ner_forward.2} parent=11 // pred_check_branch
        %337 = sbr.rel (%p335) target = $region28
      $region27: #{tmr_ner_forward.2} parent=11 // pred_region
        _
      $region28: #{tmr_ner_forward.2} parent=11 // pred_fallthru
        _
      // Predicated region
      $region29: #{tmr_ner_forward.2} parent=11 // pred_check
        %p338 = pneg %p201
      $region30: #{tmr_ner_forward.2} parent=11 // pred_check_branch
        %340 = sbr.rel (%p338) target = $region32
      $region31: #{tmr_ner_forward.2} parent=11 // pred_region
        _
      $region32: #{tmr_ner_forward.2} parent=11 // pred_fallthru
        _
      // Predicated region
      $region33: #{tmr_ner_forward.2} parent=11 // pred_check
        %p341 = pneg %p222
      $region34: #{tmr_ner_forward.2} parent=11 // pred_check_branch
        %343 = sbr.rel (%p341) target = $region36
      $region35: #{tmr_ner_forward.2} parent=11 // pred_region
        _
      $region36: #{tmr_ner_forward.2} parent=11 // pred_fallthru
        _
      // Predicated region
      $region37: #{tmr_ner_forward.2} parent=11 // pred_check
        %p344 = pneg %p243
      $region38: #{tmr_ner_forward.2} parent=11 // pred_check_branch
        %346 = sbr.rel (%p344) target = $region40
      $region39: #{tmr_ner_forward.2} parent=11 // pred_region
        _
      $region40: #{tmr_ner_forward.2} parent=11 // pred_fallthru
        _
      // Predicated region
      $region41: #{tmr_ner_forward.2} parent=11 // pred_check
        %p347 = pneg %p264
      $region42: #{tmr_ner_forward.2} parent=11 // pred_check_branch
        %349 = sbr.rel (%p347) target = $region44
      $region43: #{tmr_ner_forward.2} parent=11 // pred_region
        _
      $region44: #{tmr_ner_forward.2} parent=11 // pred_fallthru
        _
      // Predicated region
      $region45: #{tmr_ner_forward.2} parent=11 // pred_check
        %p350 = pneg %p285
      $region46: #{tmr_ner_forward.2} parent=11 // pred_check_branch
        %352 = sbr.rel (%p350) target = $region48
      $region47: #{tmr_ner_forward.2} parent=11 // pred_region
        _
      $region48: #{tmr_ner_forward.2} parent=11 // pred_fallthru
        _
    $region12: #{tmr_ner_forward.2} parent=5 // pred_fallthru
      _
    %p353 = scmp.lt.s32.totalorder %s18, 2
    // Predicated region
    $region49: #{tmr_ner_forward.2} parent=5 // pred_check
      %p354 = pneg %p353
    $region50: #{tmr_ner_forward.2} parent=5 // pred_check_branch
      %356 = sbr.rel (%p354) target = $region52
    $region51: #{tmr_ner_forward.2} parent=5 // pred_region
      // Predicated region
      $region53: #{tmr_ner_forward.2} parent=51 // pred_check
        %p357 = pneg %p38
      $region54: #{tmr_ner_forward.2} parent=51 // pred_check_branch
        %359 = sbr.rel (%p357) target = $region56
      $region55: #{tmr_ner_forward.2} parent=51 // pred_region
        %p360 = scmp.lt.s32.totalorder %s18, 1
        %s361 = scalar_select %p360, %s18, 1
        %s362 = smul.addr %s361, 13
        %s363 = smul.addr %s362, 8
        %s364 = scalar_lea.vmem %s0, %s363
      $region56: #{tmr_ner_forward.2} parent=51 // pred_fallthru
        _
      // Predicated region
      $region57: #{tmr_ner_forward.2} parent=51 // pred_check
        %p365 = pneg %p64
      $region58: #{tmr_ner_forward.2} parent=51 // pred_check_branch
        %367 = sbr.rel (%p365) target = $region60
      $region59: #{tmr_ner_forward.2} parent=51 // pred_region
        %p368 = scmp.lt.s32.totalorder %s18, 1
        %s369 = scalar_select %p368, %s18, 1
        %s370 = smul.addr %s369, 2
        %s371 = smul.addr %s370, 8
        %s372 = scalar_lea.vmem %s1, %s371
      $region60: #{tmr_ner_forward.2} parent=51 // pred_fallthru
        _
      // Predicated region
      $region61: #{tmr_ner_forward.2} parent=51 // pred_check
        %p373 = pneg %p90
      $region62: #{tmr_ner_forward.2} parent=51 // pred_check_branch
        %375 = sbr.rel (%p373) target = $region64
      $region63: #{tmr_ner_forward.2} parent=51 // pred_region
        %p376 = scmp.lt.s32.totalorder %s18, 1
        %s377 = scalar_select %p376, %s18, 1
        %s378 = smul.addr %s377, 2
        %s379 = scalar_lea.vmem %s2, %s378
      $region64: #{tmr_ner_forward.2} parent=51 // pred_fallthru
        _
    $region52: #{tmr_ner_forward.2} parent=5 // pred_fallthru
      _
    %p380 = scmp.le.s32.totalorder 1, %s18
    %p381 = scmp.lt.s32.totalorder %s18, 3
    %p382 = pnand %p380, %p381
    %p383 = pneg %p382
    // Predicated region
    $region65: #{tmr_ner_forward.2} parent=5 // pred_check
      _
    $region66: #{tmr_ner_forward.2} parent=5 // pred_check_branch
      %385 = sbr.rel (%p382) target = $region68
    $region67: #{tmr_ner_forward.2} parent=5 // pred_region
      %s386 = ssub.s32 %s18, 1
      %p387 = scmp.lt.s32.totalorder %s23, 1
      %s388 = scalar_select %p387, %s23, 1
      %s389 = smul.addr %s388, 13
      %s390 = smul.addr %s389, 8
      %s391 = scalar_lea.vmem %s0, %s390
      %p392 = pneg %p44
      %p393 = pneg %p41
      %p394 = scmp.lt.s32.totalorder %s23, 1
      %s395 = scalar_select %p394, %s23, 1
      %s396 = smul.addr %s395, 2
      %s397 = smul.addr %s396, 8
      %s398 = scalar_lea.vmem %s1, %s397
      %p399 = pneg %p70
      %p400 = pneg %p67
      %p401 = scmp.lt.s32.totalorder %s23, 1
      %s402 = scalar_select %p401, %s23, 1
      %s403 = smul.addr %s402, 2
      %s404 = scalar_lea.vmem %s2, %s403
      %p405 = pneg %p96
      %p406 = pneg %p93
      %p407 = pneg %p117
      %p408 = pneg %p114
      %p409 = pneg %p138
      %p410 = pneg %p135
      %p411 = pneg %p159
      %p412 = pneg %p156
      %p413 = pneg %p180
      %p414 = pneg %p177
      %p415 = pneg %p201
      %p416 = pneg %p198
      %p417 = pneg %p222
      %p418 = pneg %p219
      %p419 = pneg %p243
      %p420 = pneg %p240
      %p421 = pneg %p264
      %p422 = pneg %p261
      %p423 = pneg %p285
      %p424 = pneg %p282
      %p425 = pneg %p311
      %p426 = pneg %p308
      %p427 = scmp.lt.s32.totalorder %s23, 1
      %s428 = scalar_select %p427, %s23, 1
      %s429 = smul.addr %s428, 4
      %s430 = smul.addr %s429, 2
      %s431 = scalar_lea.vmem %s12, %s430
      %p432 = scmp.lt.s32.totalorder %s23, 1
      %s433 = scalar_select %p432, %s23, 1
      %s434 = smul.addr %s433, 13
      %s435 = smul.addr %s434, 8
      %s436 = scalar_lea.vmem %s0, %s435
      %p437 = scmp.lt.s32.totalorder %s23, 1
      %s438 = scalar_select %p437, %s23, 1
      %s439 = smul.addr %s438, 2
      %s440 = smul.addr %s439, 8
      %s441 = scalar_lea.vmem %s1, %s440
      %p442 = scmp.lt.s32.totalorder %s23, 1
      %s443 = scalar_select %p442, %s23, 1
      %s444 = smul.addr %s443, 2
      %s445 = scalar_lea.vmem %s2, %s444
      %p446 = scmp.lt.s32.totalorder %s23, 1
      %s447 = scalar_select %p446, %s23, 1
      %s448 = smul.addr %s447, 4
      %s449 = smul.addr %s448, 2
      %s450 = scalar_lea.vmem %s12, %s449
      %v451 = vld [vmem:[%s436] sm:$0xff]
      %v452 = vld [vmem:[%s436 + $0x8] sm:$0xff]
      %v453 = vld [vmem:[%s436 + $0x10] sm:$0xff]
      %v454 = vld [vmem:[%s436 + $0x18] sm:$0xff]
      %v455 = vld [vmem:[%s436 + $0x20] sm:$0xff]
      %v456 = vld [vmem:[%s436 + $0x28] sm:$0xff]
      %v457 = vld [vmem:[%s436 + $0x30] sm:$0xff]
      %v458 = vld [vmem:[%s436 + $0x38] sm:$0xff]
      %v459 = vld [vmem:[%s436 + $0x40] sm:$0xff]
      %v460 = vld [vmem:[%s436 + $0x48] sm:$0xff]
      %v461 = vld [vmem:[%s436 + $0x50] sm:$0xff]
      %v462 = vld [vmem:[%s436 + $0x58] sm:$0xff]
      %v463 = vld [vmem:[%s436 + $0x60] sm:$0xff]
      %v464 = vld [vmem:[%s441] sm:$0xff]
      %v465 = vld [vmem:[%s441 + $0x8] sm:$0xff]
      %v466 = vld [vmem:[%s445] sm:$0x3]
      %v467 = vld [vmem:[%s3] sm:$0xff]
      %v468 = vld [vmem:[%s3 + $0x8] sm:$0xff]
      %v469 = vld [vmem:[%s3 + $0x10] sm:$0xff]
      %v470 = vld [vmem:[%s3 + $0x18] sm:$0xff]
      %v471 = vld [vmem:[%s3 + $0x20] sm:$0xff]
      %v472 = vld [vmem:[%s3 + $0x28] sm:$0xff]
      %v473 = vld [vmem:[%s3 + $0x30] sm:$0xff]
      %v474 = vld [vmem:[%s3 + $0x38] sm:$0xff]
      %v475 = vld [vmem:[%s3 + $0x40] sm:$0xff]
      %v476 = vld [vmem:[%s3 + $0x48] sm:$0xff]
      %v477 = vld [vmem:[%s3 + $0x50] sm:$0xff]
      %v478 = vld [vmem:[%s3 + $0x58] sm:$0xff]
      %v479 = vld [vmem:[%s3 + $0x60] sm:$0xff]
      %v480 = vld [vmem:[%s4] sm:$0xff]
      %v481 = vld [vmem:[%s4 + $0x8] sm:$0xff]
      %v482 = vld [vmem:[%s5] sm:$0xff]
      %v483 = vld [vmem:[%s5 + $0x8] sm:$0xff]
      %v484 = vld [vmem:[%s5 + $0x10] sm:$0xff]
      %v485 = vld [vmem:[%s5 + $0x18] sm:$0xff]
      %v486 = vld [vmem:[%s5 + $0x20] sm:$0xff]
      %v487 = vld [vmem:[%s5 + $0x28] sm:$0xff]
      %v488 = vld [vmem:[%s5 + $0x30] sm:$0xff]
      %v489 = vld [vmem:[%s5 + $0x38] sm:$0xff]
      %v490 = vld [vmem:[%s5 + $0x40] sm:$0xff]
      %v491 = vld [vmem:[%s5 + $0x48] sm:$0xff]
      %v492 = vld [vmem:[%s5 + $0x50] sm:$0xff]
      %v493 = vld [vmem:[%s5 + $0x58] sm:$0xff]
      %v494 = vld [vmem:[%s5 + $0x60] sm:$0xff]
      %v495 = vld [vmem:[%s6] sm:$0xff]
      %v496 = vld [vmem:[%s6 + $0x8] sm:$0xff]
      %v497 = vld [vmem:[%s6 + $0x10] sm:$0xff]
      %v498 = vld [vmem:[%s6 + $0x18] sm:$0xff]
      %v499 = vld [vmem:[%s6 + $0x20] sm:$0xff]
      %v500 = vld [vmem:[%s6 + $0x28] sm:$0xff]
      %v501 = vld [vmem:[%s6 + $0x30] sm:$0xff]
      %v502 = vld [vmem:[%s6 + $0x38] sm:$0xff]
      %v503 = vld [vmem:[%s6 + $0x40] sm:$0xff]
      %v504 = vld [vmem:[%s6 + $0x48] sm:$0xff]
      %v505 = vld [vmem:[%s6 + $0x50] sm:$0xff]
      %v506 = vld [vmem:[%s6 + $0x58] sm:$0xff]
      %v507 = vld [vmem:[%s6 + $0x60] sm:$0xff]
      %v508 = vld [vmem:[%s6 + $0x68] sm:$0xff]
      %v509 = vld [vmem:[%s6 + $0x70] sm:$0xff]
      %v510 = vld [vmem:[%s6 + $0x78] sm:$0xff]
      %v511 = vld [vmem:[%s7] sm:$0x1]
      %v513 = vlaneseq
      %v514 = vshrl.u32 %v513, 7
      %v515 = vsub.s32 0, %v514
      %v516 = vrot.slane %v511, %v515
      %518 = vmatprep.subr.mxu0 0.0
      %519 = vmatpush1.msra.mxu0 %v495
      %520 = vmatprep.subr.mxu0 0.0
      %521 = vmatpush1.msra.mxu0 %v496
      %522 = vmatprep.subr.mxu0 0.0
      %523 = vmatpush1.msra.mxu0 %v497
      %524 = vmatprep.subr.mxu0 0.0
      %525 = vmatpush1.msra.mxu0 %v498
      %526 = vmatprep.subr.mxu0 0.0
      %527 = vmatpush1.msra.mxu0 %v499
      %528 = vmatprep.subr.mxu0 0.0
      %529 = vmatpush1.msra.mxu0 %v500
      %530 = vmatprep.subr.mxu0 0.0
      %531 = vmatpush1.msra.mxu0 %v501
      %532 = vmatprep.subr.mxu0 0.0
      %533 = vmatpush1.msra.mxu0 %v502
      %534 = vmatprep.subr.mxu0 0.0
      %535 = vmatpush1.msra.mxu0 %v503
      %536 = vmatprep.subr.mxu0 0.0
      %537 = vmatpush1.msra.mxu0 %v504
      %538 = vmatprep.subr.mxu0 0.0
      %539 = vmatpush1.msra.mxu0 %v505
      %540 = vmatprep.subr.mxu0 0.0
      %541 = vmatpush1.msra.mxu0 %v506
      %542 = vmatprep.subr.mxu0 0.0
      %543 = vmatpush1.msra.mxu0 %v507
      %544 = vmatprep.subr.mxu0 0.0
      %545 = vmatpush1.msra.mxu0 %v508
      %546 = vmatprep.subr.mxu0 0.0
      %547 = vmatpush1.msra.mxu0 %v509
      %548 = vmatprep.subr.mxu0 0.0
      %549 = vmatpush1.msra.mxu0 %v510
      %550 = vmatprep.subr.mxu0 0.0
      %551 = vmatpush1.msra.mxu0 0.0
      %552 = vmatprep.subr.mxu0 0.0
      %553 = vmatpush1.msra.mxu0 0.0
      %554 = vmatprep.subr.mxu0 0.0
      %555 = vmatpush1.msra.mxu0 0.0
      %556 = vmatprep.subr.mxu0 0.0
      %557 = vmatpush1.msra.mxu0 0.0
      %558 = vmatprep.subr.mxu0 0.0
      %559 = vmatpush1.msra.mxu0 0.0
      %560 = vmatprep.subr.mxu0 0.0
      %561 = vmatpush1.msra.mxu0 0.0
      %562 = vmatprep.subr.mxu0 0.0
      %563 = vmatpush1.msra.mxu0 0.0
      %564 = vmatprep.subr.mxu0 0.0
      %565 = vmatpush1.msra.mxu0 0.0
      %566 = vmatprep.subr.mxu0 0.0
      %567 = vmatpush1.msra.mxu0 0.0
      %568 = vmatprep.subr.mxu0 0.0
      %569 = vmatpush1.msra.mxu0 0.0
      %570 = vmatprep.subr.mxu0 0.0
      %571 = vmatpush1.msra.mxu0 0.0
      %572 = vmatprep.subr.mxu0 0.0
      %573 = vmatpush1.msra.mxu0 0.0
      %574 = vmatprep.subr.mxu0 0.0
      %575 = vmatpush1.msra.mxu0 0.0
      %576 = vmatprep.subr.mxu0 0.0
      %577 = vmatpush1.msra.mxu0 0.0
      %578 = vmatprep.subr.mxu0 0.0
      %579 = vmatpush1.msra.mxu0 0.0
      %580 = vmatprep.subr.mxu0 0.0
      %581 = vmatpush1.msra.mxu0 0.0
      %582 = vmatprep.mubr.f32.mxu0 0.0
      %583 = vmatmul.mubr.f32.gmra.mrb[0].mxu0 %v451
      %v584 = vpop.f32.mrb[0].mxu0
      %v585 = vadd.f32 %v516, %v584
      %v586 = vpop.f32.mrb[0].mxu0
      %587 = vmatprep.mubr.f32.mxu0 0.0
      %588 = vmatmul.mubr.f32.gmra.mrb[0].mxu0 %v452
      %v589 = vpop.f32.mrb[0].mxu0
      %v590 = vadd.f32 %v516, %v589
      %v591 = vpop.f32.mrb[0].mxu0
      %592 = vmatprep.mubr.f32.mxu0 0.0
      %593 = vmatmul.mubr.f32.gmra.mrb[0].mxu0 %v453
      %v594 = vpop.f32.mrb[0].mxu0
      %v595 = vadd.f32 %v516, %v594
      %v596 = vpop.f32.mrb[0].mxu0
      %597 = vmatprep.mubr.f32.mxu0 0.0
      %598 = vmatmul.mubr.f32.gmra.mrb[0].mxu0 %v454
      %v599 = vpop.f32.mrb[0].mxu0
      %v600 = vadd.f32 %v516, %v599
      %v601 = vpop.f32.mrb[0].mxu0
      %602 = vmatprep.mubr.f32.mxu0 0.0
      %603 = vmatmul.mubr.f32.gmra.mrb[0].mxu0 %v455
      %v604 = vpop.f32.mrb[0].mxu0
      %v605 = vadd.f32 %v516, %v604
      %v606 = vpop.f32.mrb[0].mxu0
      %607 = vmatprep.mubr.f32.mxu0 0.0
      %608 = vmatmul.mubr.f32.gmra.mrb[0].mxu0 %v456
      %v609 = vpop.f32.mrb[0].mxu0
      %v610 = vadd.f32 %v516, %v609
      %v611 = vpop.f32.mrb[0].mxu0
      %612 = vmatprep.mubr.f32.mxu0 0.0
      %613 = vmatmul.mubr.f32.gmra.mrb[0].mxu0 %v457
      %v614 = vpop.f32.mrb[0].mxu0
      %v615 = vadd.f32 %v516, %v614
      %v616 = vpop.f32.mrb[0].mxu0
      %617 = vmatprep.mubr.f32.mxu0 0.0
      %618 = vmatmul.mubr.f32.gmra.mrb[0].mxu0 %v458
      %v619 = vpop.f32.mrb[0].mxu0
      %v620 = vadd.f32 %v516, %v619
      %v621 = vpop.f32.mrb[0].mxu0
      %622 = vmatprep.mubr.f32.mxu0 0.0
      %623 = vmatmul.mubr.f32.gmra.mrb[0].mxu0 %v459
      %v624 = vpop.f32.mrb[0].mxu0
      %v625 = vadd.f32 %v516, %v624
      %v626 = vpop.f32.mrb[0].mxu0
      %627 = vmatprep.mubr.f32.mxu0 0.0
      %628 = vmatmul.mubr.f32.gmra.mrb[0].mxu0 %v460
      %v629 = vpop.f32.mrb[0].mxu0
      %v630 = vadd.f32 %v516, %v629
      %v631 = vpop.f32.mrb[0].mxu0
      %632 = vmatprep.mubr.f32.mxu0 0.0
      %633 = vmatmul.mubr.f32.gmra.mrb[0].mxu0 %v461
      %v634 = vpop.f32.mrb[0].mxu0
      %v635 = vadd.f32 %v516, %v634
      %v636 = vpop.f32.mrb[0].mxu0
      %637 = vmatprep.mubr.f32.mxu0 0.0
      %638 = vmatmul.mubr.f32.gmra.mrb[0].mxu0 %v462
      %v639 = vpop.f32.mrb[0].mxu0
      %v640 = vadd.f32 %v516, %v639
      %v641 = vpop.f32.mrb[0].mxu0
      %642 = vmatprep.mubr.f32.mxu0 0.0
      %643 = vmatmul.mubr.f32.gmra.mrb[0].mxu0 %v463
      %v644 = vpop.f32.mrb[0].mxu0
      %v645 = vadd.f32 %v516, %v644
      %v646 = vpop.f32.mrb[0].mxu0
      %647 = vdwg.mxu0
      %v648 = vld [vmem:[%s8] sm:$0xff]
      %v649 = vld [vmem:[%s8 + $0x8] sm:$0xff]
      %v650 = vld [vmem:[%s8 + $0x10] sm:$0xff]
      %v651 = vld [vmem:[%s8 + $0x18] sm:$0xff]
      %v652 = vld [vmem:[%s9] sm:$0x1]
      %v654 = vlaneseq
      %v655 = vshrl.u32 %v654, 7
      %v656 = vsub.s32 0, %v655
      %v657 = vrot.slane %v652, %v656
      %vm659 = vcmask 261120
      %v661 = vsel %vm659, %v585, 0
      %v664 = vsel %vm659, %v590, 0
      %v667 = vsel %vm659, %v595, 0
      %v670 = vsel %vm659, %v600, 0
      %v673 = vsel %vm659, %v605, 0
      %v676 = vsel %vm659, %v610, 0
      %v679 = vsel %vm659, %v615, 0
      %v682 = vsel %vm659, %v620, 0
      %v685 = vsel %vm659, %v625, 0
      %v688 = vsel %vm659, %v630, 0
      %v691 = vsel %vm659, %v635, 0
      %v694 = vsel %vm659, %v640, 0
      %v697 = vsel %vm659, %v645, 0
      %699 = vmatprep.subr.mxu0 0.0
      %700 = vmatpush1.msra.mxu0 %v648
      %701 = vmatprep.subr.mxu0 0.0
      %702 = vmatpush1.msra.mxu0 %v649
      %703 = vmatprep.subr.mxu0 0.0
      %704 = vmatpush1.msra.mxu0 %v650
      %705 = vmatprep.subr.mxu0 0.0
      %706 = vmatpush1.msra.mxu0 %v651
      %707 = vmatprep.subr.mxu0 0.0
      %708 = vmatpush1.msra.mxu0 0.0
      %709 = vmatprep.subr.mxu0 0.0
      %710 = vmatpush1.msra.mxu0 0.0
      %711 = vmatprep.subr.mxu0 0.0
      %712 = vmatpush1.msra.mxu0 0.0
      %713 = vmatprep.subr.mxu0 0.0
      %714 = vmatpush1.msra.mxu0 0.0
      %715 = vmatprep.subr.mxu0 0.0
      %716 = vmatpush1.msra.mxu0 0.0
      %717 = vmatprep.subr.mxu0 0.0
      %718 = vmatpush1.msra.mxu0 0.0
      %719 = vmatprep.subr.mxu0 0.0
      %720 = vmatpush1.msra.mxu0 0.0
      %721 = vmatprep.subr.mxu0 0.0
      %722 = vmatpush1.msra.mxu0 0.0
      %723 = vmatprep.subr.mxu0 0.0
      %724 = vmatpush1.msra.mxu0 0.0
      %725 = vmatprep.subr.mxu0 0.0
      %726 = vmatpush1.msra.mxu0 0.0
      %727 = vmatprep.subr.mxu0 0.0
      %728 = vmatpush1.msra.mxu0 0.0
      %729 = vmatprep.subr.mxu0 0.0
      %730 = vmatpush1.msra.mxu0 0.0
      %731 = vmatprep.subr.mxu0 0.0
      %732 = vmatpush1.msra.mxu0 0.0
      %733 = vmatprep.subr.mxu0 0.0
      %734 = vmatpush1.msra.mxu0 0.0
      %735 = vmatprep.subr.mxu0 0.0
      %736 = vmatpush1.msra.mxu0 0.0
      %737 = vmatprep.subr.mxu0 0.0
      %738 = vmatpush1.msra.mxu0 0.0
      %739 = vmatprep.subr.mxu0 0.0
      %740 = vmatpush1.msra.mxu0 0.0
      %741 = vmatprep.subr.mxu0 0.0
      %742 = vmatpush1.msra.mxu0 0.0
      %743 = vmatprep.subr.mxu0 0.0
      %744 = vmatpush1.msra.mxu0 0.0
      %745 = vmatprep.subr.mxu0 0.0
      %746 = vmatpush1.msra.mxu0 0.0
      %747 = vmatprep.subr.mxu0 0.0
      %748 = vmatpush1.msra.mxu0 0.0
      %749 = vmatprep.subr.mxu0 0.0
      %750 = vmatpush1.msra.mxu0 0.0
      %751 = vmatprep.subr.mxu0 0.0
      %752 = vmatpush1.msra.mxu0 0.0
      %753 = vmatprep.subr.mxu0 0.0
      %754 = vmatpush1.msra.mxu0 0.0
      %755 = vmatprep.subr.mxu0 0.0
      %756 = vmatpush1.msra.mxu0 0.0
      %757 = vmatprep.subr.mxu0 0.0
      %758 = vmatpush1.msra.mxu0 0.0
      %759 = vmatprep.subr.mxu0 0.0
      %760 = vmatpush1.msra.mxu0 0.0
      %761 = vmatprep.subr.mxu0 0.0
      %762 = vmatpush1.msra.mxu0 0.0
      %763 = vmatprep.mubr.f32.mxu0 0.0
      %764 = vmatmul.mubr.f32.gmra.mrb[0].mxu0 %v661
      %v765 = vpop.f32.mrb[0].mxu0
      %v766 = vadd.f32 %v657, %v765
      %v767 = vpop.f32.mrb[0].mxu0
      %768 = vmatprep.mubr.f32.mxu0 0.0
      %769 = vmatmul.mubr.f32.gmra.mrb[0].mxu0 %v664
      %v770 = vpop.f32.mrb[0].mxu0
      %v771 = vadd.f32 %v657, %v770
      %v772 = vpop.f32.mrb[0].mxu0
      %773 = vmatprep.mubr.f32.mxu0 0.0
      %774 = vmatmul.mubr.f32.gmra.mrb[0].mxu0 %v667
      %v775 = vpop.f32.mrb[0].mxu0
      %v776 = vadd.f32 %v657, %v775
      %v777 = vpop.f32.mrb[0].mxu0
      %778 = vmatprep.mubr.f32.mxu0 0.0
      %779 = vmatmul.mubr.f32.gmra.mrb[0].mxu0 %v670
      %v780 = vpop.f32.mrb[0].mxu0
      %v781 = vadd.f32 %v657, %v780
      %v782 = vpop.f32.mrb[0].mxu0
      %783 = vmatprep.mubr.f32.mxu0 0.0
      %784 = vmatmul.mubr.f32.gmra.mrb[0].mxu0 %v673
      %v785 = vpop.f32.mrb[0].mxu0
      %v786 = vadd.f32 %v657, %v785
      %v787 = vpop.f32.mrb[0].mxu0
      %788 = vmatprep.mubr.f32.mxu0 0.0
      %789 = vmatmul.mubr.f32.gmra.mrb[0].mxu0 %v676
      %v790 = vpop.f32.mrb[0].mxu0
      %v791 = vadd.f32 %v657, %v790
      %v792 = vpop.f32.mrb[0].mxu0
      %793 = vmatprep.mubr.f32.mxu0 0.0
      %794 = vmatmul.mubr.f32.gmra.mrb[0].mxu0 %v679
      %v795 = vpop.f32.mrb[0].mxu0
      %v796 = vadd.f32 %v657, %v795
      %v797 = vpop.f32.mrb[0].mxu0
      %798 = vmatprep.mubr.f32.mxu0 0.0
      %799 = vmatmul.mubr.f32.gmra.mrb[0].mxu0 %v682
      %v800 = vpop.f32.mrb[0].mxu0
      %v801 = vadd.f32 %v657, %v800
      %v802 = vpop.f32.mrb[0].mxu0
      %803 = vmatprep.mubr.f32.mxu0 0.0
      %804 = vmatmul.mubr.f32.gmra.mrb[0].mxu0 %v685
      %v805 = vpop.f32.mrb[0].mxu0
      %v806 = vadd.f32 %v657, %v805
      %v807 = vpop.f32.mrb[0].mxu0
      %808 = vmatprep.mubr.f32.mxu0 0.0
      %809 = vmatmul.mubr.f32.gmra.mrb[0].mxu0 %v688
      %v810 = vpop.f32.mrb[0].mxu0
      %v811 = vadd.f32 %v657, %v810
      %v812 = vpop.f32.mrb[0].mxu0
      %813 = vmatprep.mubr.f32.mxu0 0.0
      %814 = vmatmul.mubr.f32.gmra.mrb[0].mxu0 %v691
      %v815 = vpop.f32.mrb[0].mxu0
      %v816 = vadd.f32 %v657, %v815
      %v817 = vpop.f32.mrb[0].mxu0
      %818 = vmatprep.mubr.f32.mxu0 0.0
      %819 = vmatmul.mubr.f32.gmra.mrb[0].mxu0 %v694
      %v820 = vpop.f32.mrb[0].mxu0
      %v821 = vadd.f32 %v657, %v820
      %v822 = vpop.f32.mrb[0].mxu0
      %823 = vmatprep.mubr.f32.mxu0 0.0
      %824 = vmatmul.mubr.f32.gmra.mrb[0].mxu0 %v697
      %v825 = vpop.f32.mrb[0].mxu0
      %v826 = vadd.f32 %v657, %v825
      %v827 = vpop.f32.mrb[0].mxu0
      %828 = vdwg.mxu0
      %830 = vset.pattern.permute.xlu0 0
      %831 = vperm.xlu0 %830, %v467
      %v832 = vpop.permute.xlu0 %831
      %835 = vset.pattern.permute.xlu0 0
      %836 = vperm.xlu0 %835, %v468
      %v837 = vpop.permute.xlu0 %836
      %840 = vset.pattern.permute.xlu0 0
      %841 = vperm.xlu0 %840, %v469
      %v842 = vpop.permute.xlu0 %841
      %845 = vset.pattern.permute.xlu0 0
      %846 = vperm.xlu0 %845, %v470
      %v847 = vpop.permute.xlu0 %846
      %850 = vset.pattern.permute.xlu0 0
      %851 = vperm.xlu0 %850, %v471
      %v852 = vpop.permute.xlu0 %851
      %855 = vset.pattern.permute.xlu0 0
      %856 = vperm.xlu0 %855, %v472
      %v857 = vpop.permute.xlu0 %856
      %860 = vset.pattern.permute.xlu0 0
      %861 = vperm.xlu0 %860, %v473
      %v862 = vpop.permute.xlu0 %861
      %865 = vset.pattern.permute.xlu0 0
      %866 = vperm.xlu0 %865, %v474
      %v867 = vpop.permute.xlu0 %866
      %870 = vset.pattern.permute.xlu0 0
      %871 = vperm.xlu0 %870, %v475
      %v872 = vpop.permute.xlu0 %871
      %875 = vset.pattern.permute.xlu0 0
      %876 = vperm.xlu0 %875, %v476
      %v877 = vpop.permute.xlu0 %876
      %880 = vset.pattern.permute.xlu0 0
      %881 = vperm.xlu0 %880, %v477
      %v882 = vpop.permute.xlu0 %881
      %885 = vset.pattern.permute.xlu0 0
      %886 = vperm.xlu0 %885, %v478
      %v887 = vpop.permute.xlu0 %886
      %890 = vset.pattern.permute.xlu0 0
      %891 = vperm.xlu0 %890, %v479
      %v892 = vpop.permute.xlu0 %891
      %v894 = vmul.f32 %v832, %v766
      %v895 = vmul.f32 %v837, %v771
      %v896 = vmul.f32 %v842, %v776
      %v897 = vmul.f32 %v847, %v781
      %v898 = vmul.f32 %v852, %v786
      %v899 = vmul.f32 %v857, %v791
      %v900 = vmul.f32 %v862, %v796
      %v901 = vmul.f32 %v867, %v801
      %v902 = vmul.f32 %v872, %v806
      %v903 = vmul.f32 %v877, %v811
      %v904 = vmul.f32 %v882, %v816
      %v905 = vmul.f32 %v887, %v821
      %v906 = vmul.f32 %v892, %v826
      %v907 = vsub.f32 1.0, %v467
      %v908 = vsub.f32 1.0, %v468
      %v909 = vsub.f32 1.0, %v469
      %v910 = vsub.f32 1.0, %v470
      %v911 = vsub.f32 1.0, %v471
      %v912 = vsub.f32 1.0, %v472
      %v913 = vsub.f32 1.0, %v473
      %v914 = vsub.f32 1.0, %v474
      %v915 = vsub.f32 1.0, %v475
      %v916 = vsub.f32 1.0, %v476
      %v917 = vsub.f32 1.0, %v477
      %v918 = vsub.f32 1.0, %v478
      %v919 = vsub.f32 1.0, %v479
      %s920 = scalar_lea.vmem %s8, 32
      %v921 = vld [vmem:[%s920] sm:$0xff]
      %v922 = vld [vmem:[%s920 + $0x8] sm:$0xff]
      %v923 = vld [vmem:[%s920 + $0x10] sm:$0xff]
      %v924 = vld [vmem:[%s920 + $0x18] sm:$0xff]
      %s925 = scalar_lea.vmem %s9, 1
      %v926 = vld [vmem:[%s925] sm:$0x1]
      %v928 = vlaneseq
      %v929 = vshrl.u32 %v928, 7
      %v930 = vsub.s32 0, %v929
      %v931 = vrot.slane %v926, %v930
      %933 = vmatprep.subr.mxu0 0.0
      %934 = vmatpush1.msra.mxu0 %v921
      %935 = vmatprep.subr.mxu0 0.0
      %936 = vmatpush1.msra.mxu0 %v922
      %937 = vmatprep.subr.mxu0 0.0
      %938 = vmatpush1.msra.mxu0 %v923
      %939 = vmatprep.subr.mxu0 0.0
      %940 = vmatpush1.msra.mxu0 %v924
      %941 = vmatprep.subr.mxu0 0.0
      %942 = vmatpush1.msra.mxu0 0.0
      %943 = vmatprep.subr.mxu0 0.0
      %944 = vmatpush1.msra.mxu0 0.0
      %945 = vmatprep.subr.mxu0 0.0
      %946 = vmatpush1.msra.mxu0 0.0
      %947 = vmatprep.subr.mxu0 0.0
      %948 = vmatpush1.msra.mxu0 0.0
      %949 = vmatprep.subr.mxu0 0.0
      %950 = vmatpush1.msra.mxu0 0.0
      %951 = vmatprep.subr.mxu0 0.0
      %952 = vmatpush1.msra.mxu0 0.0
      %953 = vmatprep.subr.mxu0 0.0
      %954 = vmatpush1.msra.mxu0 0.0
      %955 = vmatprep.subr.mxu0 0.0
      %956 = vmatpush1.msra.mxu0 0.0
      %957 = vmatprep.subr.mxu0 0.0
      %958 = vmatpush1.msra.mxu0 0.0
      %959 = vmatprep.subr.mxu0 0.0
      %960 = vmatpush1.msra.mxu0 0.0
      %961 = vmatprep.subr.mxu0 0.0
      %962 = vmatpush1.msra.mxu0 0.0
      %963 = vmatprep.subr.mxu0 0.0
      %964 = vmatpush1.msra.mxu0 0.0
      %965 = vmatprep.subr.mxu0 0.0
      %966 = vmatpush1.msra.mxu0 0.0
      %967 = vmatprep.subr.mxu0 0.0
      %968 = vmatpush1.msra.mxu0 0.0
      %969 = vmatprep.subr.mxu0 0.0
      %970 = vmatpush1.msra.mxu0 0.0
      %971 = vmatprep.subr.mxu0 0.0
      %972 = vmatpush1.msra.mxu0 0.0
      %973 = vmatprep.subr.mxu0 0.0
      %974 = vmatpush1.msra.mxu0 0.0
      %975 = vmatprep.subr.mxu0 0.0
      %976 = vmatpush1.msra.mxu0 0.0
      %977 = vmatprep.subr.mxu0 0.0
      %978 = vmatpush1.msra.mxu0 0.0
      %979 = vmatprep.subr.mxu0 0.0
      %980 = vmatpush1.msra.mxu0 0.0
      %981 = vmatprep.subr.mxu0 0.0
      %982 = vmatpush1.msra.mxu0 0.0
      %983 = vmatprep.subr.mxu0 0.0
      %984 = vmatpush1.msra.mxu0 0.0
      %985 = vmatprep.subr.mxu0 0.0
      %986 = vmatpush1.msra.mxu0 0.0
      %987 = vmatprep.subr.mxu0 0.0
      %988 = vmatpush1.msra.mxu0 0.0
      %989 = vmatprep.subr.mxu0 0.0
      %990 = vmatpush1.msra.mxu0 0.0
      %991 = vmatprep.subr.mxu0 0.0
      %992 = vmatpush1.msra.mxu0 0.0
      %993 = vmatprep.subr.mxu0 0.0
      %994 = vmatpush1.msra.mxu0 0.0
      %995 = vmatprep.subr.mxu0 0.0
      %996 = vmatpush1.msra.mxu0 0.0
      %997 = vmatprep.mubr.f32.mxu0 0.0
      %998 = vmatmul.mubr.f32.gmra.mrb[0].mxu0 %v661
      %v999 = vpop.f32.mrb[0].mxu0
      %v1000 = vadd.f32 %v931, %v999
      %v1001 = vpop.f32.mrb[0].mxu0
      %1002 = vmatprep.mubr.f32.mxu0 0.0
      %1003 = vmatmul.mubr.f32.gmra.mrb[0].mxu0 %v664
      %v1004 = vpop.f32.mrb[0].mxu0
      %v1005 = vadd.f32 %v931, %v1004
      %v1006 = vpop.f32.mrb[0].mxu0
      %1007 = vmatprep.mubr.f32.mxu0 0.0
      %1008 = vmatmul.mubr.f32.gmra.mrb[0].mxu0 %v667
      %v1009 = vpop.f32.mrb[0].mxu0
      %v1010 = vadd.f32 %v931, %v1009
      %v1011 = vpop.f32.mrb[0].mxu0
      %1012 = vmatprep.mubr.f32.mxu0 0.0
      %1013 = vmatmul.mubr.f32.gmra.mrb[0].mxu0 %v670
      %v1014 = vpop.f32.mrb[0].mxu0
      %v1015 = vadd.f32 %v931, %v1014
      %v1016 = vpop.f32.mrb[0].mxu0
      %1017 = vmatprep.mubr.f32.mxu0 0.0
      %1018 = vmatmul.mubr.f32.gmra.mrb[0].mxu0 %v673
      %v1019 = vpop.f32.mrb[0].mxu0
      %v1020 = vadd.f32 %v931, %v1019
      %v1021 = vpop.f32.mrb[0].mxu0
      %1022 = vmatprep.mubr.f32.mxu0 0.0
      %1023 = vmatmul.mubr.f32.gmra.mrb[0].mxu0 %v676
      %v1024 = vpop.f32.mrb[0].mxu0
      %v1025 = vadd.f32 %v931, %v1024
      %v1026 = vpop.f32.mrb[0].mxu0
      %1027 = vmatprep.mubr.f32.mxu0 0.0
      %1028 = vmatmul.mubr.f32.gmra.mrb[0].mxu0 %v679
      %v1029 = vpop.f32.mrb[0].mxu0
      %v1030 = vadd.f32 %v931, %v1029
      %v1031 = vpop.f32.mrb[0].mxu0
      %1032 = vmatprep.mubr.f32.mxu0 0.0
      %1033 = vmatmul.mubr.f32.gmra.mrb[0].mxu0 %v682
      %v1034 = vpop.f32.mrb[0].mxu0
      %v1035 = vadd.f32 %v931, %v1034
      %v1036 = vpop.f32.mrb[0].mxu0
      %1037 = vmatprep.mubr.f32.mxu0 0.0
      %1038 = vmatmul.mubr.f32.gmra.mrb[0].mxu0 %v685
      %v1039 = vpop.f32.mrb[0].mxu0
      %v1040 = vadd.f32 %v931, %v1039
      %v1041 = vpop.f32.mrb[0].mxu0
      %1042 = vmatprep.mubr.f32.mxu0 0.0
      %1043 = vmatmul.mubr.f32.gmra.mrb[0].mxu0 %v688
      %v1044 = vpop.f32.mrb[0].mxu0
      %v1045 = vadd.f32 %v931, %v1044
      %v1046 = vpop.f32.mrb[0].mxu0
      %1047 = vmatprep.mubr.f32.mxu0 0.0
      %1048 = vmatmul.mubr.f32.gmra.mrb[0].mxu0 %v691
      %v1049 = vpop.f32.mrb[0].mxu0
      %v1050 = vadd.f32 %v931, %v1049
      %v1051 = vpop.f32.mrb[0].mxu0
      %1052 = vmatprep.mubr.f32.mxu0 0.0
      %1053 = vmatmul.mubr.f32.gmra.mrb[0].mxu0 %v694
      %v1054 = vpop.f32.mrb[0].mxu0
      %v1055 = vadd.f32 %v931, %v1054
      %v1056 = vpop.f32.mrb[0].mxu0
      %1057 = vmatprep.mubr.f32.mxu0 0.0
      %1058 = vmatmul.mubr.f32.gmra.mrb[0].mxu0 %v697
      %v1059 = vpop.f32.mrb[0].mxu0
      %v1060 = vadd.f32 %v931, %v1059
      %v1061 = vpop.f32.mrb[0].mxu0
      %1062 = vdwg.mxu0
      %1064 = vset.pattern.permute.xlu0 0
      %1065 = vperm.xlu0 %1064, %v907
      %v1066 = vpop.permute.xlu0 %1065
      %1069 = vset.pattern.permute.xlu0 0
      %1070 = vperm.xlu0 %1069, %v908
      %v1071 = vpop.permute.xlu0 %1070
      %1074 = vset.pattern.permute.xlu0 0
      %1075 = vperm.xlu0 %1074, %v909
      %v1076 = vpop.permute.xlu0 %1075
      %1079 = vset.pattern.permute.xlu0 0
      %1080 = vperm.xlu0 %1079, %v910
      %v1081 = vpop.permute.xlu0 %1080
      %1084 = vset.pattern.permute.xlu0 0
      %1085 = vperm.xlu0 %1084, %v911
      %v1086 = vpop.permute.xlu0 %1085
      %1089 = vset.pattern.permute.xlu0 0
      %1090 = vperm.xlu0 %1089, %v912
      %v1091 = vpop.permute.xlu0 %1090
      %1094 = vset.pattern.permute.xlu0 0
      %1095 = vperm.xlu0 %1094, %v913
      %v1096 = vpop.permute.xlu0 %1095
      %1099 = vset.pattern.permute.xlu0 0
      %1100 = vperm.xlu0 %1099, %v914
      %v1101 = vpop.permute.xlu0 %1100
      %1104 = vset.pattern.permute.xlu0 0
      %1105 = vperm.xlu0 %1104, %v915
      %v1106 = vpop.permute.xlu0 %1105
      %1109 = vset.pattern.permute.xlu0 0
      %1110 = vperm.xlu0 %1109, %v916
      %v1111 = vpop.permute.xlu0 %1110
      %1114 = vset.pattern.permute.xlu0 0
      %1115 = vperm.xlu0 %1114, %v917
      %v1116 = vpop.permute.xlu0 %1115
      %1119 = vset.pattern.permute.xlu0 0
      %1120 = vperm.xlu0 %1119, %v918
      %v1121 = vpop.permute.xlu0 %1120
      %1124 = vset.pattern.permute.xlu0 0
      %1125 = vperm.xlu0 %1124, %v919
      %v1126 = vpop.permute.xlu0 %1125
      %v1128 = vmul.f32 %v1066, %v1000
      %v1129 = vmul.f32 %v1071, %v1005
      %v1130 = vmul.f32 %v1076, %v1010
      %v1131 = vmul.f32 %v1081, %v1015
      %v1132 = vmul.f32 %v1086, %v1020
      %v1133 = vmul.f32 %v1091, %v1025
      %v1134 = vmul.f32 %v1096, %v1030
      %v1135 = vmul.f32 %v1101, %v1035
      %v1136 = vmul.f32 %v1106, %v1040
      %v1137 = vmul.f32 %v1111, %v1045
      %v1138 = vmul.f32 %v1116, %v1050
      %v1139 = vmul.f32 %v1121, %v1055
      %v1140 = vmul.f32 %v1126, %v1060
      %v1141 = vadd.f32 %v894, %v1128
      %v1142 = vadd.f32 %v895, %v1129
      %v1143 = vadd.f32 %v896, %v1130
      %v1144 = vadd.f32 %v897, %v1131
      %v1145 = vadd.f32 %v898, %v1132
      %v1146 = vadd.f32 %v899, %v1133
      %v1147 = vadd.f32 %v900, %v1134
      %v1148 = vadd.f32 %v901, %v1135
      %v1149 = vadd.f32 %v902, %v1136
      %v1150 = vadd.f32 %v903, %v1137
      %v1151 = vadd.f32 %v904, %v1138
      %v1152 = vadd.f32 %v905, %v1139
      %v1153 = vadd.f32 %v906, %v1140
      %s1154 = scalar_lea.vmem %s8, 64
      %v1155 = vld [vmem:[%s1154] sm:$0xff]
      %v1156 = vld [vmem:[%s1154 + $0x8] sm:$0xff]
      %v1157 = vld [vmem:[%s1154 + $0x10] sm:$0xff]
      %v1158 = vld [vmem:[%s1154 + $0x18] sm:$0xff]
      %s1159 = scalar_lea.vmem %s9, 2
      %v1160 = vld [vmem:[%s1159] sm:$0x1]
      %v1162 = vlaneseq
      %v1163 = vshrl.u32 %v1162, 7
      %v1164 = vsub.s32 0, %v1163
      %v1165 = vrot.slane %v1160, %v1164
      %v1168 = vsel %vm659, %v464, 0
      %v1171 = vsel %vm659, %v465, 0
      %1173 = vmatprep.subr.mxu0 0.0
      %1174 = vmatpush1.msra.mxu0 %v1155
      %1175 = vmatprep.subr.mxu0 0.0
      %1176 = vmatpush1.msra.mxu0 %v1156
      %1177 = vmatprep.subr.mxu0 0.0
      %1178 = vmatpush1.msra.mxu0 %v1157
      %1179 = vmatprep.subr.mxu0 0.0
      %1180 = vmatpush1.msra.mxu0 %v1158
      %1181 = vmatprep.subr.mxu0 0.0
      %1182 = vmatpush1.msra.mxu0 0.0
      %1183 = vmatprep.subr.mxu0 0.0
      %1184 = vmatpush1.msra.mxu0 0.0
      %1185 = vmatprep.subr.mxu0 0.0
      %1186 = vmatpush1.msra.mxu0 0.0
      %1187 = vmatprep.subr.mxu0 0.0
      %1188 = vmatpush1.msra.mxu0 0.0
      %1189 = vmatprep.subr.mxu0 0.0
      %1190 = vmatpush1.msra.mxu0 0.0
      %1191 = vmatprep.subr.mxu0 0.0
      %1192 = vmatpush1.msra.mxu0 0.0
      %1193 = vmatprep.subr.mxu0 0.0
      %1194 = vmatpush1.msra.mxu0 0.0
      %1195 = vmatprep.subr.mxu0 0.0
      %1196 = vmatpush1.msra.mxu0 0.0
      %1197 = vmatprep.subr.mxu0 0.0
      %1198 = vmatpush1.msra.mxu0 0.0
      %1199 = vmatprep.subr.mxu0 0.0
      %1200 = vmatpush1.msra.mxu0 0.0
      %1201 = vmatprep.subr.mxu0 0.0
      %1202 = vmatpush1.msra.mxu0 0.0
      %1203 = vmatprep.subr.mxu0 0.0
      %1204 = vmatpush1.msra.mxu0 0.0
      %1205 = vmatprep.subr.mxu0 0.0
      %1206 = vmatpush1.msra.mxu0 0.0
      %1207 = vmatprep.subr.mxu0 0.0
      %1208 = vmatpush1.msra.mxu0 0.0
      %1209 = vmatprep.subr.mxu0 0.0
      %1210 = vmatpush1.msra.mxu0 0.0
      %1211 = vmatprep.subr.mxu0 0.0
      %1212 = vmatpush1.msra.mxu0 0.0
      %1213 = vmatprep.subr.mxu0 0.0
      %1214 = vmatpush1.msra.mxu0 0.0
      %1215 = vmatprep.subr.mxu0 0.0
      %1216 = vmatpush1.msra.mxu0 0.0
      %1217 = vmatprep.subr.mxu0 0.0
      %1218 = vmatpush1.msra.mxu0 0.0
      %1219 = vmatprep.subr.mxu0 0.0
      %1220 = vmatpush1.msra.mxu0 0.0
      %1221 = vmatprep.subr.mxu0 0.0
      %1222 = vmatpush1.msra.mxu0 0.0
      %1223 = vmatprep.subr.mxu0 0.0
      %1224 = vmatpush1.msra.mxu0 0.0
      %1225 = vmatprep.subr.mxu0 0.0
      %1226 = vmatpush1.msra.mxu0 0.0
      %1227 = vmatprep.subr.mxu0 0.0
      %1228 = vmatpush1.msra.mxu0 0.0
      %1229 = vmatprep.subr.mxu0 0.0
      %1230 = vmatpush1.msra.mxu0 0.0
      %1231 = vmatprep.subr.mxu0 0.0
      %1232 = vmatpush1.msra.mxu0 0.0
      %1233 = vmatprep.subr.mxu0 0.0
      %1234 = vmatpush1.msra.mxu0 0.0
      %1235 = vmatprep.subr.mxu0 0.0
      %1236 = vmatpush1.msra.mxu0 0.0
      %1237 = vmatprep.mubr.f32.mxu0 0.0
      %1238 = vmatmul.mubr.f32.gmra.mrb[0].mxu0 %v1168
      %v1239 = vpop.f32.mrb[0].mxu0
      %v1240 = vadd.f32 %v1165, %v1239
      %v1241 = vpop.f32.mrb[0].mxu0
      %1242 = vmatprep.mubr.f32.mxu0 0.0
      %1243 = vmatmul.mubr.f32.gmra.mrb[0].mxu0 %v1171
      %v1244 = vpop.f32.mrb[0].mxu0
      %v1245 = vadd.f32 %v1165, %v1244
      %v1246 = vpop.f32.mrb[0].mxu0
      %1247 = vdwg.mxu0
      %1249 = vset.pattern.permute.xlu0 0
      %1250 = vperm.xlu0 %1249, %v480
      %v1251 = vpop.permute.xlu0 %1250
      %1254 = vset.pattern.permute.xlu0 0
      %1255 = vperm.xlu0 %1254, %v481
      %v1256 = vpop.permute.xlu0 %1255
      %v1258 = vmul.f32 %v1251, %v1240
      %v1259 = vmul.f32 %v1256, %v1245
      %v1260 = vsub.f32 1.0, %v480
      %v1261 = vsub.f32 1.0, %v481
      %s1262 = scalar_lea.vmem %s8, 96
      %v1263 = vld [vmem:[%s1262] sm:$0xff]
      %v1264 = vld [vmem:[%s1262 + $0x8] sm:$0xff]
      %v1265 = vld [vmem:[%s1262 + $0x10] sm:$0xff]
      %v1266 = vld [vmem:[%s1262 + $0x18] sm:$0xff]
      %s1267 = scalar_lea.vmem %s9, 3
      %v1268 = vld [vmem:[%s1267] sm:$0x1]
      %v1270 = vlaneseq
      %v1271 = vshrl.u32 %v1270, 7
      %v1272 = vsub.s32 0, %v1271
      %v1273 = vrot.slane %v1268, %v1272
      %1275 = vmatprep.subr.mxu0 0.0
      %1276 = vmatpush1.msra.mxu0 %v1263
      %1277 = vmatprep.subr.mxu0 0.0
      %1278 = vmatpush1.msra.mxu0 %v1264
      %1279 = vmatprep.subr.mxu0 0.0
      %1280 = vmatpush1.msra.mxu0 %v1265
      %1281 = vmatprep.subr.mxu0 0.0
      %1282 = vmatpush1.msra.mxu0 %v1266
      %1283 = vmatprep.subr.mxu0 0.0
      %1284 = vmatpush1.msra.mxu0 0.0
      %1285 = vmatprep.subr.mxu0 0.0
      %1286 = vmatpush1.msra.mxu0 0.0
      %1287 = vmatprep.subr.mxu0 0.0
      %1288 = vmatpush1.msra.mxu0 0.0
      %1289 = vmatprep.subr.mxu0 0.0
      %1290 = vmatpush1.msra.mxu0 0.0
      %1291 = vmatprep.subr.mxu0 0.0
      %1292 = vmatpush1.msra.mxu0 0.0
      %1293 = vmatprep.subr.mxu0 0.0
      %1294 = vmatpush1.msra.mxu0 0.0
      %1295 = vmatprep.subr.mxu0 0.0
      %1296 = vmatpush1.msra.mxu0 0.0
      %1297 = vmatprep.subr.mxu0 0.0
      %1298 = vmatpush1.msra.mxu0 0.0
      %1299 = vmatprep.subr.mxu0 0.0
      %1300 = vmatpush1.msra.mxu0 0.0
      %1301 = vmatprep.subr.mxu0 0.0
      %1302 = vmatpush1.msra.mxu0 0.0
      %1303 = vmatprep.subr.mxu0 0.0
      %1304 = vmatpush1.msra.mxu0 0.0
      %1305 = vmatprep.subr.mxu0 0.0
      %1306 = vmatpush1.msra.mxu0 0.0
      %1307 = vmatprep.subr.mxu0 0.0
      %1308 = vmatpush1.msra.mxu0 0.0
      %1309 = vmatprep.subr.mxu0 0.0
      %1310 = vmatpush1.msra.mxu0 0.0
      %1311 = vmatprep.subr.mxu0 0.0
      %1312 = vmatpush1.msra.mxu0 0.0
      %1313 = vmatprep.subr.mxu0 0.0
      %1314 = vmatpush1.msra.mxu0 0.0
      %1315 = vmatprep.subr.mxu0 0.0
      %1316 = vmatpush1.msra.mxu0 0.0
      %1317 = vmatprep.subr.mxu0 0.0
      %1318 = vmatpush1.msra.mxu0 0.0
      %1319 = vmatprep.subr.mxu0 0.0
      %1320 = vmatpush1.msra.mxu0 0.0
      %1321 = vmatprep.subr.mxu0 0.0
      %1322 = vmatpush1.msra.mxu0 0.0
      %1323 = vmatprep.subr.mxu0 0.0
      %1324 = vmatpush1.msra.mxu0 0.0
      %1325 = vmatprep.subr.mxu0 0.0
      %1326 = vmatpush1.msra.mxu0 0.0
      %1327 = vmatprep.subr.mxu0 0.0
      %1328 = vmatpush1.msra.mxu0 0.0
      %1329 = vmatprep.subr.mxu0 0.0
      %1330 = vmatpush1.msra.mxu0 0.0
      %1331 = vmatprep.subr.mxu0 0.0
      %1332 = vmatpush1.msra.mxu0 0.0
      %1333 = vmatprep.subr.mxu0 0.0
      %1334 = vmatpush1.msra.mxu0 0.0
      %1335 = vmatprep.subr.mxu0 0.0
      %1336 = vmatpush1.msra.mxu0 0.0
      %1337 = vmatprep.subr.mxu0 0.0
      %1338 = vmatpush1.msra.mxu0 0.0
      %1339 = vmatprep.mubr.f32.mxu0 0.0
      %1340 = vmatmul.mubr.f32.gmra.mrb[0].mxu0 %v1168
      %v1341 = vpop.f32.mrb[0].mxu0
      %v1342 = vadd.f32 %v1273, %v1341
      %v1343 = vpop.f32.mrb[0].mxu0
      %1344 = vmatprep.mubr.f32.mxu0 0.0
      %1345 = vmatmul.mubr.f32.gmra.mrb[0].mxu0 %v1171
      %v1346 = vpop.f32.mrb[0].mxu0
      %v1347 = vadd.f32 %v1273, %v1346
      %v1348 = vpop.f32.mrb[0].mxu0
      %1349 = vdwg.mxu0
      %1351 = vset.pattern.permute.xlu0 0
      %1352 = vperm.xlu0 %1351, %v1260
      %v1353 = vpop.permute.xlu0 %1352
      %1356 = vset.pattern.permute.xlu0 0
      %1357 = vperm.xlu0 %1356, %v1261
      %v1358 = vpop.permute.xlu0 %1357
      %v1360 = vmul.f32 %v1353, %v1342
      %v1361 = vmul.f32 %v1358, %v1347
      %v1362 = vadd.f32 %v1258, %v1360
      %v1363 = vadd.f32 %v1259, %v1361
      %s1364 = scalar_lea.vmem %s8, 128
      %v1365 = vld [vmem:[%s1364] sm:$0xff]
      %v1366 = vld [vmem:[%s1364 + $0x8] sm:$0xff]
      %v1367 = vld [vmem:[%s1364 + $0x10] sm:$0xff]
      %v1368 = vld [vmem:[%s1364 + $0x18] sm:$0xff]
      %s1369 = scalar_lea.vmem %s9, 4
      %v1370 = vld [vmem:[%s1369] sm:$0x1]
      %v1372 = vlaneseq
      %v1373 = vshrl.u32 %v1372, 7
      %v1374 = vsub.s32 0, %v1373
      %v1375 = vrot.slane %v1370, %v1374
      %1377 = vmatprep.subr.mxu0 0.0
      %1378 = vmatpush1.msra.mxu0 %v1365
      %1379 = vmatprep.subr.mxu0 0.0
      %1380 = vmatpush1.msra.mxu0 %v1366
      %1381 = vmatprep.subr.mxu0 0.0
      %1382 = vmatpush1.msra.mxu0 %v1367
      %1383 = vmatprep.subr.mxu0 0.0
      %1384 = vmatpush1.msra.mxu0 %v1368
      %1385 = vmatprep.subr.mxu0 0.0
      %1386 = vmatpush1.msra.mxu0 0.0
      %1387 = vmatprep.subr.mxu0 0.0
      %1388 = vmatpush1.msra.mxu0 0.0
      %1389 = vmatprep.subr.mxu0 0.0
      %1390 = vmatpush1.msra.mxu0 0.0
      %1391 = vmatprep.subr.mxu0 0.0
      %1392 = vmatpush1.msra.mxu0 0.0
      %1393 = vmatprep.subr.mxu0 0.0
      %1394 = vmatpush1.msra.mxu0 0.0
      %1395 = vmatprep.subr.mxu0 0.0
      %1396 = vmatpush1.msra.mxu0 0.0
      %1397 = vmatprep.subr.mxu0 0.0
      %1398 = vmatpush1.msra.mxu0 0.0
      %1399 = vmatprep.subr.mxu0 0.0
      %1400 = vmatpush1.msra.mxu0 0.0
      %1401 = vmatprep.subr.mxu0 0.0
      %1402 = vmatpush1.msra.mxu0 0.0
      %1403 = vmatprep.subr.mxu0 0.0
      %1404 = vmatpush1.msra.mxu0 0.0
      %1405 = vmatprep.subr.mxu0 0.0
      %1406 = vmatpush1.msra.mxu0 0.0
      %1407 = vmatprep.subr.mxu0 0.0
      %1408 = vmatpush1.msra.mxu0 0.0
      %1409 = vmatprep.subr.mxu0 0.0
      %1410 = vmatpush1.msra.mxu0 0.0
      %1411 = vmatprep.subr.mxu0 0.0
      %1412 = vmatpush1.msra.mxu0 0.0
      %1413 = vmatprep.subr.mxu0 0.0
      %1414 = vmatpush1.msra.mxu0 0.0
      %1415 = vmatprep.subr.mxu0 0.0
      %1416 = vmatpush1.msra.mxu0 0.0
      %1417 = vmatprep.subr.mxu0 0.0
      %1418 = vmatpush1.msra.mxu0 0.0
      %1419 = vmatprep.subr.mxu0 0.0
      %1420 = vmatpush1.msra.mxu0 0.0
      %1421 = vmatprep.subr.mxu0 0.0
      %1422 = vmatpush1.msra.mxu0 0.0
      %1423 = vmatprep.subr.mxu0 0.0
      %1424 = vmatpush1.msra.mxu0 0.0
      %1425 = vmatprep.subr.mxu0 0.0
      %1426 = vmatpush1.msra.mxu0 0.0
      %1427 = vmatprep.subr.mxu0 0.0
      %1428 = vmatpush1.msra.mxu0 0.0
      %1429 = vmatprep.subr.mxu0 0.0
      %1430 = vmatpush1.msra.mxu0 0.0
      %1431 = vmatprep.subr.mxu0 0.0
      %1432 = vmatpush1.msra.mxu0 0.0
      %1433 = vmatprep.subr.mxu0 0.0
      %1434 = vmatpush1.msra.mxu0 0.0
      %1435 = vmatprep.subr.mxu0 0.0
      %1436 = vmatpush1.msra.mxu0 0.0
      %1437 = vmatprep.subr.mxu0 0.0
      %1438 = vmatpush1.msra.mxu0 0.0
      %1439 = vmatprep.subr.mxu0 0.0
      %1440 = vmatpush1.msra.mxu0 0.0
      %1441 = vmatprep.mubr.f32.mxu0 0.0
      %1442 = vmatmul.mubr.f32.gmra.mrb[0].mxu0 %v1168
      %v1443 = vpop.f32.mrb[0].mxu0
      %v1444 = vadd.f32 %v1375, %v1443
      %v1445 = vpop.f32.mrb[0].mxu0
      %1446 = vmatprep.mubr.f32.mxu0 0.0
      %1447 = vmatmul.mubr.f32.gmra.mrb[0].mxu0 %v1171
      %v1448 = vpop.f32.mrb[0].mxu0
      %v1449 = vadd.f32 %v1375, %v1448
      %v1450 = vpop.f32.mrb[0].mxu0
      %1451 = vdwg.mxu0
      %v1452 = vmul.f32 %v1251, %v1444
      %v1453 = vmul.f32 %v1256, %v1449
      %s1454 = scalar_lea.vmem %s8, 160
      %v1455 = vld [vmem:[%s1454] sm:$0xff]
      %v1456 = vld [vmem:[%s1454 + $0x8] sm:$0xff]
      %v1457 = vld [vmem:[%s1454 + $0x10] sm:$0xff]
      %v1458 = vld [vmem:[%s1454 + $0x18] sm:$0xff]
      %s1459 = scalar_lea.vmem %s9, 5
      %v1460 = vld [vmem:[%s1459] sm:$0x1]
      %v1462 = vlaneseq
      %v1463 = vshrl.u32 %v1462, 7
      %v1464 = vsub.s32 0, %v1463
      %v1465 = vrot.slane %v1460, %v1464
      %1467 = vmatprep.subr.mxu0 0.0
      %1468 = vmatpush1.msra.mxu0 %v1455
      %1469 = vmatprep.subr.mxu0 0.0
      %1470 = vmatpush1.msra.mxu0 %v1456
      %1471 = vmatprep.subr.mxu0 0.0
      %1472 = vmatpush1.msra.mxu0 %v1457
      %1473 = vmatprep.subr.mxu0 0.0
      %1474 = vmatpush1.msra.mxu0 %v1458
      %1475 = vmatprep.subr.mxu0 0.0
      %1476 = vmatpush1.msra.mxu0 0.0
      %1477 = vmatprep.subr.mxu0 0.0
      %1478 = vmatpush1.msra.mxu0 0.0
      %1479 = vmatprep.subr.mxu0 0.0
      %1480 = vmatpush1.msra.mxu0 0.0
      %1481 = vmatprep.subr.mxu0 0.0
      %1482 = vmatpush1.msra.mxu0 0.0
      %1483 = vmatprep.subr.mxu0 0.0
      %1484 = vmatpush1.msra.mxu0 0.0
      %1485 = vmatprep.subr.mxu0 0.0
      %1486 = vmatpush1.msra.mxu0 0.0
      %1487 = vmatprep.subr.mxu0 0.0
      %1488 = vmatpush1.msra.mxu0 0.0
      %1489 = vmatprep.subr.mxu0 0.0
      %1490 = vmatpush1.msra.mxu0 0.0
      %1491 = vmatprep.subr.mxu0 0.0
      %1492 = vmatpush1.msra.mxu0 0.0
      %1493 = vmatprep.subr.mxu0 0.0
      %1494 = vmatpush1.msra.mxu0 0.0
      %1495 = vmatprep.subr.mxu0 0.0
      %1496 = vmatpush1.msra.mxu0 0.0
      %1497 = vmatprep.subr.mxu0 0.0
      %1498 = vmatpush1.msra.mxu0 0.0
      %1499 = vmatprep.subr.mxu0 0.0
      %1500 = vmatpush1.msra.mxu0 0.0
      %1501 = vmatprep.subr.mxu0 0.0
      %1502 = vmatpush1.msra.mxu0 0.0
      %1503 = vmatprep.subr.mxu0 0.0
      %1504 = vmatpush1.msra.mxu0 0.0
      %1505 = vmatprep.subr.mxu0 0.0
      %1506 = vmatpush1.msra.mxu0 0.0
      %1507 = vmatprep.subr.mxu0 0.0
      %1508 = vmatpush1.msra.mxu0 0.0
      %1509 = vmatprep.subr.mxu0 0.0
      %1510 = vmatpush1.msra.mxu0 0.0
      %1511 = vmatprep.subr.mxu0 0.0
      %1512 = vmatpush1.msra.mxu0 0.0
      %1513 = vmatprep.subr.mxu0 0.0
      %1514 = vmatpush1.msra.mxu0 0.0
      %1515 = vmatprep.subr.mxu0 0.0
      %1516 = vmatpush1.msra.mxu0 0.0
      %1517 = vmatprep.subr.mxu0 0.0
      %1518 = vmatpush1.msra.mxu0 0.0
      %1519 = vmatprep.subr.mxu0 0.0
      %1520 = vmatpush1.msra.mxu0 0.0
      %1521 = vmatprep.subr.mxu0 0.0
      %1522 = vmatpush1.msra.mxu0 0.0
      %1523 = vmatprep.subr.mxu0 0.0
      %1524 = vmatpush1.msra.mxu0 0.0
      %1525 = vmatprep.subr.mxu0 0.0
      %1526 = vmatpush1.msra.mxu0 0.0
      %1527 = vmatprep.subr.mxu0 0.0
      %1528 = vmatpush1.msra.mxu0 0.0
      %1529 = vmatprep.subr.mxu0 0.0
      %1530 = vmatpush1.msra.mxu0 0.0
      %1531 = vmatprep.mubr.f32.mxu0 0.0
      %1532 = vmatmul.mubr.f32.gmra.mrb[0].mxu0 %v1168
      %v1533 = vpop.f32.mrb[0].mxu0
      %v1534 = vadd.f32 %v1465, %v1533
      %v1535 = vpop.f32.mrb[0].mxu0
      %1536 = vmatprep.mubr.f32.mxu0 0.0
      %1537 = vmatmul.mubr.f32.gmra.mrb[0].mxu0 %v1171
      %v1538 = vpop.f32.mrb[0].mxu0
      %v1539 = vadd.f32 %v1465, %v1538
      %v1540 = vpop.f32.mrb[0].mxu0
      %1541 = vdwg.mxu0
      %v1542 = vmul.f32 %v1353, %v1534
      %v1543 = vmul.f32 %v1358, %v1539
      %v1544 = vadd.f32 %v1452, %v1542
      %v1545 = vadd.f32 %v1453, %v1543
      %v1547 = vsel %vm659, %v1141, 0
      %v1550 = vsel %vm659, %v1142, 0
      %v1553 = vsel %vm659, %v1143, 0
      %v1556 = vsel %vm659, %v1144, 0
      %v1559 = vsel %vm659, %v1145, 0
      %v1562 = vsel %vm659, %v1146, 0
      %v1565 = vsel %vm659, %v1147, 0
      %v1568 = vsel %vm659, %v1148, 0
      %v1571 = vsel %vm659, %v1149, 0
      %v1574 = vsel %vm659, %v1150, 0
      %v1577 = vsel %vm659, %v1151, 0
      %v1580 = vsel %vm659, %v1152, 0
      %v1583 = vsel %vm659, %v1153, 0
      %v1586 = vsel %vm659, %v1362, 0
      %v1589 = vsel %vm659, %v1363, 0
      %1591 = vmatprep.subr.mxu0 0.0
      %1592 = vmatpush1.xpose.msra.mxu0 %v1586
      %1593 = vmatprep.subr.mxu0 0.0
      %1594 = vmatpush1.xpose.msra.mxu0 %v1589
      %1595 = vmatprep.subr.mxu0 0.0
      %1596 = vmatpush1.xpose.msra.mxu0 0.0
      %1597 = vmatprep.subr.mxu0 0.0
      %1598 = vmatpush1.xpose.msra.mxu0 0.0
      %1599 = vmatprep.subr.mxu0 0.0
      %1600 = vmatpush1.xpose.msra.mxu0 0.0
      %1601 = vmatprep.subr.mxu0 0.0
      %1602 = vmatpush1.xpose.msra.mxu0 0.0
      %1603 = vmatprep.subr.mxu0 0.0
      %1604 = vmatpush1.xpose.msra.mxu0 0.0
      %1605 = vmatprep.subr.mxu0 0.0
      %1606 = vmatpush1.xpose.msra.mxu0 0.0
      %1607 = vmatprep.subr.mxu0 0.0
      %1608 = vmatpush1.xpose.msra.mxu0 0.0
      %1609 = vmatprep.subr.mxu0 0.0
      %1610 = vmatpush1.xpose.msra.mxu0 0.0
      %1611 = vmatprep.subr.mxu0 0.0
      %1612 = vmatpush1.xpose.msra.mxu0 0.0
      %1613 = vmatprep.subr.mxu0 0.0
      %1614 = vmatpush1.xpose.msra.mxu0 0.0
      %1615 = vmatprep.subr.mxu0 0.0
      %1616 = vmatpush1.xpose.msra.mxu0 0.0
      %1617 = vmatprep.subr.mxu0 0.0
      %1618 = vmatpush1.xpose.msra.mxu0 0.0
      %1619 = vmatprep.subr.mxu0 0.0
      %1620 = vmatpush1.xpose.msra.mxu0 0.0
      %1621 = vmatprep.subr.mxu0 0.0
      %1622 = vmatpush1.xpose.msra.mxu0 0.0
      %1623 = vmatprep.subr.mxu0 0.0
      %1624 = vmatpush1.xpose.msra.mxu0 0.0
      %1625 = vmatprep.subr.mxu0 0.0
      %1626 = vmatpush1.xpose.msra.mxu0 0.0
      %1627 = vmatprep.subr.mxu0 0.0
      %1628 = vmatpush1.xpose.msra.mxu0 0.0
      %1629 = vmatprep.subr.mxu0 0.0
      %1630 = vmatpush1.xpose.msra.mxu0 0.0
      %1631 = vmatprep.subr.mxu0 0.0
      %1632 = vmatpush1.xpose.msra.mxu0 0.0
      %1633 = vmatprep.subr.mxu0 0.0
      %1634 = vmatpush1.xpose.msra.mxu0 0.0
      %1635 = vmatprep.subr.mxu0 0.0
      %1636 = vmatpush1.xpose.msra.mxu0 0.0
      %1637 = vmatprep.subr.mxu0 0.0
      %1638 = vmatpush1.xpose.msra.mxu0 0.0
      %1639 = vmatprep.subr.mxu0 0.0
      %1640 = vmatpush1.xpose.msra.mxu0 0.0
      %1641 = vmatprep.subr.mxu0 0.0
      %1642 = vmatpush1.xpose.msra.mxu0 0.0
      %1643 = vmatprep.subr.mxu0 0.0
      %1644 = vmatpush1.xpose.msra.mxu0 0.0
      %1645 = vmatprep.subr.mxu0 0.0
      %1646 = vmatpush1.xpose.msra.mxu0 0.0
      %1647 = vmatprep.subr.mxu0 0.0
      %1648 = vmatpush1.xpose.msra.mxu0 0.0
      %1649 = vmatprep.subr.mxu0 0.0
      %1650 = vmatpush1.xpose.msra.mxu0 0.0
      %1651 = vmatprep.subr.mxu0 0.0
      %1652 = vmatpush1.xpose.msra.mxu0 0.0
      %1653 = vmatprep.subr.mxu0 0.0
      %1654 = vmatpush1.xpose.msra.mxu0 0.0
      %1655 = vmatprep.mubr.f32.mxu0 0.0
      %1656 = vmatmul.mubr.f32.gmra.mrb[0].mxu0 %v1547
      %v1657 = vpop.f32.mrb[0].mxu0
      %v1658 = vadd.f32 0.0, %v1657
      %v1659 = vpop.f32.mrb[0].mxu0
      %1660 = vmatprep.mubr.f32.mxu0 0.0
      %1661 = vmatmul.mubr.f32.gmra.mrb[0].mxu0 %v1550
      %v1662 = vpop.f32.mrb[0].mxu0
      %v1663 = vadd.f32 0.0, %v1662
      %v1664 = vpop.f32.mrb[0].mxu0
      %1665 = vmatprep.mubr.f32.mxu0 0.0
      %1666 = vmatmul.mubr.f32.gmra.mrb[0].mxu0 %v1553
      %v1667 = vpop.f32.mrb[0].mxu0
      %v1668 = vadd.f32 0.0, %v1667
      %v1669 = vpop.f32.mrb[0].mxu0
      %1670 = vmatprep.mubr.f32.mxu0 0.0
      %1671 = vmatmul.mubr.f32.gmra.mrb[0].mxu0 %v1556
      %v1672 = vpop.f32.mrb[0].mxu0
      %v1673 = vadd.f32 0.0, %v1672
      %v1674 = vpop.f32.mrb[0].mxu0
      %1675 = vmatprep.mubr.f32.mxu0 0.0
      %1676 = vmatmul.mubr.f32.gmra.mrb[0].mxu0 %v1559
      %v1677 = vpop.f32.mrb[0].mxu0
      %v1678 = vadd.f32 0.0, %v1677
      %v1679 = vpop.f32.mrb[0].mxu0
      %1680 = vmatprep.mubr.f32.mxu0 0.0
      %1681 = vmatmul.mubr.f32.gmra.mrb[0].mxu0 %v1562
      %v1682 = vpop.f32.mrb[0].mxu0
      %v1683 = vadd.f32 0.0, %v1682
      %v1684 = vpop.f32.mrb[0].mxu0
      %1685 = vmatprep.mubr.f32.mxu0 0.0
      %1686 = vmatmul.mubr.f32.gmra.mrb[0].mxu0 %v1565
      %v1687 = vpop.f32.mrb[0].mxu0
      %v1688 = vadd.f32 0.0, %v1687
      %v1689 = vpop.f32.mrb[0].mxu0
      %1690 = vmatprep.mubr.f32.mxu0 0.0
      %1691 = vmatmul.mubr.f32.gmra.mrb[0].mxu0 %v1568
      %v1692 = vpop.f32.mrb[0].mxu0
      %v1693 = vadd.f32 0.0, %v1692
      %v1694 = vpop.f32.mrb[0].mxu0
      %1695 = vmatprep.mubr.f32.mxu0 0.0
      %1696 = vmatmul.mubr.f32.gmra.mrb[0].mxu0 %v1571
      %v1697 = vpop.f32.mrb[0].mxu0
      %v1698 = vadd.f32 0.0, %v1697
      %v1699 = vpop.f32.mrb[0].mxu0
      %1700 = vmatprep.mubr.f32.mxu0 0.0
      %1701 = vmatmul.mubr.f32.gmra.mrb[0].mxu0 %v1574
      %v1702 = vpop.f32.mrb[0].mxu0
      %v1703 = vadd.f32 0.0, %v1702
      %v1704 = vpop.f32.mrb[0].mxu0
      %1705 = vmatprep.mubr.f32.mxu0 0.0
      %1706 = vmatmul.mubr.f32.gmra.mrb[0].mxu0 %v1577
      %v1707 = vpop.f32.mrb[0].mxu0
      %v1708 = vadd.f32 0.0, %v1707
      %v1709 = vpop.f32.mrb[0].mxu0
      %1710 = vmatprep.mubr.f32.mxu0 0.0
      %1711 = vmatmul.mubr.f32.gmra.mrb[0].mxu0 %v1580
      %v1712 = vpop.f32.mrb[0].mxu0
      %v1713 = vadd.f32 0.0, %v1712
      %v1714 = vpop.f32.mrb[0].mxu0
      %1715 = vmatprep.mubr.f32.mxu0 0.0
      %1716 = vmatmul.mubr.f32.gmra.mrb[0].mxu0 %v1583
      %v1717 = vpop.f32.mrb[0].mxu0
      %v1718 = vadd.f32 0.0, %v1717
      %v1719 = vpop.f32.mrb[0].mxu0
      %1720 = vdwg.mxu0
      %v1721 = vmul.f32 %v1658, 0.17677669
      %v1722 = vmul.f32 %v1663, 0.17677669
      %v1723 = vmul.f32 %v1668, 0.17677669
      %v1724 = vmul.f32 %v1673, 0.17677669
      %v1725 = vmul.f32 %v1678, 0.17677669
      %v1726 = vmul.f32 %v1683, 0.17677669
      %v1727 = vmul.f32 %v1688, 0.17677669
      %v1728 = vmul.f32 %v1693, 0.17677669
      %v1729 = vmul.f32 %v1698, 0.17677669
      %v1730 = vmul.f32 %v1703, 0.17677669
      %v1731 = vmul.f32 %v1708, 0.17677669
      %v1732 = vmul.f32 %v1713, 0.17677669
      %v1733 = vmul.f32 %v1718, 0.17677669
      %v1734 = vadd.f32 %v1721, %v482
      %v1735 = vadd.f32 %v1722, %v483
      %v1736 = vadd.f32 %v1723, %v484
      %v1737 = vadd.f32 %v1724, %v485
      %v1738 = vadd.f32 %v1725, %v486
      %v1739 = vadd.f32 %v1726, %v487
      %v1740 = vadd.f32 %v1727, %v488
      %v1741 = vadd.f32 %v1728, %v489
      %v1742 = vadd.f32 %v1729, %v490
      %v1743 = vadd.f32 %v1730, %v491
      %v1744 = vadd.f32 %v1731, %v492
      %v1745 = vadd.f32 %v1732, %v493
      %v1746 = vadd.f32 %v1733, %v494
      %vm1747 = vcmask 130048
      %v1748 = vsel %vm1747, %v1734, -inf
      %1749 = vmax.xlane.f32.xlu0 %v1748
      %v1750 = vpop.xlane.xlu0 %1749
      %v1751 = vsel %vm1747, %v1735, -inf
      %1752 = vmax.xlane.f32.xlu0 %v1751
      %v1753 = vpop.xlane.xlu0 %1752
      %v1754 = vsel %vm1747, %v1736, -inf
      %1755 = vmax.xlane.f32.xlu0 %v1754
      %v1756 = vpop.xlane.xlu0 %1755
      %v1757 = vsel %vm1747, %v1737, -inf
      %1758 = vmax.xlane.f32.xlu0 %v1757
      %v1759 = vpop.xlane.xlu0 %1758
      %v1760 = vsel %vm1747, %v1738, -inf
      %1761 = vmax.xlane.f32.xlu0 %v1760
      %v1762 = vpop.xlane.xlu0 %1761
      %v1763 = vsel %vm1747, %v1739, -inf
      %1764 = vmax.xlane.f32.xlu0 %v1763
      %v1765 = vpop.xlane.xlu0 %1764
      %v1766 = vsel %vm1747, %v1740, -inf
      %1767 = vmax.xlane.f32.xlu0 %v1766
      %v1768 = vpop.xlane.xlu0 %1767
      %v1769 = vsel %vm1747, %v1741, -inf
      %1770 = vmax.xlane.f32.xlu0 %v1769
      %v1771 = vpop.xlane.xlu0 %1770
      %v1772 = vsel %vm1747, %v1742, -inf
      %1773 = vmax.xlane.f32.xlu0 %v1772
      %v1774 = vpop.xlane.xlu0 %1773
      %v1775 = vsel %vm1747, %v1743, -inf
      %1776 = vmax.xlane.f32.xlu0 %v1775
      %v1777 = vpop.xlane.xlu0 %1776
      %v1778 = vsel %vm1747, %v1744, -inf
      %1779 = vmax.xlane.f32.xlu0 %v1778
      %v1780 = vpop.xlane.xlu0 %1779
      %v1781 = vsel %vm1747, %v1745, -inf
      %1782 = vmax.xlane.f32.xlu0 %v1781
      %v1783 = vpop.xlane.xlu0 %1782
      %v1784 = vsel %vm1747, %v1746, -inf
      %1785 = vmax.xlane.f32.xlu0 %v1784
      %v1786 = vpop.xlane.xlu0 %1785
      %v1787 = vsub.f32 %v1734, %v1750
      %v1788 = vsub.f32 %v1735, %v1753
      %v1789 = vsub.f32 %v1736, %v1756
      %v1790 = vsub.f32 %v1737, %v1759
      %v1791 = vsub.f32 %v1738, %v1762
      %v1792 = vsub.f32 %v1739, %v1765
      %v1793 = vsub.f32 %v1740, %v1768
      %v1794 = vsub.f32 %v1741, %v1771
      %v1795 = vsub.f32 %v1742, %v1774
      %v1796 = vsub.f32 %v1743, %v1777
      %v1797 = vsub.f32 %v1744, %v1780
      %v1798 = vsub.f32 %v1745, %v1783
      %v1799 = vsub.f32 %v1746, %v1786
      %v1800 = vmul.f32 %v1787, 1.442695
      %v1801 = vpow.pop %v1800
      %v1802 = vmul.f32 %v1788, 1.442695
      %v1803 = vpow.pop %v1802
      %v1804 = vmul.f32 %v1789, 1.442695
      %v1805 = vpow.pop %v1804
      %v1806 = vmul.f32 %v1790, 1.442695
      %v1807 = vpow.pop %v1806
      %v1808 = vmul.f32 %v1791, 1.442695
      %v1809 = vpow.pop %v1808
      %v1810 = vmul.f32 %v1792, 1.442695
      %v1811 = vpow.pop %v1810
      %v1812 = vmul.f32 %v1793, 1.442695
      %v1813 = vpow.pop %v1812
      %v1814 = vmul.f32 %v1794, 1.442695
      %v1815 = vpow.pop %v1814
      %v1816 = vmul.f32 %v1795, 1.442695
      %v1817 = vpow.pop %v1816
      %v1818 = vmul.f32 %v1796, 1.442695
      %v1819 = vpow.pop %v1818
      %v1820 = vmul.f32 %v1797, 1.442695
      %v1821 = vpow.pop %v1820
      %v1822 = vmul.f32 %v1798, 1.442695
      %v1823 = vpow.pop %v1822
      %v1824 = vmul.f32 %v1799, 1.442695
      %v1825 = vpow.pop %v1824
      %v1826 = vsel %vm1747, %v1801, 0.0
      %1827 = vadd.xlane.f32.xlu0 %v1826
      %v1828 = vpop.xlane.xlu0 %1827
      %v1829 = vsel %vm1747, %v1803, 0.0
      %1830 = vadd.xlane.f32.xlu0 %v1829
      %v1831 = vpop.xlane.xlu0 %1830
      %v1832 = vsel %vm1747, %v1805, 0.0
      %1833 = vadd.xlane.f32.xlu0 %v1832
      %v1834 = vpop.xlane.xlu0 %1833
      %v1835 = vsel %vm1747, %v1807, 0.0
      %1836 = vadd.xlane.f32.xlu0 %v1835
      %v1837 = vpop.xlane.xlu0 %1836
      %v1838 = vsel %vm1747, %v1809, 0.0
      %1839 = vadd.xlane.f32.xlu0 %v1838
      %v1840 = vpop.xlane.xlu0 %1839
      %v1841 = vsel %vm1747, %v1811, 0.0
      %1842 = vadd.xlane.f32.xlu0 %v1841
      %v1843 = vpop.xlane.xlu0 %1842
      %v1844 = vsel %vm1747, %v1813, 0.0
      %1845 = vadd.xlane.f32.xlu0 %v1844
      %v1846 = vpop.xlane.xlu0 %1845
      %v1847 = vsel %vm1747, %v1815, 0.0
      %1848 = vadd.xlane.f32.xlu0 %v1847
      %v1849 = vpop.xlane.xlu0 %1848
      %v1850 = vsel %vm1747, %v1817, 0.0
      %1851 = vadd.xlane.f32.xlu0 %v1850
      %v1852 = vpop.xlane.xlu0 %1851
      %v1853 = vsel %vm1747, %v1819, 0.0
      %1854 = vadd.xlane.f32.xlu0 %v1853
      %v1855 = vpop.xlane.xlu0 %1854
      %v1856 = vsel %vm1747, %v1821, 0.0
      %1857 = vadd.xlane.f32.xlu0 %v1856
      %v1858 = vpop.xlane.xlu0 %1857
      %v1859 = vsel %vm1747, %v1823, 0.0
      %1860 = vadd.xlane.f32.xlu0 %v1859
      %v1861 = vpop.xlane.xlu0 %1860
      %v1862 = vsel %vm1747, %v1825, 0.0
      %1863 = vadd.xlane.f32.xlu0 %v1862
      %v1864 = vpop.xlane.xlu0 %1863
      %v1865 = vrcp.pop %v1828
      %v1866 = vrcp.pop %v1831
      %v1867 = vrcp.pop %v1834
      %v1868 = vrcp.pop %v1837
      %v1869 = vrcp.pop %v1840
      %v1870 = vrcp.pop %v1843
      %v1871 = vrcp.pop %v1846
      %v1872 = vrcp.pop %v1849
      %v1873 = vrcp.pop %v1852
      %v1874 = vrcp.pop %v1855
      %v1875 = vrcp.pop %v1858
      %v1876 = vrcp.pop %v1861
      %v1877 = vrcp.pop %v1864
      %v1878 = vmul.f32 %v1801, %v1865
      %v1879 = vmul.f32 %v1803, %v1866
      %v1880 = vmul.f32 %v1805, %v1867
      %v1881 = vmul.f32 %v1807, %v1868
      %v1882 = vmul.f32 %v1809, %v1869
      %v1883 = vmul.f32 %v1811, %v1870
      %v1884 = vmul.f32 %v1813, %v1871
      %v1885 = vmul.f32 %v1815, %v1872
      %v1886 = vmul.f32 %v1817, %v1873
      %v1887 = vmul.f32 %v1819, %v1874
      %v1888 = vmul.f32 %v1821, %v1875
      %v1889 = vmul.f32 %v1823, %v1876
      %v1890 = vmul.f32 %v1825, %v1877
      %v1892 = vsel %vm1747, %v1878, 0
      %v1895 = vsel %vm1747, %v1879, 0
      %v1898 = vsel %vm1747, %v1880, 0
      %v1901 = vsel %vm1747, %v1881, 0
      %v1904 = vsel %vm1747, %v1882, 0
      %v1907 = vsel %vm1747, %v1883, 0
      %v1910 = vsel %vm1747, %v1884, 0
      %v1913 = vsel %vm1747, %v1885, 0
      %v1916 = vsel %vm1747, %v1886, 0
      %v1919 = vsel %vm1747, %v1887, 0
      %v1922 = vsel %vm1747, %v1888, 0
      %v1925 = vsel %vm1747, %v1889, 0
      %v1928 = vsel %vm1747, %v1890, 0
      %1930 = vmatprep.subr.mxu0 0.0
      %1931 = vmatpush1.msra.mxu0 %v1544
      %1932 = vmatprep.subr.mxu0 0.0
      %1933 = vmatpush1.msra.mxu0 %v1545
      %1934 = vmatprep.subr.mxu0 0.0
      %1935 = vmatpush1.msra.mxu0 0.0
      %1936 = vmatprep.subr.mxu0 0.0
      %1937 = vmatpush1.msra.mxu0 0.0
      %1938 = vmatprep.subr.mxu0 0.0
      %1939 = vmatpush1.msra.mxu0 0.0
      %1940 = vmatprep.subr.mxu0 0.0
      %1941 = vmatpush1.msra.mxu0 0.0
      %1942 = vmatprep.subr.mxu0 0.0
      %1943 = vmatpush1.msra.mxu0 0.0
      %1944 = vmatprep.subr.mxu0 0.0
      %1945 = vmatpush1.msra.mxu0 0.0
      %1946 = vmatprep.subr.mxu0 0.0
      %1947 = vmatpush1.msra.mxu0 0.0
      %1948 = vmatprep.subr.mxu0 0.0
      %1949 = vmatpush1.msra.mxu0 0.0
      %1950 = vmatprep.subr.mxu0 0.0
      %1951 = vmatpush1.msra.mxu0 0.0
      %1952 = vmatprep.subr.mxu0 0.0
      %1953 = vmatpush1.msra.mxu0 0.0
      %1954 = vmatprep.subr.mxu0 0.0
      %1955 = vmatpush1.msra.mxu0 0.0
      %1956 = vmatprep.subr.mxu0 0.0
      %1957 = vmatpush1.msra.mxu0 0.0
      %1958 = vmatprep.subr.mxu0 0.0
      %1959 = vmatpush1.msra.mxu0 0.0
      %1960 = vmatprep.subr.mxu0 0.0
      %1961 = vmatpush1.msra.mxu0 0.0
      %1962 = vmatprep.subr.mxu0 0.0
      %1963 = vmatpush1.msra.mxu0 0.0
      %1964 = vmatprep.subr.mxu0 0.0
      %1965 = vmatpush1.msra.mxu0 0.0
      %1966 = vmatprep.subr.mxu0 0.0
      %1967 = vmatpush1.msra.mxu0 0.0
      %1968 = vmatprep.subr.mxu0 0.0
      %1969 = vmatpush1.msra.mxu0 0.0
      %1970 = vmatprep.subr.mxu0 0.0
      %1971 = vmatpush1.msra.mxu0 0.0
      %1972 = vmatprep.subr.mxu0 0.0
      %1973 = vmatpush1.msra.mxu0 0.0
      %1974 = vmatprep.subr.mxu0 0.0
      %1975 = vmatpush1.msra.mxu0 0.0
      %1976 = vmatprep.subr.mxu0 0.0
      %1977 = vmatpush1.msra.mxu0 0.0
      %1978 = vmatprep.subr.mxu0 0.0
      %1979 = vmatpush1.msra.mxu0 0.0
      %1980 = vmatprep.subr.mxu0 0.0
      %1981 = vmatpush1.msra.mxu0 0.0
      %1982 = vmatprep.subr.mxu0 0.0
      %1983 = vmatpush1.msra.mxu0 0.0
      %1984 = vmatprep.subr.mxu0 0.0
      %1985 = vmatpush1.msra.mxu0 0.0
      %1986 = vmatprep.subr.mxu0 0.0
      %1987 = vmatpush1.msra.mxu0 0.0
      %1988 = vmatprep.subr.mxu0 0.0
      %1989 = vmatpush1.msra.mxu0 0.0
      %1990 = vmatprep.subr.mxu0 0.0
      %1991 = vmatpush1.msra.mxu0 0.0
      %1992 = vmatprep.subr.mxu0 0.0
      %1993 = vmatpush1.msra.mxu0 0.0
      %1994 = vmatprep.mubr.f32.mxu0 0.0
      %1995 = vmatmul.mubr.f32.gmra.mrb[0].mxu0 %v1892
      %v1996 = vpop.f32.mrb[0].mxu0
      %v1997 = vadd.f32 0.0, %v1996
      %v1998 = vpop.f32.mrb[0].mxu0
      %1999 = vmatprep.mubr.f32.mxu0 0.0
      %2000 = vmatmul.mubr.f32.gmra.mrb[0].mxu0 %v1895
      %v2001 = vpop.f32.mrb[0].mxu0
      %v2002 = vadd.f32 0.0, %v2001
      %v2003 = vpop.f32.mrb[0].mxu0
      %2004 = vmatprep.mubr.f32.mxu0 0.0
      %2005 = vmatmul.mubr.f32.gmra.mrb[0].mxu0 %v1898
      %v2006 = vpop.f32.mrb[0].mxu0
      %v2007 = vadd.f32 0.0, %v2006
      %v2008 = vpop.f32.mrb[0].mxu0
      %2009 = vmatprep.mubr.f32.mxu0 0.0
      %2010 = vmatmul.mubr.f32.gmra.mrb[0].mxu0 %v1901
      %v2011 = vpop.f32.mrb[0].mxu0
      %v2012 = vadd.f32 0.0, %v2011
      %v2013 = vpop.f32.mrb[0].mxu0
      %2014 = vmatprep.mubr.f32.mxu0 0.0
      %2015 = vmatmul.mubr.f32.gmra.mrb[0].mxu0 %v1904
      %v2016 = vpop.f32.mrb[0].mxu0
      %v2017 = vadd.f32 0.0, %v2016
      %v2018 = vpop.f32.mrb[0].mxu0
      %2019 = vmatprep.mubr.f32.mxu0 0.0
      %2020 = vmatmul.mubr.f32.gmra.mrb[0].mxu0 %v1907
      %v2021 = vpop.f32.mrb[0].mxu0
      %v2022 = vadd.f32 0.0, %v2021
      %v2023 = vpop.f32.mrb[0].mxu0
      %2024 = vmatprep.mubr.f32.mxu0 0.0
      %2025 = vmatmul.mubr.f32.gmra.mrb[0].mxu0 %v1910
      %v2026 = vpop.f32.mrb[0].mxu0
      %v2027 = vadd.f32 0.0, %v2026
      %v2028 = vpop.f32.mrb[0].mxu0
      %2029 = vmatprep.mubr.f32.mxu0 0.0
      %2030 = vmatmul.mubr.f32.gmra.mrb[0].mxu0 %v1913
      %v2031 = vpop.f32.mrb[0].mxu0
      %v2032 = vadd.f32 0.0, %v2031
      %v2033 = vpop.f32.mrb[0].mxu0
      %2034 = vmatprep.mubr.f32.mxu0 0.0
      %2035 = vmatmul.mubr.f32.gmra.mrb[0].mxu0 %v1916
      %v2036 = vpop.f32.mrb[0].mxu0
      %v2037 = vadd.f32 0.0, %v2036
      %v2038 = vpop.f32.mrb[0].mxu0
      %2039 = vmatprep.mubr.f32.mxu0 0.0
      %2040 = vmatmul.mubr.f32.gmra.mrb[0].mxu0 %v1919
      %v2041 = vpop.f32.mrb[0].mxu0
      %v2042 = vadd.f32 0.0, %v2041
      %v2043 = vpop.f32.mrb[0].mxu0
      %2044 = vmatprep.mubr.f32.mxu0 0.0
      %2045 = vmatmul.mubr.f32.gmra.mrb[0].mxu0 %v1922
      %v2046 = vpop.f32.mrb[0].mxu0
      %v2047 = vadd.f32 0.0, %v2046
      %v2048 = vpop.f32.mrb[0].mxu0
      %2049 = vmatprep.mubr.f32.mxu0 0.0
      %2050 = vmatmul.mubr.f32.gmra.mrb[0].mxu0 %v1925
      %v2051 = vpop.f32.mrb[0].mxu0
      %v2052 = vadd.f32 0.0, %v2051
      %v2053 = vpop.f32.mrb[0].mxu0
      %2054 = vmatprep.mubr.f32.mxu0 0.0
      %2055 = vmatmul.mubr.f32.gmra.mrb[0].mxu0 %v1928
      %v2056 = vpop.f32.mrb[0].mxu0
      %v2057 = vadd.f32 0.0, %v2056
      %v2058 = vpop.f32.mrb[0].mxu0
      %2059 = vdwg.mxu0
      %v2060 = vtanh.pop %v1997
      %v2061 = vtanh.pop %v2002
      %v2062 = vtanh.pop %v2007
      %v2063 = vtanh.pop %v2012
      %v2064 = vtanh.pop %v2017
      %v2065 = vtanh.pop %v2022
      %v2066 = vtanh.pop %v2027
      %v2067 = vtanh.pop %v2032
      %v2068 = vtanh.pop %v2037
      %v2069 = vtanh.pop %v2042
      %v2070 = vtanh.pop %v2047
      %v2071 = vtanh.pop %v2052
      %v2072 = vtanh.pop %v2057
      %v2073 = vadd.f32 %v2060, %v585
      %v2074 = vadd.f32 %v2061, %v590
      %v2075 = vadd.f32 %v2062, %v595
      %v2076 = vadd.f32 %v2063, %v600
      %v2077 = vadd.f32 %v2064, %v605
      %v2078 = vadd.f32 %v2065, %v610
      %v2079 = vadd.f32 %v2066, %v615
      %v2080 = vadd.f32 %v2067, %v620
      %v2081 = vadd.f32 %v2068, %v625
      %v2082 = vadd.f32 %v2069, %v630
      %v2083 = vadd.f32 %v2070, %v635
      %v2084 = vadd.f32 %v2071, %v640
      %v2085 = vadd.f32 %v2072, %v645
      %vm2086 = vcmask 850944
      %v2088 = vsel %vm2086, %v466, 0
      %2090 = vmatprep.subr.mxu0 0.0
      %2091 = vmatpush1.msra.mxu0 %v2073
      %2092 = vmatprep.subr.mxu0 0.0
      %2093 = vmatpush1.msra.mxu0 %v2074
      %2094 = vmatprep.subr.mxu0 0.0
      %2095 = vmatpush1.msra.mxu0 %v2075
      %2096 = vmatprep.subr.mxu0 0.0
      %2097 = vmatpush1.msra.mxu0 %v2076
      %2098 = vmatprep.subr.mxu0 0.0
      %2099 = vmatpush1.msra.mxu0 %v2077
      %2100 = vmatprep.subr.mxu0 0.0
      %2101 = vmatpush1.msra.mxu0 %v2078
      %2102 = vmatprep.subr.mxu0 0.0
      %2103 = vmatpush1.msra.mxu0 %v2079
      %2104 = vmatprep.subr.mxu0 0.0
      %2105 = vmatpush1.msra.mxu0 %v2080
      %2106 = vmatprep.subr.mxu0 0.0
      %2107 = vmatpush1.msra.mxu0 %v2081
      %2108 = vmatprep.subr.mxu0 0.0
      %2109 = vmatpush1.msra.mxu0 %v2082
      %2110 = vmatprep.subr.mxu0 0.0
      %2111 = vmatpush1.msra.mxu0 %v2083
      %2112 = vmatprep.subr.mxu0 0.0
      %2113 = vmatpush1.msra.mxu0 %v2084
      %2114 = vmatprep.subr.mxu0 0.0
      %2115 = vmatpush1.msra.mxu0 %v2085
      %2116 = vmatprep.subr.mxu0 0.0
      %2117 = vmatpush1.msra.mxu0 0.0
      %2118 = vmatprep.subr.mxu0 0.0
      %2119 = vmatpush1.msra.mxu0 0.0
      %2120 = vmatprep.subr.mxu0 0.0
      %2121 = vmatpush1.msra.mxu0 0.0
      %2122 = vmatprep.subr.mxu0 0.0
      %2123 = vmatpush1.msra.mxu0 0.0
      %2124 = vmatprep.subr.mxu0 0.0
      %2125 = vmatpush1.msra.mxu0 0.0
      %2126 = vmatprep.subr.mxu0 0.0
      %2127 = vmatpush1.msra.mxu0 0.0
      %2128 = vmatprep.subr.mxu0 0.0
      %2129 = vmatpush1.msra.mxu0 0.0
      %2130 = vmatprep.subr.mxu0 0.0
      %2131 = vmatpush1.msra.mxu0 0.0
      %2132 = vmatprep.subr.mxu0 0.0
      %2133 = vmatpush1.msra.mxu0 0.0
      %2134 = vmatprep.subr.mxu0 0.0
      %2135 = vmatpush1.msra.mxu0 0.0
      %2136 = vmatprep.subr.mxu0 0.0
      %2137 = vmatpush1.msra.mxu0 0.0
      %2138 = vmatprep.subr.mxu0 0.0
      %2139 = vmatpush1.msra.mxu0 0.0
      %2140 = vmatprep.subr.mxu0 0.0
      %2141 = vmatpush1.msra.mxu0 0.0
      %2142 = vmatprep.subr.mxu0 0.0
      %2143 = vmatpush1.msra.mxu0 0.0
      %2144 = vmatprep.subr.mxu0 0.0
      %2145 = vmatpush1.msra.mxu0 0.0
      %2146 = vmatprep.subr.mxu0 0.0
      %2147 = vmatpush1.msra.mxu0 0.0
      %2148 = vmatprep.subr.mxu0 0.0
      %2149 = vmatpush1.msra.mxu0 0.0
      %2150 = vmatprep.subr.mxu0 0.0
      %2151 = vmatpush1.msra.mxu0 0.0
      %2152 = vmatprep.subr.mxu0 0.0
      %2153 = vmatpush1.msra.mxu0 0.0
      %2154 = vmatprep.mubr.f32.mxu0 0.0
      %2155 = vmatmul.mubr.f32.gmra.mrb[0].mxu0 %v2088
      %v2156 = vpop.f32.mrb[0].mxu0
      %v2157 = vadd.f32 0.0, %v2156
      %v2158 = vpop.f32.mrb[0].mxu0
      %2159 = vdwg.mxu0
      %v2160 = vld [vmem:[%s10] sm:$0xff]
      %v2161 = vld [vmem:[%s10 + $0x8] sm:$0xff]
      %v2162 = vld [vmem:[%s10 + $0x10] sm:$0xff]
      %v2163 = vld [vmem:[%s10 + $0x18] sm:$0xff]
      %v2164 = vld [vmem:[%s10 + $0x20] sm:$0xff]
      %v2165 = vld [vmem:[%s10 + $0x28] sm:$0xff]
      %v2166 = vld [vmem:[%s10 + $0x30] sm:$0xff]
      %v2167 = vld [vmem:[%s10 + $0x38] sm:$0xff]
      %v2168 = vld [vmem:[%s10 + $0x40] sm:$0xff]
      %v2169 = vld [vmem:[%s10 + $0x48] sm:$0xff]
      %v2170 = vld [vmem:[%s10 + $0x50] sm:$0xff]
      %v2171 = vld [vmem:[%s10 + $0x58] sm:$0xff]
      %v2172 = vld [vmem:[%s10 + $0x60] sm:$0xff]
      %v2173 = vld [vmem:[%s10 + $0x68] sm:$0xff]
      %v2174 = vld [vmem:[%s10 + $0x70] sm:$0xff]
      %v2175 = vld [vmem:[%s10 + $0x78] sm:$0xff]
      %v2176 = vld [vmem:[%s11] sm:$0xf]
      %v2178 = vlaneseq
      %v2179 = vshrl.u32 %v2178, 7
      %v2180 = vsub.s32 0, %v2179
      %v2181 = vrot.slane %v2176, %v2180
      %v2182 = vlaneseq
      %v2183 = vshrl.u32 %v2182, 7
      %v2184 = vsub.s32 1, %v2183
      %v2185 = vrot.slane %v2176, %v2184
      %v2186 = vlaneseq
      %v2187 = vshrl.u32 %v2186, 7
      %v2188 = vsub.s32 2, %v2187
      %v2189 = vrot.slane %v2176, %v2188
      %v2190 = vlaneseq
      %v2191 = vshrl.u32 %v2190, 7
      %v2192 = vsub.s32 3, %v2191
      %v2193 = vrot.slane %v2176, %v2192
      %v2199 = vsel %vm659, %v2157, 0
      %2201 = vmatprep.subr.mxu0 %v2161
      %2202 = vmatpush1.msra.mxu0 %v2160
      %2203 = vmatprep.subr.mxu0 %v2165
      %2204 = vmatpush1.msra.mxu0 %v2164
      %2205 = vmatprep.subr.mxu0 %v2169
      %2206 = vmatpush1.msra.mxu0 %v2168
      %2207 = vmatprep.subr.mxu0 %v2173
      %2208 = vmatpush1.msra.mxu0 %v2172
      %2209 = vmatprep.subr.mxu0 0.0
      %2210 = vmatpush1.msra.mxu0 0.0
      %2211 = vmatprep.subr.mxu0 0.0
      %2212 = vmatpush1.msra.mxu0 0.0
      %2213 = vmatprep.subr.mxu0 0.0
      %2214 = vmatpush1.msra.mxu0 0.0
      %2215 = vmatprep.subr.mxu0 0.0
      %2216 = vmatpush1.msra.mxu0 0.0
      %2217 = vmatprep.subr.mxu0 0.0
      %2218 = vmatpush1.msra.mxu0 0.0
      %2219 = vmatprep.subr.mxu0 0.0
      %2220 = vmatpush1.msra.mxu0 0.0
      %2221 = vmatprep.subr.mxu0 0.0
      %2222 = vmatpush1.msra.mxu0 0.0
      %2223 = vmatprep.subr.mxu0 0.0
      %2224 = vmatpush1.msra.mxu0 0.0
      %2225 = vmatprep.subr.mxu0 0.0
      %2226 = vmatpush1.msra.mxu0 0.0
      %2227 = vmatprep.subr.mxu0 0.0
      %2228 = vmatpush1.msra.mxu0 0.0
      %2229 = vmatprep.subr.mxu0 0.0
      %2230 = vmatpush1.msra.mxu0 0.0
      %2231 = vmatprep.subr.mxu0 0.0
      %2232 = vmatpush1.msra.mxu0 0.0
      %2233 = vmatprep.subr.mxu0 0.0
      %2234 = vmatpush1.msra.mxu0 0.0
      %2235 = vmatprep.subr.mxu0 0.0
      %2236 = vmatpush1.msra.mxu0 0.0
      %2237 = vmatprep.subr.mxu0 0.0
      %2238 = vmatpush1.msra.mxu0 0.0
      %2239 = vmatprep.subr.mxu0 0.0
      %2240 = vmatpush1.msra.mxu0 0.0
      %2241 = vmatprep.subr.mxu0 0.0
      %2242 = vmatpush1.msra.mxu0 0.0
      %2243 = vmatprep.subr.mxu0 0.0
      %2244 = vmatpush1.msra.mxu0 0.0
      %2245 = vmatprep.subr.mxu0 0.0
      %2246 = vmatpush1.msra.mxu0 0.0
      %2247 = vmatprep.subr.mxu0 0.0
      %2248 = vmatpush1.msra.mxu0 0.0
      %2249 = vmatprep.subr.mxu0 0.0
      %2250 = vmatpush1.msra.mxu0 0.0
      %2251 = vmatprep.subr.mxu0 0.0
      %2252 = vmatpush1.msra.mxu0 0.0
      %2253 = vmatprep.subr.mxu0 0.0
      %2254 = vmatpush1.msra.mxu0 0.0
      %2255 = vmatprep.subr.mxu0 0.0
      %2256 = vmatpush1.msra.mxu0 0.0
      %2257 = vmatprep.subr.mxu0 0.0
      %2258 = vmatpush1.msra.mxu0 0.0
      %2259 = vmatprep.subr.mxu0 0.0
      %2260 = vmatpush1.msra.mxu0 0.0
      %2261 = vmatprep.subr.mxu0 0.0
      %2262 = vmatpush1.msra.mxu0 0.0
      %2263 = vmatprep.subr.mxu0 0.0
      %2264 = vmatpush1.msra.mxu0 0.0
      %2265 = vmatprep.mubr.f32.mxu0 0.0
      %2266 = vmatmul.mubr.f32.gmra.mrb[0].mxu0 %v2199
      %v2267 = vpop.f32.mrb[0].mxu0
      %v2268 = vadd.f32 %v2181, %v2267
      %v2269 = vpop.f32.mrb[0].mxu0
      %v2270 = vadd.f32 %v2185, %v2269
      %2271 = vdwg.mxu0
      %2272 = vmatprep.subr.mxu0 %v2163
      %2273 = vmatpush1.msra.mxu0 %v2162
      %2274 = vmatprep.subr.mxu0 %v2167
      %2275 = vmatpush1.msra.mxu0 %v2166
      %2276 = vmatprep.subr.mxu0 %v2171
      %2277 = vmatpush1.msra.mxu0 %v2170
      %2278 = vmatprep.subr.mxu0 %v2175
      %2279 = vmatpush1.msra.mxu0 %v2174
      %2280 = vmatprep.subr.mxu0 0.0
      %2281 = vmatpush1.msra.mxu0 0.0
      %2282 = vmatprep.subr.mxu0 0.0
      %2283 = vmatpush1.msra.mxu0 0.0
      %2284 = vmatprep.subr.mxu0 0.0
      %2285 = vmatpush1.msra.mxu0 0.0
      %2286 = vmatprep.subr.mxu0 0.0
      %2287 = vmatpush1.msra.mxu0 0.0
      %2288 = vmatprep.subr.mxu0 0.0
      %2289 = vmatpush1.msra.mxu0 0.0
      %2290 = vmatprep.subr.mxu0 0.0
      %2291 = vmatpush1.msra.mxu0 0.0
      %2292 = vmatprep.subr.mxu0 0.0
      %2293 = vmatpush1.msra.mxu0 0.0
      %2294 = vmatprep.subr.mxu0 0.0
      %2295 = vmatpush1.msra.mxu0 0.0
      %2296 = vmatprep.subr.mxu0 0.0
      %2297 = vmatpush1.msra.mxu0 0.0
      %2298 = vmatprep.subr.mxu0 0.0
      %2299 = vmatpush1.msra.mxu0 0.0
      %2300 = vmatprep.subr.mxu0 0.0
      %2301 = vmatpush1.msra.mxu0 0.0
      %2302 = vmatprep.subr.mxu0 0.0
      %2303 = vmatpush1.msra.mxu0 0.0
      %2304 = vmatprep.subr.mxu0 0.0
      %2305 = vmatpush1.msra.mxu0 0.0
      %2306 = vmatprep.subr.mxu0 0.0
      %2307 = vmatpush1.msra.mxu0 0.0
      %2308 = vmatprep.subr.mxu0 0.0
      %2309 = vmatpush1.msra.mxu0 0.0
      %2310 = vmatprep.subr.mxu0 0.0
      %2311 = vmatpush1.msra.mxu0 0.0
      %2312 = vmatprep.subr.mxu0 0.0
      %2313 = vmatpush1.msra.mxu0 0.0
      %2314 = vmatprep.subr.mxu0 0.0
      %2315 = vmatpush1.msra.mxu0 0.0
      %2316 = vmatprep.subr.mxu0 0.0
      %2317 = vmatpush1.msra.mxu0 0.0
      %2318 = vmatprep.subr.mxu0 0.0
      %2319 = vmatpush1.msra.mxu0 0.0
      %2320 = vmatprep.subr.mxu0 0.0
      %2321 = vmatpush1.msra.mxu0 0.0
      %2322 = vmatprep.subr.mxu0 0.0
      %2323 = vmatpush1.msra.mxu0 0.0
      %2324 = vmatprep.subr.mxu0 0.0
      %2325 = vmatpush1.msra.mxu0 0.0
      %2326 = vmatprep.subr.mxu0 0.0
      %2327 = vmatpush1.msra.mxu0 0.0
      %2328 = vmatprep.subr.mxu0 0.0
      %2329 = vmatpush1.msra.mxu0 0.0
      %2330 = vmatprep.subr.mxu0 0.0
      %2331 = vmatpush1.msra.mxu0 0.0
      %2332 = vmatprep.subr.mxu0 0.0
      %2333 = vmatpush1.msra.mxu0 0.0
      %2334 = vmatprep.subr.mxu0 0.0
      %2335 = vmatpush1.msra.mxu0 0.0
      %2336 = vmatprep.mubr.f32.mxu0 0.0
      %2337 = vmatmul.mubr.f32.gmra.mrb[0].mxu0 %v2199
      %v2338 = vpop.f32.mrb[0].mxu0
      %v2339 = vadd.f32 %v2189, %v2338
      %v2340 = vpop.f32.mrb[0].mxu0
      %v2341 = vadd.f32 %v2193, %v2340
      %2342 = vdwg.mxu0
      %v2343 = vtanh.pop %v2268
      %v2344 = vtanh.pop %v2270
      %v2345 = vtanh.pop %v2339
      %v2346 = vtanh.pop %v2341
      %v2351 = vcombine.low %v2343, %v2344
      %v2352 = vcombine.low %v2345, %v2346
      %v2354 = vunpack.c.l.s4 1983009808
      %v2355 = vunpack.c.0.s8 %v2354
      %v2356 = vlaneseq
      %v2357 = vshrl.u32 %v2356, 7
      %v2358 = vsub.s32 %v2355, %v2357
      %v2359 = vrot.slane %v2351, %v2358
      %v2361 = vunpack.c.l.s4 1983009808
      %v2362 = vunpack.c.0.s8 %v2361
      %v2363 = vlaneseq
      %v2364 = vshrl.u32 %v2363, 7
      %v2365 = vsub.s32 %v2362, %v2364
      %v2366 = vrot.slane %v2352, %v2365
      %v2367 = vcombine.low %v2359, %v2366
      %2369 = vst [vmem:[%s450] sm:$0xff] %v2367
      %p2370 = scmp.lt.s32.totalorder %s23, 1
      %s2371 = scalar_select %p2370, %s23, 1
      %s2372 = smul.addr %s2371, 4
      %s2373 = smul.addr %s2372, 2
      %s2374 = scalar_lea.vmem %s12, %s2373
      // Predicated region
      $region69: #{tmr_ner_forward.2} parent=67 // pred_check
        %p2375 = pneg %p308
      $region70: #{tmr_ner_forward.2} parent=67 // pred_check_branch
        %2377 = sbr.rel (%p2375) target = $region72
      $region71: #{tmr_ner_forward.2} parent=67 // pred_region
        _
      $region72: #{tmr_ner_forward.2} parent=67 // pred_fallthru
        _
    $region68: #{tmr_ner_forward.2} parent=5 // pred_fallthru
      _
    %p2378 = scmp.le.s32.totalorder 2, %s18
    // Predicated region
    $region73: #{tmr_ner_forward.2} parent=5 // pred_check
      %p2379 = pneg %p2378
    $region74: #{tmr_ner_forward.2} parent=5 // pred_check_branch
      %2381 = sbr.rel (%p2379) target = $region76
    $region75: #{tmr_ner_forward.2} parent=5 // pred_region
      %s2382 = ssub.s32 %s18, 2
      // Predicated region
      $region77: #{tmr_ner_forward.2} parent=75 // pred_check
        %p2383 = pneg %p314
      $region78: #{tmr_ner_forward.2} parent=75 // pred_check_branch
        %2385 = sbr.rel (%p2383) target = $region80
      $region79: #{tmr_ner_forward.2} parent=75 // pred_region
        %p2386 = scmp.lt.s32.totalorder %s24, 1
        %s2387 = scalar_select %p2386, %s24, 1
        %s2388 = smul.addr %s2387, 4
        %s2389 = smul.addr %s2388, 2
        %s2390 = scalar_lea.vmem %s12, %s2389
      $region80: #{tmr_ner_forward.2} parent=75 // pred_fallthru
        _
    $region76: #{tmr_ner_forward.2} parent=5 // pred_fallthru
      _
  $region6: #{tmr_ner_forward.2} parent=0 // loop_footer
    %s22 = sadd.s32 1, %s18
  $region7: #{tmr_ner_forward.2} parent=0 // loop_footer_branch
    %17 = sbr.rel target = $region3
  $region8: #{tmr_ner_forward.2} parent=0 // loop_exit
    _

</llo_original>
